<compile_context>
chip_gen: v6e
topology: v6e:2x2x1
jax: 0.10.0
libtpu: 0.0.40
codegen_flags: <defaults>
</compile_context>

<pallas_src>
import functools
import math

import numpy as np
import jax
import jax.numpy as jnp
from jax.experimental import pallas as pl
from jax.experimental.pallas import tpu as pltpu


_VMEM_LIMIT = 48 * 1024 * 1024   # above 16 MiB (v5e) / 32 MiB (v6e,v7x) scoped defaults


def _ceil_to(a, m):
    return ((a + m - 1) // m) * m


# ----------------------------------------------------------------------------
# In-kernel helpers (f32 math)
# ----------------------------------------------------------------------------

def _ln(x, g, b, eps=1e-5):
    mean = jnp.mean(x, axis=-1, keepdims=True)
    var = jnp.mean(jnp.square(x - mean), axis=-1, keepdims=True)
    return (x - mean) * jax.lax.rsqrt(var + eps) * g + b


def _erf_approx(x):
    # TODO(synk): lax.erf lowering inside Mosaic is not guaranteed, so exact GELU uses
    # the Abramowitz&Stegun 7.1.26 polynomial (|err| <= 1.5e-7, i.e. f32-exact).
    a1, a2, a3, a4, a5 = 0.254829592, -0.284496736, 1.421413741, -1.453152027, 1.061405429
    p = 0.3275911
    z = jnp.abs(x)
    t = 1.0 / (1.0 + p * z)
    poly = ((((a5 * t + a4) * t + a3) * t + a2) * t + a1) * t
    y = 1.0 - poly * jnp.exp(-z * z)
    return jnp.where(x < 0, -y, y)


def _gelu(x):
    return 0.5 * x * (1.0 + _erf_approx(x * 0.7071067811865475))


# ----------------------------------------------------------------------------
# Row-wise Pallas kernels (tiled over rows; feature dims ride whole)
# ----------------------------------------------------------------------------

def _linear_kernel(x_ref, w_ref, b_ref, o_ref):
    y = (jnp.dot(x_ref[...].astype(jnp.bfloat16), w_ref[...],
                 preferred_element_type=jnp.float32) + b_ref[...])
    o_ref[...] = y.astype(o_ref.dtype)


def _ln_linear_kernel(x_ref, g_ref, bt_ref, w_ref, b_ref, o_ref):
    xn = _ln(x_ref[...], g_ref[...], bt_ref[...])
    y = (jnp.dot(xn.astype(jnp.bfloat16), w_ref[...],
                 preferred_element_type=jnp.float32) + b_ref[...])
    o_ref[...] = y.astype(o_ref.dtype)


def _res_ln_mlp_res_kernel(x_ref, a_ref, g_ref, bt_ref, w1_ref, b1_ref, w2_ref, b2_ref,
                           o_ref):
    # x = shortcut + attention_branch ; out = x + FF2(GELU(FF1(LN(x))))
    x = x_ref[...] + a_ref[...].astype(jnp.float32)
    xn = _ln(x, g_ref[...], bt_ref[...])
    h = (jnp.dot(xn.astype(jnp.bfloat16), w1_ref[...],
                 preferred_element_type=jnp.float32) + b1_ref[...])
    h = _gelu(h)
    y = (jnp.dot(h.astype(jnp.bfloat16), w2_ref[...],
                 preferred_element_type=jnp.float32) + b2_ref[...])
    o_ref[...] = (x + y).astype(o_ref.dtype)


def _linear_ln_kernel(x_ref, w_ref, g_ref, bt_ref, o_ref):
    y = jnp.dot(x_ref[...].astype(jnp.bfloat16), w_ref[...],
                preferred_element_type=jnp.float32)
    o_ref[...] = _ln(y, g_ref[...], bt_ref[...]).astype(o_ref.dtype)


def _row_plan(m, max_tm=1024):
    """16-aligned row tiles (bf16 packs 2 rows/sublane).  Small row counts -> one
    grid step (no forced split on single-TC v5e/v6e); large row counts -> 1024-row
    steps so v7x's two TensorCores each get several pipelined steps."""
    mp = _ceil_to(m, 16)
    if mp <= max_tm:
        return mp, mp
    tm = max_tm
    return _ceil_to(mp, tm), tm


def _rowwise_call(kernel, row_inputs, params, n_out, out_dtype=jnp.float32, max_tm=1024):
    """Grid a row-wise kernel over row tiles; params ride as whole 2-D blocks."""
    m = row_inputs[0].shape[0]
    mp, tm = _row_plan(m, max_tm)
    ins, in_specs = [], []
    for r in row_inputs:
        if mp != m:
            r = jnp.pad(r, ((0, mp - m), (0, 0)))
        ins.append(r)
        in_specs.append(pl.BlockSpec((tm, r.shape[1]), lambda i: (i, 0)))
    for p in params:
        ins.append(p)
        in_specs.append(pl.BlockSpec(p.shape, lambda i: (0, 0)))
    out = pl.pallas_call(
        kernel,
        out_shape=jax.ShapeDtypeStruct((mp, n_out), out_dtype),
        grid=(mp // tm,),
        in_specs=in_specs,
        out_specs=pl.BlockSpec((tm, n_out), lambda i: (i, 0)),
        compiler_params=pltpu.CompilerParams(
            dimension_semantics=("parallel",),
            vmem_limit_bytes=_VMEM_LIMIT),
    )(*ins)
    return out[:m]


def linear_pallas(x, w, b, out_dtype=jnp.float32):
    return _rowwise_call(_linear_kernel, [x], [w, b], w.shape[1], out_dtype)


def ln_linear_pallas(x, g, bt, w, b, out_dtype=jnp.bfloat16):
    return _rowwise_call(_ln_linear_kernel, [x], [g, bt, w, b], w.shape[1], out_dtype)


def res_ln_mlp_res_pallas(shortcut, attn, g, bt, w1, b1, w2, b2):
    return _rowwise_call(_res_ln_mlp_res_kernel, [shortcut, attn],
                         [g, bt, w1, b1, w2, b2], w2.shape[1], jnp.float32)


def linear_ln_pallas(x, w, g, bt):
    return _rowwise_call(_linear_ln_kernel, [x], [w, g, bt], w.shape[1], jnp.float32)


# ----------------------------------------------------------------------------
# Fused windowed attention kernel (heads split + block-diag QK^T + softmax + PV
# + head merge + output projection, all in VMEM)
# ----------------------------------------------------------------------------

def _win_attn_kernel(qkv_ref, bias_ref, pw_ref, pb_ref, o_ref, *, heads, hd, c, scale):
    qkv = qkv_ref[0]                                   # (R, 3c) bf16, R = group*n tokens
    outs = []
    for h in range(heads):
        q = qkv[:, h * hd:(h + 1) * hd]
        k = qkv[:, c + h * hd:c + (h + 1) * hd]
        v = qkv[:, 2 * c + h * hd:2 * c + (h + 1) * hd]
        # block-diagonal scores over the whole window group: full 128-lane rows
        s = jax.lax.dot_general(q, k, (((1,), (1,)), ((), ())),
                                preferred_element_type=jnp.float32)
        s = s * scale + bias_ref[h]                    # rel bias + shift mask + -1e9 off-diag
        s = s - jnp.max(s, axis=-1, keepdims=True)
        p = jnp.exp(s)
        l = jnp.sum(p, axis=-1, keepdims=True)
        o = jnp.dot(p.astype(jnp.bfloat16), v, preferred_element_type=jnp.float32)
        outs.append(o * pl.reciprocal(l, approx=True))
    om = jnp.concatenate(outs, axis=-1)                # (R, c) f32, heads merged
    y = (jnp.dot(om.astype(jnp.bfloat16), pw_ref[...],
                 preferred_element_type=jnp.float32) + pb_ref[...])
    o_ref[0] = y.astype(o_ref.dtype)


def win_attention_pallas(qkv_g, bias, proj_w, proj_b, *, heads, hd, c, scale):
    """qkv_g: (groups, R, 3c) bf16; bias: (heads, R, R) f32 block-diagonal.
    Returns (groups, R, c) bf16 (already projected)."""
    n_groups, rows, _ = qkv_g.shape
    kern = functools.partial(_win_attn_kernel, heads=heads, hd=hd, c=c,
                             scale=float(scale))
    return pl.pallas_call(
        kern,
        out_shape=jax.ShapeDtypeStruct((n_groups, rows, c), jnp.bfloat16),
        grid=(n_groups,),
        in_specs=[
            pl.BlockSpec((1, rows, 3 * c), lambda i: (i, 0, 0)),
            pl.BlockSpec(bias.shape, lambda i: (0, 0, 0)),
            pl.BlockSpec(proj_w.shape, lambda i: (0, 0)),
            pl.BlockSpec(proj_b.shape, lambda i: (0, 0)),
        ],
        out_specs=pl.BlockSpec((1, rows, c), lambda i: (i, 0, 0)),
        compiler_params=pltpu.CompilerParams(
            dimension_semantics=("parallel",),
            vmem_limit_bytes=_VMEM_LIMIT),
    )(qkv_g, bias, proj_w, proj_b)


def _attn_group_windows(n, n_w, total_windows, target_tokens=128):
    """Windows per grid step: pack ~128 tokens, aligned to whole samples (so one
    precomputed block-diag bias is valid for every step)."""
    if n_w * n <= 2 * target_tokens:
        g = n_w * max(1, target_tokens // (n_w * n))
    else:
        # TODO(synk): very large windows (e.g. 7^3 tokens) should chunk the KV axis
        # flash-style; here we fall back to one sample's windows per step.
        g = n_w
    return min(g, total_windows)


def _build_group_bias(rel, mask, g, n):
    """(heads, g*n, g*n) bias: rel + shift-mask on diagonal n x n blocks, -1e9 off."""
    heads = rel.shape[0]
    widx = np.arange(g) % mask.shape[0]
    per_win = rel[None, :, :, :] + mask[widx][:, None, :, :]      # (g, heads, n, n)
    pw = jnp.transpose(per_win, (1, 0, 2, 3))                      # (heads, g, n, n)
    same = np.arange(g)[:, None] == np.arange(g)[None, :]          # (g, g)
    bias = jnp.where(same[None, :, None, :, None],
                     pw[:, :, :, None, :],
                     jnp.float32(-1e9))                            # (heads, g, n, g, n)
    return bias.reshape(heads, g * n, g * n)


# ----------------------------------------------------------------------------
# Final norm + avg-pool + head kernel (single step, 128-lane-padded output)
# ----------------------------------------------------------------------------

def _norm_pool_head_kernel(x_ref, g_ref, b_ref, w_ref, hb_ref, o_ref):
    xn = _ln(x_ref[...], g_ref[...], b_ref[...])       # (B, L, C)
    pooled = jnp.mean(xn, axis=1)                      # (B, C)
    o_ref[...] = (jnp.dot(pooled.astype(jnp.bfloat16), w_ref[...],
                          preferred_element_type=jnp.float32) + hb_ref[...])


def norm_pool_head_pallas(x, g, bt, hw, hb, ncls):
    b = x.shape[0]
    out = pl.pallas_call(
        _norm_pool_head_kernel,
        out_shape=jax.ShapeDtypeStruct((b, hw.shape[1]), jnp.float32),
        compiler_params=pltpu.CompilerParams(vmem_limit_bytes=_VMEM_LIMIT),
    )(x, g, bt, hw, hb)
    return out[:, :ncls]


# ----------------------------------------------------------------------------
# Glue: window helpers, mask, relative position index (trace-time / numpy)
# ----------------------------------------------------------------------------

def get_window_size(x_size, window_size, shift_size=None):
    use_w = list(window_size)
    use_s = list(shift_size) if shift_size is not None else None
    for i in range(len(x_size)):
        if x_size[i] <= window_size[i]:
            use_w[i] = x_size[i]
            if shift_size is not None:
                use_s[i] = 0
    if shift_size is None:
        return tuple(use_w)
    return tuple(use_w), tuple(use_s)


def window_partition(x, window_size):
    # x: (b, D, H, W, c) -> (b*d_w*h_w*w_w, w1*w2*w3, c)
    w1, w2, w3 = window_size
    b, d, h, w, c = x.shape
    x = x.reshape(b, d // w1, w1, h // w2, w2, w // w3, w3, c)
    x = x.transpose(0, 1, 3, 5, 2, 4, 6, 7)
    return x.reshape(-1, w1 * w2 * w3, c)


def window_reverse(windows, window_size, d, h, w):
    w1, w2, w3 = window_size
    d_w, h_w, w_w = d // w1, h // w2, w // w3
    c = windows.shape[-1]
    x = windows.reshape(-1, d_w, h_w, w_w, w1, w2, w3, c)
    x = x.transpose(0, 1, 4, 2, 5, 3, 6, 7)
    return x.reshape(-1, d, h, w, c)


def compute_mask_np(d, h, w, window_size, shift_size):
    # Matches the reference module verbatim (incl. its positive s_h / s_w bounds).
    # TODO(synk): external_mask branch of compute_mask not implemented (forward uses
    # the default mask=None path).
    w_d, w_h, w_w = window_size
    s_d, s_h, s_w = shift_size
    image_mask = np.zeros((1, d, h, w, 1), dtype=np.float32)
    count = 0
    for dd in (slice(-w_d), slice(-w_d, -s_d), slice(-s_d, None)):
        for hh in (slice(-w_h), slice(-w_h, s_h), slice(s_h, None)):
            for ww in (slice(-w_w), slice(-w_w, s_w), slice(s_w, None)):
                image_mask[:, dd, hh, ww, :] = count
                count += 1
    mask_windows = window_partition(image_mask, window_size).squeeze(-1)  # (nW, N)
    attn_mask = mask_windows[:, None, :] - mask_windows[:, :, None]
    attn_mask = np.where(attn_mask != 0, np.float32(-100.0), np.float32(0.0))
    return jnp.asarray(attn_mask, dtype=jnp.float32)


def relative_position_index_np(wd, wh, ww):
    coords = np.stack(np.meshgrid(np.arange(wd), np.arange(wh), np.arange(ww),
                                  indexing="ij")).reshape(3, -1)
    rel = coords[:, :, None] - coords[:, None, :]
    rel = rel.transpose(1, 2, 0).copy()
    rel[:, :, 0] += wd - 1
    rel[:, :, 1] += wh - 1
    rel[:, :, 2] += ww - 1
    rel[:, :, 0] *= (2 * wh - 1) * (2 * ww - 1)
    rel[:, :, 1] *= 2 * ww - 1
    return rel.sum(-1)  # (N, N) int


# ----------------------------------------------------------------------------
# Model pieces (glue orchestrating Pallas kernels)
# ----------------------------------------------------------------------------

def swin_block(x, bp, heads, window_size_cfg, shift_size_cfg, attn_mask_full):
    b, d, h, w, c = x.shape
    window_size, shift_size = get_window_size((d, h, w), window_size_cfg, shift_size_cfg)
    w_d, w_h, w_w = window_size
    s_d, s_h, s_w = shift_size
    hd = c // heads
    n = w_d * w_h * w_w
    shortcut_rows = x.reshape(-1, c)

    # Fused norm1 + qkv (position-wise, commutes with pad / roll / window partition).
    # Output bf16: halves HBM traffic through the layout glue that follows.
    qkv = ln_linear_pallas(shortcut_rows, bp["norm1_w"], bp["norm1_b"],
                           bp["qkv_w"], bp["qkv_b"])                 # (b*d*h*w, 3c) bf16
    qkv = qkv.reshape(b, d, h, w, 3 * c)

    pad_d1 = (w_d - d % w_d) % w_d
    pad_b_ = (w_h - h % w_h) % w_h
    pad_r = (w_w - w % w_w) % w_w
    if pad_d1 or pad_b_ or pad_r:
        # Reference pads x with zeros AFTER norm1, so padded positions carry
        # qkv(0) == qkv_bias.  Reproduce that exactly on the qkv tensor.
        qkv = jnp.pad(qkv, ((0, 0), (0, pad_d1), (0, pad_b_), (0, pad_r), (0, 0)))
        valid = jnp.pad(jnp.ones((1, d, h, w, 1), jnp.float32),
                        ((0, 0), (0, pad_d1), (0, pad_b_), (0, pad_r), (0, 0)))
        qkv = jnp.where(valid > 0, qkv,
                        bp["qkv_b"].astype(qkv.dtype).reshape(1, 1, 1, 1, 3 * c))
    dp, hp, wp = d + pad_d1, h + pad_b_, w + pad_r

    if any(i > 0 for i in shift_size):
        # NOTE: matches the reference module exactly: shifts=(-s_d, -s_w, -s_h)
        # on dims (D, H, W) (the module swaps the H/W shift order vs. its mask).
        shifted = jnp.roll(qkv, shift=(-s_d, -s_w, -s_h), axis=(1, 2, 3))
        mask = attn_mask_full                                        # (nW, n, n)
    else:
        shifted = qkv
        mask = jnp.zeros((1, n, n), jnp.float32)

    qkv_win = window_partition(shifted, window_size)                 # (T_w, n, 3c)
    t_w = qkv_win.shape[0]
    n_w = t_w // b

    # Pack windows into ~128-token groups (one grid step each).  Groups are aligned
    # to whole samples, so a single precomputed block-diagonal bias serves all steps.
    g = _attn_group_windows(n, n_w, t_w)
    n_groups = -(-t_w // g)
    t_pad = n_groups * g
    qkv_rows = qkv_win.reshape(t_w * n, 3 * c)
    if t_pad != t_w:
        qkv_rows = jnp.pad(qkv_rows, ((0, (t_pad - t_w) * n), (0, 0)))
    qkv_g = qkv_rows.reshape(n_groups, g * n, 3 * c)

    rel = bp["rel_bias"][:, :n, :n]                                  # (heads, n, n)
    bias = _build_group_bias(rel, mask, g, n)                        # (heads, g*n, g*n)

    attn = win_attention_pallas(qkv_g, bias, bp["proj_w"], bp["proj_b"],
                                heads=heads, hd=hd, c=c, scale=hd ** (-0.5))
    attn = attn.reshape(t_pad * n, c)[:t_w * n]                      # drop dummy windows
    attn = attn.reshape(-1, w_d, w_h, w_w, c)
    # window_reverse over the padded volume (the reference would only differ -- and
    # in fact crash -- in the padded case; identical when no padding is needed).
    x_sp = window_reverse(attn, window_size, dp, hp, wp)
    if any(i > 0 for i in shift_size):
        x_sp = jnp.roll(x_sp, shift=(s_d, s_w, s_h), axis=(1, 2, 3))
    x_sp = x_sp[:, :d, :h, :w, :]

    # Fused residual #1 + norm2 + FF1 + GELU + FF2 + residual #2.
    y = res_ln_mlp_res_pallas(shortcut_rows, x_sp.reshape(-1, c),
                              bp["norm2_w"], bp["norm2_b"],
                              bp["ff1_w"], bp["ff1_b"], bp["ff2_w"], bp["ff2_b"])
    return y.reshape(b, d, h, w, c)


def patch_merge(x, dp):
    b, d, h, w, c = x.shape
    if h % 2 == 1 or w % 2 == 1:
        x = jnp.pad(x, ((0, 0), (0, 0), (0, h % 2), (0, w % 2), (0, 0)))
    x0 = x[:, :, 0::2, 0::2, :]
    x1 = x[:, :, 1::2, 0::2, :]
    x2 = x[:, :, 0::2, 1::2, :]
    x3 = x[:, :, 1::2, 1::2, :]
    xc = jnp.concatenate([x0, x1, x2, x3], axis=-1)
    b2, d2, h2, w2, c4 = xc.shape
    y = linear_ln_pallas(xc.reshape(-1, c4), dp["red_w"], dp["norm_w"], dp["norm_b"])
    return y.reshape(b2, d2, h2, w2, 2 * c)


def basic_layer(x, lp, heads, window_size_cfg, has_downsample):
    # x stays channels-last (b, d, h, w, c) through every stage.
    b, d, h, w, c = x.shape
    shift_cfg = tuple(i // 2 for i in window_size_cfg)
    ws, ss = get_window_size((d, h, w), window_size_cfg, shift_cfg)
    p_d = int(math.ceil(d / ws[0])) * ws[0]
    p_h = int(math.ceil(h / ws[1])) * ws[1]
    p_w = int(math.ceil(w / ws[2])) * ws[2]
    attn_mask = compute_mask_np(p_d, p_h, p_w, ws, ss)
    for j, bp in enumerate(lp["blocks"]):
        blk_shift = (0, 0, 0) if j % 2 == 0 else shift_cfg
        x = swin_block(x, bp, heads, window_size_cfg, blk_shift, attn_mask)
    if has_downsample:
        x = patch_merge(x, lp["downsample"])
    return x


def swin_forward(params, x, cfg):
    pd, ph, pw = cfg["patch_size"]
    ed = cfg["embed_dim"]
    # PatchEmbedding3D: input (b, d, c, h, w) -> (b, c, d, h, w)
    x = jnp.transpose(x, (0, 2, 1, 3, 4)).astype(jnp.float32)
    b, c, d, h, w = x.shape
    if w % pw != 0:
        x = jnp.pad(x, ((0, 0), (0, 0), (0, 0), (0, 0), (0, pw - w % pw)))
    if h % ph != 0:
        x = jnp.pad(x, ((0, 0), (0, 0), (0, 0), (0, ph - h % ph), (0, 0)))
    if d % pd != 0:
        x = jnp.pad(x, ((0, 0), (0, 0), (0, pd - d % pd), (0, 0), (0, 0)))
    b, c, d, h, w = x.shape
    od, oh, ow = d // pd, h // ph, w // pw
    # strided conv3d (kernel == stride) as a patch matmul
    patches = x.reshape(b, c, od, pd, oh, ph, ow, pw)
    patches = patches.transpose(0, 2, 4, 6, 1, 3, 5, 7)
    patches = patches.reshape(b * od * oh * ow, c * pd * ph * pw)
    emb = linear_pallas(patches, params["patch_w"], params["patch_b"])
    x = emb.reshape(b, od, oh, ow, ed)               # channels-last from here on
    # patch_norm=False, pos_dropout identity

    num_layers = len(cfg["depths"])
    for i in range(num_layers):
        x = basic_layer(x, params["layers"][i], cfg["heads"][i], cfg["window_size"],
                        has_downsample=(i < num_layers - 1))

    b_, d_, h_, w_, c_ = x.shape
    logits = norm_pool_head_pallas(x.reshape(b_, d_ * h_ * w_, c_),
                                   params["norm_w"], params["norm_b"],
                                   params["head_w"], params["head_b"],
                                   cfg["num_classes"])
    return logits


# ----------------------------------------------------------------------------
# Deterministic parameter init (synthetic; matches module shapes)
# ----------------------------------------------------------------------------

def init_swin_params(key, cfg):
    keys = iter(jax.random.split(key, 512))

    def tn(shape, std=0.02):
        return (std * jax.random.truncated_normal(next(keys), -2.0, 2.0,
                                                  shape)).astype(jnp.float32)

    wd, wh, ww = cfg["window_size"]
    n_full = wd * wh * ww
    rpi = relative_position_index_np(wd, wh, ww)         # (N, N) int (numpy)

    p = {}
    pd_, ph_, pw_ = cfg["patch_size"]
    ed = cfg["embed_dim"]
    conv_w = tn((ed, cfg["in_channels"], pd_, ph_, pw_))
    p["patch_w"] = conv_w.reshape(ed, -1).T.astype(jnp.bfloat16)     # (K, ed)
    p["patch_b"] = jnp.zeros((1, ed), jnp.float32)
    p["layers"] = []
    for i, (depth, heads) in enumerate(zip(cfg["depths"], cfg["heads"])):
        dim = ed * (2 ** i)
        hidden = int(dim * cfg["ff_ratio"])
        blocks = []
        for _ in range(depth):
            pbt = tn(((2 * wd - 1) * (2 * wh - 1) * (2 * ww - 1), heads))
            # Pre-gather the relative-position bias table once (heads, N, N).
            rel_bias = pbt[rpi.reshape(-1)].reshape(n_full, n_full, heads)
            rel_bias = jnp.transpose(rel_bias, (2, 0, 1)).astype(jnp.float32)
            blocks.append({
                "norm1_w": jnp.ones((1, dim), jnp.float32),
                "norm1_b": jnp.zeros((1, dim), jnp.float32),
                "rel_bias": rel_bias,
                "qkv_w": tn((3 * dim, dim)).T.astype(jnp.bfloat16),   # (dim, 3dim)
                "qkv_b": jnp.zeros((1, 3 * dim), jnp.float32),
                "proj_w": tn((dim, dim)).T.astype(jnp.bfloat16),
                "proj_b": jnp.zeros((1, dim), jnp.float32),
                "norm2_w": jnp.ones((1, dim), jnp.float32),
                "norm2_b": jnp.zeros((1, dim), jnp.float32),
                "ff1_w": tn((hidden, dim)).T.astype(jnp.bfloat16),    # (dim, hidden)
                "ff1_b": jnp.zeros((1, hidden), jnp.float32),
                "ff2_w": tn((dim, hidden)).T.astype(jnp.bfloat16),    # (hidden, dim)
                "ff2_b": jnp.zeros((1, dim), jnp.float32),
            })
        lp = {"blocks": blocks}
        if i < len(cfg["depths"]) - 1:
            lp["downsample"] = {
                "red_w": tn((2 * dim, 4 * dim)).T.astype(jnp.bfloat16),  # (4dim, 2dim)
                "norm_w": jnp.ones((1, 2 * dim), jnp.float32),
                "norm_b": jnp.zeros((1, 2 * dim), jnp.float32),
            }
        p["layers"].append(lp)
    nf = ed * (2 ** (len(cfg["depths"]) - 1))
    ncls = cfg["num_classes"]
    ncls_pad = _ceil_to(ncls, 128)                       # lane-dense head output
    p["norm_w"] = jnp.ones((1, nf), jnp.float32)
    p["norm_b"] = jnp.zeros((1, nf), jnp.float32)
    hw = tn((ncls, nf)).T                                # (nf, ncls)
    p["head_w"] = jnp.pad(hw, ((0, 0), (0, ncls_pad - ncls))).astype(jnp.bfloat16)
    p["head_b"] = jnp.zeros((1, ncls_pad), jnp.float32)
    return p


# ----------------------------------------------------------------------------
# Main
# ----------------------------------------------------------------------------

if __name__ == "__main__":
    cfg = dict(
        patch_size=(2, 2, 2),
        in_channels=3,
        num_classes=10,
        embed_dim=16,
        depths=[2, 2],
        heads=[2, 4],
        window_size=(2, 2, 2),
        ff_ratio=4.0,
    )

    key = jax.random.PRNGKey(0)
    k_params, k_input = jax.random.split(key)
    params = init_swin_params(k_params, cfg)

    # module input layout: (B, D, C, H, W)
    x = jax.random.normal(k_input, (2, 4, 3, 8, 8), dtype=jnp.float32)

    fwd = jax.jit(functools.partial(swin_forward, cfg=cfg))
    logits = fwd(params, x)
    logits = jax.block_until_ready(logits)
    assert logits.shape == (2, cfg["num_classes"])
    assert bool(jnp.all(jnp.isfinite(logits)))
    print("KERNEL_OK")
</pallas_src>

<mosaic_0001>
module attributes {stable_mosaic.version = 11 : i64} {
  func.func @_linear_kernel(%arg0: i32, %arg1: memref<64x24xf32, #tpu.memory_space<vmem>>, %arg2: memref<24x16xbf16, #tpu.memory_space<vmem>>, %arg3: memref<1x16xf32, #tpu.memory_space<vmem>>, %arg4: memref<64x16xf32, #tpu.memory_space<vmem>>) attributes {dimension_semantics = [#tpu.dimension_semantics<parallel>], iteration_bounds = array<i64: 1>, scalar_prefetch = 0 : i64, scratch_operands = 0 : i64, tpu.core_type = #tpu.core_type<tc>, window_params = [{transform_indices = @transform_0, window_bounds = array<i64: 64, 24>}, {pipeline_mode = #tpu.pipeline_mode<synchronous>, transform_indices = @transform_1, window_bounds = array<i64: 24, 16>}, {pipeline_mode = #tpu.pipeline_mode<synchronous>, transform_indices = @transform_2, window_bounds = array<i64: 1, 16>}, {transform_indices = @transform_3, window_bounds = array<i64: 64, 16>}]} {
    %c0 = arith.constant 0 : index
    %c0_0 = arith.constant 0 : index
    %0 = vector.load %arg1[%c0, %c0_0] : memref<64x24xf32, #tpu.memory_space<vmem>>, vector<64x24xf32>
    %1 = arith.truncf %0 : vector<64x24xf32> to vector<64x24xbf16>
    %c0_1 = arith.constant 0 : index
    %c0_2 = arith.constant 0 : index
    %2 = vector.load %arg2[%c0_1, %c0_2] : memref<24x16xbf16, #tpu.memory_space<vmem>>, vector<24x16xbf16>
    %cst = arith.constant dense<0.000000e+00> : vector<64x16xf32>
    %3 = tpu.matmul %1, %2, %cst {dimension_numbers = #tpu.dot_dimension_numbers<[1], [0], [0], [1], [0, 0, 1, 1], [], []>} : vector<64x24xbf16>, vector<24x16xbf16>, vector<64x16xf32> -> vector<64x16xf32>
    %c0_3 = arith.constant 0 : index
    %c0_4 = arith.constant 0 : index
    %4 = vector.load %arg3[%c0_3, %c0_4] : memref<1x16xf32, #tpu.memory_space<vmem>>, vector<1x16xf32>
    %5 = vector.broadcast %4 : vector<1x16xf32> to vector<64x16xf32>
    %6 = arith.addf %3, %5 : vector<64x16xf32>
    %c0_5 = arith.constant 0 : index
    %c0_6 = arith.constant 0 : index
    %7 = vector.load %arg4[%c0_5, %c0_6] : memref<64x16xf32, #tpu.memory_space<vmem>>, vector<64x16xf32>
    tpu.vector_store %arg4[%c0_5, %c0_6], %6 {strides = array<i32>} : memref<64x16xf32, #tpu.memory_space<vmem>>, vector<64x16xf32>,
    return
  }
  func.func @transform_0(%arg0: i32) -> (i32, i32) {
    %c0_i32 = arith.constant 0 : i32
    %c0_i32_0 = arith.constant 0 : i32
    return %arg0, %c0_i32 : i32, i32
  }
  func.func @transform_1(%arg0: i32) -> (i32, i32) {
    %c0_i32 = arith.constant 0 : i32
    %c0_i32_0 = arith.constant 0 : i32
    %c0_i32_1 = arith.constant 0 : i32
    return %c0_i32, %c0_i32_0 : i32, i32
  }
  func.func @transform_2(%arg0: i32) -> (i32, i32) {
    %c0_i32 = arith.constant 0 : i32
    %c0_i32_0 = arith.constant 0 : i32
    %c0_i32_1 = arith.constant 0 : i32
    return %c0_i32, %c0_i32_0 : i32, i32
  }
  func.func @transform_3(%arg0: i32) -> (i32, i32) {
    %c0_i32 = arith.constant 0 : i32
    %c0_i32_0 = arith.constant 0 : i32
    return %arg0, %c0_i32 : i32, i32
  }
}

module attributes {stable_mosaic.version = 11 : i64} {
  func.func @_ln_linear_kernel(%arg0: i32, %arg1: memref<64x16xf32, #tpu.memory_space<vmem>>, %arg2: memref<1x16xf32, #tpu.memory_space<vmem>>, %arg3: memref<1x16xf32, #tpu.memory_space<vmem>>, %arg4: memref<16x48xbf16, #tpu.memory_space<vmem>>, %arg5: memref<1x48xf32, #tpu.memory_space<vmem>>, %arg6: memref<64x48xbf16, #tpu.memory_space<vmem>>) attributes {dimension_semantics = [#tpu.dimension_semantics<parallel>], iteration_bounds = array<i64: 1>, scalar_prefetch = 0 : i64, scratch_operands = 0 : i64, tpu.core_type = #tpu.core_type<tc>, window_params = [{transform_indices = @transform_0, window_bounds = array<i64: 64, 16>}, {pipeline_mode = #tpu.pipeline_mode<synchronous>, transform_indices = @transform_1, window_bounds = array<i64: 1, 16>}, {pipeline_mode = #tpu.pipeline_mode<synchronous>, transform_indices = @transform_2, window_bounds = array<i64: 1, 16>}, {pipeline_mode = #tpu.pipeline_mode<synchronous>, transform_indices = @transform_3, window_bounds = array<i64: 16, 48>}, {pipeline_mode = #tpu.pipeline_mode<synchronous>, transform_indices = @transform_4, window_bounds = array<i64: 1, 48>}, {transform_indices = @transform_5, window_bounds = array<i64: 64, 48>}]} {
    %c0 = arith.constant 0 : index
    %c0_0 = arith.constant 0 : index
    %0 = vector.load %arg1[%c0, %c0_0] : memref<64x16xf32, #tpu.memory_space<vmem>>, vector<64x16xf32>
    %c0_1 = arith.constant 0 : index
    %c0_2 = arith.constant 0 : index
    %1 = vector.load %arg2[%c0_1, %c0_2] : memref<1x16xf32, #tpu.memory_space<vmem>>, vector<1x16xf32>
    %c0_3 = arith.constant 0 : index
    %c0_4 = arith.constant 0 : index
    %2 = vector.load %arg3[%c0_3, %c0_4] : memref<1x16xf32, #tpu.memory_space<vmem>>, vector<1x16xf32>
    %cst = arith.constant dense<0.000000e+00> : vector<64xf32>
    %3 = vector.multi_reduction <add>, %0, %cst [1] : vector<64x16xf32> to vector<64xf32>
    %4 = vector.shape_cast %3 : vector<64xf32> to vector<64x1xf32>
    %cst_5 = arith.constant 1.600000e+01 : f32
    %5 = vector.broadcast %cst_5 : f32 to vector<64x1xf32>
    %6 = arith.divf %4, %5 : vector<64x1xf32>
    %7 = vector.broadcast %6 : vector<64x1xf32> to vector<64x16xf32>
    %8 = arith.subf %0, %7 : vector<64x16xf32>
    %9 = arith.mulf %8, %8 : vector<64x16xf32>
    %cst_6 = arith.constant dense<0.000000e+00> : vector<64xf32>
    %10 = vector.multi_reduction <add>, %9, %cst_6 [1] : vector<64x16xf32> to vector<64xf32>
    %11 = vector.shape_cast %10 : vector<64xf32> to vector<64x1xf32>
    %cst_7 = arith.constant 1.600000e+01 : f32
    %12 = vector.broadcast %cst_7 : f32 to vector<64x1xf32>
    %13 = arith.divf %11, %12 : vector<64x1xf32>
    %14 = vector.broadcast %6 : vector<64x1xf32> to vector<64x16xf32>
    %15 = arith.subf %0, %14 : vector<64x16xf32>
    %cst_8 = arith.constant 9.99999974E-6 : f32
    %16 = vector.broadcast %cst_8 : f32 to vector<64x1xf32>
    %17 = arith.addf %13, %16 : vector<64x1xf32>
    %18 = math.rsqrt %17 : vector<64x1xf32>
    %19 = vector.broadcast %18 : vector<64x1xf32> to vector<64x16xf32>
    %20 = arith.mulf %15, %19 : vector<64x16xf32>
    %21 = vector.broadcast %1 : vector<1x16xf32> to vector<64x16xf32>
    %22 = arith.mulf %20, %21 : vector<64x16xf32>
    %23 = vector.broadcast %2 : vector<1x16xf32> to vector<64x16xf32>
    %24 = arith.addf %22, %23 : vector<64x16xf32>
    %25 = arith.truncf %24 : vector<64x16xf32> to vector<64x16xbf16>
    %c0_9 = arith.constant 0 : index
    %c0_10 = arith.constant 0 : index
    %26 = vector.load %arg4[%c0_9, %c0_10] : memref<16x48xbf16, #tpu.memory_space<vmem>>, vector<16x48xbf16>
    %cst_11 = arith.constant dense<0.000000e+00> : vector<64x48xf32>
    %27 = tpu.matmul %25, %26, %cst_11 {dimension_numbers = #tpu.dot_dimension_numbers<[1], [0], [0], [1], [0, 0, 1, 1], [], []>} : vector<64x16xbf16>, vector<16x48xbf16>, vector<64x48xf32> -> vector<64x48xf32>
    %c0_12 = arith.constant 0 : index
    %c0_13 = arith.constant 0 : index
    %28 = vector.load %arg5[%c0_12, %c0_13] : memref<1x48xf32, #tpu.memory_space<vmem>>, vector<1x48xf32>
    %29 = vector.broadcast %28 : vector<1x48xf32> to vector<64x48xf32>
    %30 = arith.addf %27, %29 : vector<64x48xf32>
    %31 = arith.truncf %30 : vector<64x48xf32> to vector<64x48xbf16>
    %c0_14 = arith.constant 0 : index
    %c0_15 = arith.constant 0 : index
    %32 = vector.load %arg6[%c0_14, %c0_15] : memref<64x48xbf16, #tpu.memory_space<vmem>>, vector<64x48xbf16>
    tpu.vector_store %arg6[%c0_14, %c0_15], %31 {strides = array<i32>} : memref<64x48xbf16, #tpu.memory_space<vmem>>, vector<64x48xbf16>,
    return
  }
  func.func @transform_0(%arg0: i32) -> (i32, i32) {
    %c0_i32 = arith.constant 0 : i32
    %c0_i32_0 = arith.constant 0 : i32
    return %arg0, %c0_i32 : i32, i32
  }
  func.func @transform_1(%arg0: i32) -> (i32, i32) {
    %c0_i32 = arith.constant 0 : i32
    %c0_i32_0 = arith.constant 0 : i32
    %c0_i32_1 = arith.constant 0 : i32
    return %c0_i32, %c0_i32_0 : i32, i32
  }
  func.func @transform_2(%arg0: i32) -> (i32, i32) {
    %c0_i32 = arith.constant 0 : i32
    %c0_i32_0 = arith.constant 0 : i32
    %c0_i32_1 = arith.constant 0 : i32
    return %c0_i32, %c0_i32_0 : i32, i32
  }
  func.func @transform_3(%arg0: i32) -> (i32, i32) {
    %c0_i32 = arith.constant 0 : i32
    %c0_i32_0 = arith.constant 0 : i32
    %c0_i32_1 = arith.constant 0 : i32
    return %c0_i32, %c0_i32_0 : i32, i32
  }
  func.func @transform_4(%arg0: i32) -> (i32, i32) {
    %c0_i32 = arith.constant 0 : i32
    %c0_i32_0 = arith.constant 0 : i32
    %c0_i32_1 = arith.constant 0 : i32
    return %c0_i32, %c0_i32_0 : i32, i32
  }
  func.func @transform_5(%arg0: i32) -> (i32, i32) {
    %c0_i32 = arith.constant 0 : i32
    %c0_i32_0 = arith.constant 0 : i32
    return %arg0, %c0_i32 : i32, i32
  }
}

module attributes {stable_mosaic.version = 11 : i64} {
  func.func @_res_ln_mlp_res_kernel(%arg0: i32, %arg1: memref<64x16xf32, #tpu.memory_space<vmem>>, %arg2: memref<64x16xbf16, #tpu.memory_space<vmem>>, %arg3: memref<1x16xf32, #tpu.memory_space<vmem>>, %arg4: memref<1x16xf32, #tpu.memory_space<vmem>>, %arg5: memref<16x64xbf16, #tpu.memory_space<vmem>>, %arg6: memref<1x64xf32, #tpu.memory_space<vmem>>, %arg7: memref<64x16xbf16, #tpu.memory_space<vmem>>, %arg8: memref<1x16xf32, #tpu.memory_space<vmem>>, %arg9: memref<64x16xf32, #tpu.memory_space<vmem>>) attributes {dimension_semantics = [#tpu.dimension_semantics<parallel>], iteration_bounds = array<i64: 1>, scalar_prefetch = 0 : i64, scratch_operands = 0 : i64, tpu.core_type = #tpu.core_type<tc>, window_params = [{transform_indices = @transform_0, window_bounds = array<i64: 64, 16>}, {transform_indices = @transform_1, window_bounds = array<i64: 64, 16>}, {pipeline_mode = #tpu.pipeline_mode<synchronous>, transform_indices = @transform_2, window_bounds = array<i64: 1, 16>}, {pipeline_mode = #tpu.pipeline_mode<synchronous>, transform_indices = @transform_3, window_bounds = array<i64: 1, 16>}, {pipeline_mode = #tpu.pipeline_mode<synchronous>, transform_indices = @transform_4, window_bounds = array<i64: 16, 64>}, {pipeline_mode = #tpu.pipeline_mode<synchronous>, transform_indices = @transform_5, window_bounds = array<i64: 1, 64>}, {pipeline_mode = #tpu.pipeline_mode<synchronous>, transform_indices = @transform_6, window_bounds = array<i64: 64, 16>}, {pipeline_mode = #tpu.pipeline_mode<synchronous>, transform_indices = @transform_7, window_bounds = array<i64: 1, 16>}, {transform_indices = @transform_8, window_bounds = array<i64: 64, 16>}]} {
    %c0 = arith.constant 0 : index
    %c0_0 = arith.constant 0 : index
    %0 = vector.load %arg1[%c0, %c0_0] : memref<64x16xf32, #tpu.memory_space<vmem>>, vector<64x16xf32>
    %c0_1 = arith.constant 0 : index
    %c0_2 = arith.constant 0 : index
    %1 = vector.load %arg2[%c0_1, %c0_2] : memref<64x16xbf16, #tpu.memory_space<vmem>>, vector<64x16xbf16>
    %2 = arith.extf %1 : vector<64x16xbf16> to vector<64x16xf32>
    %3 = arith.addf %0, %2 : vector<64x16xf32>
    %c0_3 = arith.constant 0 : index
    %c0_4 = arith.constant 0 : index
    %4 = vector.load %arg3[%c0_3, %c0_4] : memref<1x16xf32, #tpu.memory_space<vmem>>, vector<1x16xf32>
    %c0_5 = arith.constant 0 : index
    %c0_6 = arith.constant 0 : index
    %5 = vector.load %arg4[%c0_5, %c0_6] : memref<1x16xf32, #tpu.memory_space<vmem>>, vector<1x16xf32>
    %cst = arith.constant dense<0.000000e+00> : vector<64xf32>
    %6 = vector.multi_reduction <add>, %3, %cst [1] : vector<64x16xf32> to vector<64xf32>
    %7 = vector.shape_cast %6 : vector<64xf32> to vector<64x1xf32>
    %cst_7 = arith.constant 1.600000e+01 : f32
    %8 = vector.broadcast %cst_7 : f32 to vector<64x1xf32>
    %9 = arith.divf %7, %8 : vector<64x1xf32>
    %10 = vector.broadcast %9 : vector<64x1xf32> to vector<64x16xf32>
    %11 = arith.subf %3, %10 : vector<64x16xf32>
    %12 = arith.mulf %11, %11 : vector<64x16xf32>
    %cst_8 = arith.constant dense<0.000000e+00> : vector<64xf32>
    %13 = vector.multi_reduction <add>, %12, %cst_8 [1] : vector<64x16xf32> to vector<64xf32>
    %14 = vector.shape_cast %13 : vector<64xf32> to vector<64x1xf32>
    %cst_9 = arith.constant 1.600000e+01 : f32
    %15 = vector.broadcast %cst_9 : f32 to vector<64x1xf32>
    %16 = arith.divf %14, %15 : vector<64x1xf32>
    %17 = vector.broadcast %9 : vector<64x1xf32> to vector<64x16xf32>
    %18 = arith.subf %3, %17 : vector<64x16xf32>
    %cst_10 = arith.constant 9.99999974E-6 : f32
    %19 = vector.broadcast %cst_10 : f32 to vector<64x1xf32>
    %20 = arith.addf %16, %19 : vector<64x1xf32>
    %21 = math.rsqrt %20 : vector<64x1xf32>
    %22 = vector.broadcast %21 : vector<64x1xf32> to vector<64x16xf32>
    %23 = arith.mulf %18, %22 : vector<64x16xf32>
    %24 = vector.broadcast %4 : vector<1x16xf32> to vector<64x16xf32>
    %25 = arith.mulf %23, %24 : vector<64x16xf32>
    %26 = vector.broadcast %5 : vector<1x16xf32> to vector<64x16xf32>
    %27 = arith.addf %25, %26 : vector<64x16xf32>
    %28 = arith.truncf %27 : vector<64x16xf32> to vector<64x16xbf16>
    %c0_11 = arith.constant 0 : index
    %c0_12 = arith.constant 0 : index
    %29 = vector.load %arg5[%c0_11, %c0_12] : memref<16x64xbf16, #tpu.memory_space<vmem>>, vector<16x64xbf16>
    %cst_13 = arith.constant dense<0.000000e+00> : vector<64x64xf32>
    %30 = tpu.matmul %28, %29, %cst_13 {dimension_numbers = #tpu.dot_dimension_numbers<[1], [0], [0], [1], [0, 0, 1, 1], [], []>} : vector<64x16xbf16>, vector<16x64xbf16>, vector<64x64xf32> -> vector<64x64xf32>
    %c0_14 = arith.constant 0 : index
    %c0_15 = arith.constant 0 : index
    %31 = vector.load %arg6[%c0_14, %c0_15] : memref<1x64xf32, #tpu.memory_space<vmem>>, vector<1x64xf32>
    %32 = vector.broadcast %31 : vector<1x64xf32> to vector<64x64xf32>
    %33 = arith.addf %30, %32 : vector<64x64xf32>
    %cst_16 = arith.constant 5.000000e-01 : f32
    %34 = vector.broadcast %cst_16 : f32 to vector<64x64xf32>
    %35 = arith.mulf %34, %33 : vector<64x64xf32>
    %cst_17 = arith.constant 0.707106769 : f32
    %36 = vector.broadcast %cst_17 : f32 to vector<64x64xf32>
    %37 = arith.mulf %33, %36 : vector<64x64xf32>
    %38 = math.absf %37 : vector<64x64xf32>
    %cst_18 = arith.constant 0.327591091 : f32
    %39 = vector.broadcast %cst_18 : f32 to vector<64x64xf32>
    %40 = arith.mulf %39, %38 : vector<64x64xf32>
    %cst_19 = arith.constant 1.000000e+00 : f32
    %41 = vector.broadcast %cst_19 : f32 to vector<64x64xf32>
    %42 = arith.addf %41, %40 : vector<64x64xf32>
    %cst_20 = arith.constant 1.000000e+00 : f32
    %43 = vector.broadcast %cst_20 : f32 to vector<64x64xf32>
    %44 = arith.divf %43, %42 : vector<64x64xf32>
    %cst_21 = arith.constant 1.06140542 : f32
    %45 = vector.broadcast %cst_21 : f32 to vector<64x64xf32>
    %46 = arith.mulf %45, %44 : vector<64x64xf32>
    %cst_22 = arith.constant -1.45315206 : f32
    %47 = vector.broadcast %cst_22 : f32 to vector<64x64xf32>
    %48 = arith.addf %46, %47 : vector<64x64xf32>
    %49 = arith.mulf %48, %44 : vector<64x64xf32>
    %cst_23 = arith.constant 1.42141378 : f32
    %50 = vector.broadcast %cst_23 : f32 to vector<64x64xf32>
    %51 = arith.addf %49, %50 : vector<64x64xf32>
    %52 = arith.mulf %51, %44 : vector<64x64xf32>
    %cst_24 = arith.constant -0.284496725 : f32
    %53 = vector.broadcast %cst_24 : f32 to vector<64x64xf32>
    %54 = arith.addf %52, %53 : vector<64x64xf32>
    %55 = arith.mulf %54, %44 : vector<64x64xf32>
    %cst_25 = arith.constant 0.254829586 : f32
    %56 = vector.broadcast %cst_25 : f32 to vector<64x64xf32>
    %57 = arith.addf %55, %56 : vector<64x64xf32>
    %58 = arith.mulf %57, %44 : vector<64x64xf32>
    %cst_26 = arith.constant 0.000000e+00 : f32
    %59 = vector.broadcast %cst_26 : f32 to vector<64x64xf32>
    %60 = arith.subf %59, %38 : vector<64x64xf32>
    %61 = arith.mulf %60, %38 : vector<64x64xf32>
    %62 = math.exp %61 : vector<64x64xf32>
    %63 = arith.mulf %58, %62 : vector<64x64xf32>
    %cst_27 = arith.constant 1.000000e+00 : f32
    %64 = vector.broadcast %cst_27 : f32 to vector<64x64xf32>
    %65 = arith.subf %64, %63 : vector<64x64xf32>
    %cst_28 = arith.constant 0.000000e+00 : f32
    %66 = vector.broadcast %cst_28 : f32 to vector<64x64xf32>
    %67 = arith.cmpf olt, %37, %66 : vector<64x64xf32>
    %cst_29 = arith.constant 0.000000e+00 : f32
    %68 = vector.broadcast %cst_29 : f32 to vector<64x64xf32>
    %69 = arith.subf %68, %65 : vector<64x64xf32>
    %70 = arith.select %67, %69, %65 : vector<64x64xi1>, vector<64x64xf32>
    %cst_30 = arith.constant 1.000000e+00 : f32
    %71 = vector.broadcast %cst_30 : f32 to vector<64x64xf32>
    %72 = arith.addf %71, %70 : vector<64x64xf32>
    %73 = arith.mulf %35, %72 : vector<64x64xf32>
    %74 = arith.truncf %73 : vector<64x64xf32> to vector<64x64xbf16>
    %c0_31 = arith.constant 0 : index
    %c0_32 = arith.constant 0 : index
    %75 = vector.load %arg7[%c0_31, %c0_32] : memref<64x16xbf16, #tpu.memory_space<vmem>>, vector<64x16xbf16>
    %cst_33 = arith.constant dense<0.000000e+00> : vector<64x16xf32>
    %76 = tpu.matmul %74, %75, %cst_33 {dimension_numbers = #tpu.dot_dimension_numbers<[1], [0], [0], [1], [0, 0, 1, 1], [], []>} : vector<64x64xbf16>, vector<64x16xbf16>, vector<64x16xf32> -> vector<64x16xf32>
    %c0_34 = arith.constant 0 : index
    %c0_35 = arith.constant 0 : index
    %77 = vector.load %arg8[%c0_34, %c0_35] : memref<1x16xf32, #tpu.memory_space<vmem>>, vector<1x16xf32>
    %78 = vector.broadcast %77 : vector<1x16xf32> to vector<64x16xf32>
    %79 = arith.addf %76, %78 : vector<64x16xf32>
    %80 = arith.addf %3, %79 : vector<64x16xf32>
    %c0_36 = arith.constant 0 : index
    %c0_37 = arith.constant 0 : index
    %81 = vector.load %arg9[%c0_36, %c0_37] : memref<64x16xf32, #tpu.memory_space<vmem>>, vector<64x16xf32>
    tpu.vector_store %arg9[%c0_36, %c0_37], %80 {strides = array<i32>} : memref<64x16xf32, #tpu.memory_space<vmem>>, vector<64x16xf32>,
    return
  }
  func.func @transform_0(%arg0: i32) -> (i32, i32) {
    %c0_i32 = arith.constant 0 : i32
    %c0_i32_0 = arith.constant 0 : i32
    return %arg0, %c0_i32 : i32, i32
  }
  func.func @transform_1(%arg0: i32) -> (i32, i32) {
    %c0_i32 = arith.constant 0 : i32
    %c0_i32_0 = arith.constant 0 : i32
    return %arg0, %c0_i32 : i32, i32
  }
  func.func @transform_2(%arg0: i32) -> (i32, i32) {
    %c0_i32 = arith.constant 0 : i32
    %c0_i32_0 = arith.constant 0 : i32
    %c0_i32_1 = arith.constant 0 : i32
    return %c0_i32, %c0_i32_0 : i32, i32
  }
  func.func @transform_3(%arg0: i32) -> (i32, i32) {
    %c0_i32 = arith.constant 0 : i32
    %c0_i32_0 = arith.constant 0 : i32
    %c0_i32_1 = arith.constant 0 : i32
    return %c0_i32, %c0_i32_0 : i32, i32
  }
  func.func @transform_4(%arg0: i32) -> (i32, i32) {
    %c0_i32 = arith.constant 0 : i32
    %c0_i32_0 = arith.constant 0 : i32
    %c0_i32_1 = arith.constant 0 : i32
    return %c0_i32, %c0_i32_0 : i32, i32
  }
  func.func @transform_5(%arg0: i32) -> (i32, i32) {
    %c0_i32 = arith.constant 0 : i32
    %c0_i32_0 = arith.constant 0 : i32
    %c0_i32_1 = arith.constant 0 : i32
    return %c0_i32, %c0_i32_0 : i32, i32
  }
  func.func @transform_6(%arg0: i32) -> (i32, i32) {
    %c0_i32 = arith.constant 0 : i32
    %c0_i32_0 = arith.constant 0 : i32
    %c0_i32_1 = arith.constant 0 : i32
    return %c0_i32, %c0_i32_0 : i32, i32
  }
  func.func @transform_7(%arg0: i32) -> (i32, i32) {
    %c0_i32 = arith.constant 0 : i32
    %c0_i32_0 = arith.constant 0 : i32
    %c0_i32_1 = arith.constant 0 : i32
    return %c0_i32, %c0_i32_0 : i32, i32
  }
  func.func @transform_8(%arg0: i32) -> (i32, i32) {
    %c0_i32 = arith.constant 0 : i32
    %c0_i32_0 = arith.constant 0 : i32
    return %arg0, %c0_i32 : i32, i32
  }
}

module attributes {stable_mosaic.version = 11 : i64} {
  func.func @_win_attn_kernel(%arg0: i32, %arg1: memref<1x64x48xbf16, #tpu.memory_space<vmem>>, %arg2: memref<2x64x64xf32, #tpu.memory_space<vmem>>, %arg3: memref<16x16xbf16, #tpu.memory_space<vmem>>, %arg4: memref<1x16xf32, #tpu.memory_space<vmem>>, %arg5: memref<1x64x16xbf16, #tpu.memory_space<vmem>>) attributes {dimension_semantics = [#tpu.dimension_semantics<parallel>], iteration_bounds = array<i64: 1>, scalar_prefetch = 0 : i64, scratch_operands = 0 : i64, tpu.core_type = #tpu.core_type<tc>, window_params = [{transform_indices = @transform_0, window_bounds = array<i64: 1, 64, 48>}, {pipeline_mode = #tpu.pipeline_mode<synchronous>, transform_indices = @transform_1, window_bounds = array<i64: 2, 64, 64>}, {pipeline_mode = #tpu.pipeline_mode<synchronous>, transform_indices = @transform_2, window_bounds = array<i64: 16, 16>}, {pipeline_mode = #tpu.pipeline_mode<synchronous>, transform_indices = @transform_3, window_bounds = array<i64: 1, 16>}, {transform_indices = @transform_4, window_bounds = array<i64: 1, 64, 16>}]} {
    %c0 = arith.constant 0 : index
    %c0_0 = arith.constant 0 : index
    %c0_1 = arith.constant 0 : index
    %0 = vector.load %arg1[%c0, %c0_0, %c0_1] : memref<1x64x48xbf16, #tpu.memory_space<vmem>>, vector<1x64x48xbf16>
    %1 = vector.shape_cast %0 : vector<1x64x48xbf16> to vector<64x48xbf16>
    %2 = vector.extract_strided_slice %1 {offsets = [0, 0], sizes = [64, 8], strides = [1, 1]} : vector<64x48xbf16> to vector<64x8xbf16>
    %3 = vector.extract_strided_slice %1 {offsets = [0, 16], sizes = [64, 8], strides = [1, 1]} : vector<64x48xbf16> to vector<64x8xbf16>
    %4 = vector.extract_strided_slice %1 {offsets = [0, 32], sizes = [64, 8], strides = [1, 1]} : vector<64x48xbf16> to vector<64x8xbf16>
    %cst = arith.constant dense<0.000000e+00> : vector<64x64xf32>
    %5 = tpu.matmul %2, %3, %cst {dimension_numbers = #tpu.dot_dimension_numbers<[1], [1], [0], [0], [0, 0, 1, 0], [], []>} : vector<64x8xbf16>, vector<64x8xbf16>, vector<64x64xf32> -> vector<64x64xf32>
    %cst_2 = arith.constant 0.353553385 : f32
    %6 = vector.broadcast %cst_2 : f32 to vector<64x64xf32>
    %7 = arith.mulf %5, %6 : vector<64x64xf32>
    %c0_3 = arith.constant 0 : index
    %c0_4 = arith.constant 0 : index
    %c0_5 = arith.constant 0 : index
    %8 = vector.load %arg2[%c0_3, %c0_4, %c0_5] : memref<2x64x64xf32, #tpu.memory_space<vmem>>, vector<1x64x64xf32>
    %9 = vector.shape_cast %8 : vector<1x64x64xf32> to vector<64x64xf32>
    %10 = arith.addf %7, %9 : vector<64x64xf32>
    %cst_6 = arith.constant dense<0xFF800000> : vector<64xf32>
    %11 = vector.multi_reduction <maximumf>, %10, %cst_6 [1] : vector<64x64xf32> to vector<64xf32>
    %12 = vector.shape_cast %11 : vector<64xf32> to vector<64x1xf32>
    %13 = vector.broadcast %12 : vector<64x1xf32> to vector<64x64xf32>
    %14 = arith.subf %10, %13 : vector<64x64xf32>
    %15 = math.exp %14 : vector<64x64xf32>
    %cst_7 = arith.constant dense<0.000000e+00> : vector<64xf32>
    %16 = vector.multi_reduction <add>, %15, %cst_7 [1] : vector<64x64xf32> to vector<64xf32>
    %17 = vector.shape_cast %16 : vector<64xf32> to vector<64x1xf32>
    %18 = arith.truncf %15 : vector<64x64xf32> to vector<64x64xbf16>
    %cst_8 = arith.constant dense<0.000000e+00> : vector<64x8xf32>
    %19 = tpu.matmul %18, %4, %cst_8 {dimension_numbers = #tpu.dot_dimension_numbers<[1], [0], [0], [1], [0, 0, 1, 1], [], []>} : vector<64x64xbf16>, vector<64x8xbf16>, vector<64x8xf32> -> vector<64x8xf32>
    %20 = tpu.reciprocal %17 {approx = true} : vector<64x1xf32> -> vector<64x1xf32>
    %21 = vector.broadcast %20 : vector<64x1xf32> to vector<64x8xf32>
    %22 = arith.mulf %19, %21 : vector<64x8xf32>
    %23 = vector.extract_strided_slice %1 {offsets = [0, 8], sizes = [64, 8], strides = [1, 1]} : vector<64x48xbf16> to vector<64x8xbf16>
    %24 = vector.extract_strided_slice %1 {offsets = [0, 24], sizes = [64, 8], strides = [1, 1]} : vector<64x48xbf16> to vector<64x8xbf16>
    %25 = vector.extract_strided_slice %1 {offsets = [0, 40], sizes = [64, 8], strides = [1, 1]} : vector<64x48xbf16> to vector<64x8xbf16>
    %cst_9 = arith.constant dense<0.000000e+00> : vector<64x64xf32>
    %26 = tpu.matmul %23, %24, %cst_9 {dimension_numbers = #tpu.dot_dimension_numbers<[1], [1], [0], [0], [0, 0, 1, 0], [], []>} : vector<64x8xbf16>, vector<64x8xbf16>, vector<64x64xf32> -> vector<64x64xf32>
    %cst_10 = arith.constant 0.353553385 : f32
    %27 = vector.broadcast %cst_10 : f32 to vector<64x64xf32>
    %28 = arith.mulf %26, %27 : vector<64x64xf32>
    %c1 = arith.constant 1 : index
    %c0_11 = arith.constant 0 : index
    %c0_12 = arith.constant 0 : index
    %29 = vector.load %arg2[%c1, %c0_11, %c0_12] : memref<2x64x64xf32, #tpu.memory_space<vmem>>, vector<1x64x64xf32>
    %30 = vector.shape_cast %29 : vector<1x64x64xf32> to vector<64x64xf32>
    %31 = arith.addf %28, %30 : vector<64x64xf32>
    %cst_13 = arith.constant dense<0xFF800000> : vector<64xf32>
    %32 = vector.multi_reduction <maximumf>, %31, %cst_13 [1] : vector<64x64xf32> to vector<64xf32>
    %33 = vector.shape_cast %32 : vector<64xf32> to vector<64x1xf32>
    %34 = vector.broadcast %33 : vector<64x1xf32> to vector<64x64xf32>
    %35 = arith.subf %31, %34 : vector<64x64xf32>
    %36 = math.exp %35 : vector<64x64xf32>
    %cst_14 = arith.constant dense<0.000000e+00> : vector<64xf32>
    %37 = vector.multi_reduction <add>, %36, %cst_14 [1] : vector<64x64xf32> to vector<64xf32>
    %38 = vector.shape_cast %37 : vector<64xf32> to vector<64x1xf32>
    %39 = arith.truncf %36 : vector<64x64xf32> to vector<64x64xbf16>
    %cst_15 = arith.constant dense<0.000000e+00> : vector<64x8xf32>
    %40 = tpu.matmul %39, %25, %cst_15 {dimension_numbers = #tpu.dot_dimension_numbers<[1], [0], [0], [1], [0, 0, 1, 1], [], []>} : vector<64x64xbf16>, vector<64x8xbf16>, vector<64x8xf32> -> vector<64x8xf32>
    %41 = tpu.reciprocal %38 {approx = true} : vector<64x1xf32> -> vector<64x1xf32>
    %42 = vector.broadcast %41 : vector<64x1xf32> to vector<64x8xf32>
    %43 = arith.mulf %40, %42 : vector<64x8xf32>
    %44 = tpu.concatenate %22, %43 in 1 : vector<64x8xf32>, vector<64x8xf32> -> vector<64x16xf32>
    %45 = arith.truncf %44 : vector<64x16xf32> to vector<64x16xbf16>
    %c0_16 = arith.constant 0 : index
    %c0_17 = arith.constant 0 : index
    %46 = vector.load %arg3[%c0_16, %c0_17] : memref<16x16xbf16, #tpu.memory_space<vmem>>, vector<16x16xbf16>
    %cst_18 = arith.constant dense<0.000000e+00> : vector<64x16xf32>
    %47 = tpu.matmul %45, %46, %cst_18 {dimension_numbers = #tpu.dot_dimension_numbers<[1], [0], [0], [1], [0, 0, 1, 1], [], []>} : vector<64x16xbf16>, vector<16x16xbf16>, vector<64x16xf32> -> vector<64x16xf32>
    %c0_19 = arith.constant 0 : index
    %c0_20 = arith.constant 0 : index
    %48 = vector.load %arg4[%c0_19, %c0_20] : memref<1x16xf32, #tpu.memory_space<vmem>>, vector<1x16xf32>
    %49 = vector.broadcast %48 : vector<1x16xf32> to vector<64x16xf32>
    %50 = arith.addf %47, %49 : vector<64x16xf32>
    %51 = arith.truncf %50 : vector<64x16xf32> to vector<64x16xbf16>
    %c0_21 = arith.constant 0 : index
    %c0_22 = arith.constant 0 : index
    %c0_23 = arith.constant 0 : index
    %52 = vector.load %arg5[%c0_21, %c0_22, %c0_23] : memref<1x64x16xbf16, #tpu.memory_space<vmem>>, vector<1x64x16xbf16>
    %53 = vector.shape_cast %52 : vector<1x64x16xbf16> to vector<64x16xbf16>
    %54 = vector.shape_cast %51 : vector<64x16xbf16> to vector<1x64x16xbf16>
    tpu.vector_store %arg5[%c0_21, %c0_22, %c0_23], %54 {strides = array<i32>} : memref<1x64x16xbf16, #tpu.memory_space<vmem>>, vector<1x64x16xbf16>,
    return
  }
  func.func @transform_0(%arg0: i32) -> (i32, i32, i32) {
    %c0_i32 = arith.constant 0 : i32
    %c0_i32_0 = arith.constant 0 : i32
    %c0_i32_1 = arith.constant 0 : i32
    return %arg0, %c0_i32, %c0_i32_0 : i32, i32, i32
  }
  func.func @transform_1(%arg0: i32) -> (i32, i32, i32) {
    %c0_i32 = arith.constant 0 : i32
    %c0_i32_0 = arith.constant 0 : i32
    %c0_i32_1 = arith.constant 0 : i32
    %c0_i32_2 = arith.constant 0 : i32
    return %c0_i32, %c0_i32_0, %c0_i32_1 : i32, i32, i32
  }
  func.func @transform_2(%arg0: i32) -> (i32, i32) {
    %c0_i32 = arith.constant 0 : i32
    %c0_i32_0 = arith.constant 0 : i32
    %c0_i32_1 = arith.constant 0 : i32
    return %c0_i32, %c0_i32_0 : i32, i32
  }
  func.func @transform_3(%arg0: i32) -> (i32, i32) {
    %c0_i32 = arith.constant 0 : i32
    %c0_i32_0 = arith.constant 0 : i32
    %c0_i32_1 = arith.constant 0 : i32
    return %c0_i32, %c0_i32_0 : i32, i32
  }
  func.func @transform_4(%arg0: i32) -> (i32, i32, i32) {
    %c0_i32 = arith.constant 0 : i32
    %c0_i32_0 = arith.constant 0 : i32
    %c0_i32_1 = arith.constant 0 : i32
    return %arg0, %c0_i32, %c0_i32_0 : i32, i32, i32
  }
}

module attributes {stable_mosaic.version = 11 : i64} {
  func.func @_linear_ln_kernel(%arg0: i32, %arg1: memref<16x64xf32, #tpu.memory_space<vmem>>, %arg2: memref<64x32xbf16, #tpu.memory_space<vmem>>, %arg3: memref<1x32xf32, #tpu.memory_space<vmem>>, %arg4: memref<1x32xf32, #tpu.memory_space<vmem>>, %arg5: memref<16x32xf32, #tpu.memory_space<vmem>>) attributes {dimension_semantics = [#tpu.dimension_semantics<parallel>], iteration_bounds = array<i64: 1>, scalar_prefetch = 0 : i64, scratch_operands = 0 : i64, tpu.core_type = #tpu.core_type<tc>, window_params = [{transform_indices = @transform_0, window_bounds = array<i64: 16, 64>}, {pipeline_mode = #tpu.pipeline_mode<synchronous>, transform_indices = @transform_1, window_bounds = array<i64: 64, 32>}, {pipeline_mode = #tpu.pipeline_mode<synchronous>, transform_indices = @transform_2, window_bounds = array<i64: 1, 32>}, {pipeline_mode = #tpu.pipeline_mode<synchronous>, transform_indices = @transform_3, window_bounds = array<i64: 1, 32>}, {transform_indices = @transform_4, window_bounds = array<i64: 16, 32>}]} {
    %c0 = arith.constant 0 : index
    %c0_0 = arith.constant 0 : index
    %0 = vector.load %arg1[%c0, %c0_0] : memref<16x64xf32, #tpu.memory_space<vmem>>, vector<16x64xf32>
    %1 = arith.truncf %0 : vector<16x64xf32> to vector<16x64xbf16>
    %c0_1 = arith.constant 0 : index
    %c0_2 = arith.constant 0 : index
    %2 = vector.load %arg2[%c0_1, %c0_2] : memref<64x32xbf16, #tpu.memory_space<vmem>>, vector<64x32xbf16>
    %cst = arith.constant dense<0.000000e+00> : vector<16x32xf32>
    %3 = tpu.matmul %1, %2, %cst {dimension_numbers = #tpu.dot_dimension_numbers<[1], [0], [0], [1], [0, 0, 1, 1], [], []>} : vector<16x64xbf16>, vector<64x32xbf16>, vector<16x32xf32> -> vector<16x32xf32>
    %c0_3 = arith.constant 0 : index
    %c0_4 = arith.constant 0 : index
    %4 = vector.load %arg3[%c0_3, %c0_4] : memref<1x32xf32, #tpu.memory_space<vmem>>, vector<1x32xf32>
    %c0_5 = arith.constant 0 : index
    %c0_6 = arith.constant 0 : index
    %5 = vector.load %arg4[%c0_5, %c0_6] : memref<1x32xf32, #tpu.memory_space<vmem>>, vector<1x32xf32>
    %cst_7 = arith.constant dense<0.000000e+00> : vector<16xf32>
    %6 = vector.multi_reduction <add>, %3, %cst_7 [1] : vector<16x32xf32> to vector<16xf32>
    %7 = vector.shape_cast %6 : vector<16xf32> to vector<16x1xf32>
    %cst_8 = arith.constant 3.200000e+01 : f32
    %8 = vector.broadcast %cst_8 : f32 to vector<16x1xf32>
    %9 = arith.divf %7, %8 : vector<16x1xf32>
    %10 = vector.broadcast %9 : vector<16x1xf32> to vector<16x32xf32>
    %11 = arith.subf %3, %10 : vector<16x32xf32>
    %12 = arith.mulf %11, %11 : vector<16x32xf32>
    %cst_9 = arith.constant dense<0.000000e+00> : vector<16xf32>
    %13 = vector.multi_reduction <add>, %12, %cst_9 [1] : vector<16x32xf32> to vector<16xf32>
    %14 = vector.shape_cast %13 : vector<16xf32> to vector<16x1xf32>
    %cst_10 = arith.constant 3.200000e+01 : f32
    %15 = vector.broadcast %cst_10 : f32 to vector<16x1xf32>
    %16 = arith.divf %14, %15 : vector<16x1xf32>
    %17 = vector.broadcast %9 : vector<16x1xf32> to vector<16x32xf32>
    %18 = arith.subf %3, %17 : vector<16x32xf32>
    %cst_11 = arith.constant 9.99999974E-6 : f32
    %19 = vector.broadcast %cst_11 : f32 to vector<16x1xf32>
    %20 = arith.addf %16, %19 : vector<16x1xf32>
    %21 = math.rsqrt %20 : vector<16x1xf32>
    %22 = vector.broadcast %21 : vector<16x1xf32> to vector<16x32xf32>
    %23 = arith.mulf %18, %22 : vector<16x32xf32>
    %24 = vector.broadcast %4 : vector<1x32xf32> to vector<16x32xf32>
    %25 = arith.mulf %23, %24 : vector<16x32xf32>
    %26 = vector.broadcast %5 : vector<1x32xf32> to vector<16x32xf32>
    %27 = arith.addf %25, %26 : vector<16x32xf32>
    %c0_12 = arith.constant 0 : index
    %c0_13 = arith.constant 0 : index
    %28 = vector.load %arg5[%c0_12, %c0_13] : memref<16x32xf32, #tpu.memory_space<vmem>>, vector<16x32xf32>
    tpu.vector_store %arg5[%c0_12, %c0_13], %27 {strides = array<i32>} : memref<16x32xf32, #tpu.memory_space<vmem>>, vector<16x32xf32>,
    return
  }
  func.func @transform_0(%arg0: i32) -> (i32, i32) {
    %c0_i32 = arith.constant 0 : i32
    %c0_i32_0 = arith.constant 0 : i32
    return %arg0, %c0_i32 : i32, i32
  }
  func.func @transform_1(%arg0: i32) -> (i32, i32) {
    %c0_i32 = arith.constant 0 : i32
    %c0_i32_0 = arith.constant 0 : i32
    %c0_i32_1 = arith.constant 0 : i32
    return %c0_i32, %c0_i32_0 : i32, i32
  }
  func.func @transform_2(%arg0: i32) -> (i32, i32) {
    %c0_i32 = arith.constant 0 : i32
    %c0_i32_0 = arith.constant 0 : i32
    %c0_i32_1 = arith.constant 0 : i32
    return %c0_i32, %c0_i32_0 : i32, i32
  }
  func.func @transform_3(%arg0: i32) -> (i32, i32) {
    %c0_i32 = arith.constant 0 : i32
    %c0_i32_0 = arith.constant 0 : i32
    %c0_i32_1 = arith.constant 0 : i32
    return %c0_i32, %c0_i32_0 : i32, i32
  }
  func.func @transform_4(%arg0: i32) -> (i32, i32) {
    %c0_i32 = arith.constant 0 : i32
    %c0_i32_0 = arith.constant 0 : i32
    return %arg0, %c0_i32 : i32, i32
  }
}

module attributes {stable_mosaic.version = 11 : i64} {
  func.func @_win_attn_kernel(%arg0: i32, %arg1: memref<1x16x96xbf16, #tpu.memory_space<vmem>>, %arg2: memref<4x16x16xf32, #tpu.memory_space<vmem>>, %arg3: memref<32x32xbf16, #tpu.memory_space<vmem>>, %arg4: memref<1x32xf32, #tpu.memory_space<vmem>>, %arg5: memref<1x16x32xbf16, #tpu.memory_space<vmem>>) attributes {dimension_semantics = [#tpu.dimension_semantics<parallel>], iteration_bounds = array<i64: 1>, scalar_prefetch = 0 : i64, scratch_operands = 0 : i64, tpu.core_type = #tpu.core_type<tc>, window_params = [{transform_indices = @transform_0, window_bounds = array<i64: 1, 16, 96>}, {pipeline_mode = #tpu.pipeline_mode<synchronous>, transform_indices = @transform_1, window_bounds = array<i64: 4, 16, 16>}, {pipeline_mode = #tpu.pipeline_mode<synchronous>, transform_indices = @transform_2, window_bounds = array<i64: 32, 32>}, {pipeline_mode = #tpu.pipeline_mode<synchronous>, transform_indices = @transform_3, window_bounds = array<i64: 1, 32>}, {transform_indices = @transform_4, window_bounds = array<i64: 1, 16, 32>}]} {
    %c0 = arith.constant 0 : index
    %c0_0 = arith.constant 0 : index
    %c0_1 = arith.constant 0 : index
    %0 = vector.load %arg1[%c0, %c0_0, %c0_1] : memref<1x16x96xbf16, #tpu.memory_space<vmem>>, vector<1x16x96xbf16>
    %1 = vector.shape_cast %0 : vector<1x16x96xbf16> to vector<16x96xbf16>
    %2 = vector.extract_strided_slice %1 {offsets = [0, 0], sizes = [16, 8], strides = [1, 1]} : vector<16x96xbf16> to vector<16x8xbf16>
    %3 = vector.extract_strided_slice %1 {offsets = [0, 32], sizes = [16, 8], strides = [1, 1]} : vector<16x96xbf16> to vector<16x8xbf16>
    %4 = vector.extract_strided_slice %1 {offsets = [0, 64], sizes = [16, 8], strides = [1, 1]} : vector<16x96xbf16> to vector<16x8xbf16>
    %cst = arith.constant dense<0.000000e+00> : vector<16x16xf32>
    %5 = tpu.matmul %2, %3, %cst {dimension_numbers = #tpu.dot_dimension_numbers<[1], [1], [0], [0], [0, 0, 1, 0], [], []>} : vector<16x8xbf16>, vector<16x8xbf16>, vector<16x16xf32> -> vector<16x16xf32>
    %cst_2 = arith.constant 0.353553385 : f32
    %6 = vector.broadcast %cst_2 : f32 to vector<16x16xf32>
    %7 = arith.mulf %5, %6 : vector<16x16xf32>
    %c0_3 = arith.constant 0 : index
    %c0_4 = arith.constant 0 : index
    %c0_5 = arith.constant 0 : index
    %8 = vector.load %arg2[%c0_3, %c0_4, %c0_5] : memref<4x16x16xf32, #tpu.memory_space<vmem>>, vector<1x16x16xf32>
    %9 = vector.shape_cast %8 : vector<1x16x16xf32> to vector<16x16xf32>
    %10 = arith.addf %7, %9 : vector<16x16xf32>
    %cst_6 = arith.constant dense<0xFF800000> : vector<16xf32>
    %11 = vector.multi_reduction <maximumf>, %10, %cst_6 [1] : vector<16x16xf32> to vector<16xf32>
    %12 = vector.shape_cast %11 : vector<16xf32> to vector<16x1xf32>
    %13 = vector.broadcast %12 : vector<16x1xf32> to vector<16x16xf32>
    %14 = arith.subf %10, %13 : vector<16x16xf32>
    %15 = math.exp %14 : vector<16x16xf32>
    %cst_7 = arith.constant dense<0.000000e+00> : vector<16xf32>
    %16 = vector.multi_reduction <add>, %15, %cst_7 [1] : vector<16x16xf32> to vector<16xf32>
    %17 = vector.shape_cast %16 : vector<16xf32> to vector<16x1xf32>
    %18 = arith.truncf %15 : vector<16x16xf32> to vector<16x16xbf16>
    %cst_8 = arith.constant dense<0.000000e+00> : vector<16x8xf32>
    %19 = tpu.matmul %18, %4, %cst_8 {dimension_numbers = #tpu.dot_dimension_numbers<[1], [0], [0], [1], [0, 0, 1, 1], [], []>} : vector<16x16xbf16>, vector<16x8xbf16>, vector<16x8xf32> -> vector<16x8xf32>
    %20 = tpu.reciprocal %17 {approx = true} : vector<16x1xf32> -> vector<16x1xf32>
    %21 = vector.broadcast %20 : vector<16x1xf32> to vector<16x8xf32>
    %22 = arith.mulf %19, %21 : vector<16x8xf32>
    %23 = vector.extract_strided_slice %1 {offsets = [0, 8], sizes = [16, 8], strides = [1, 1]} : vector<16x96xbf16> to vector<16x8xbf16>
    %24 = vector.extract_strided_slice %1 {offsets = [0, 40], sizes = [16, 8], strides = [1, 1]} : vector<16x96xbf16> to vector<16x8xbf16>
    %25 = vector.extract_strided_slice %1 {offsets = [0, 72], sizes = [16, 8], strides = [1, 1]} : vector<16x96xbf16> to vector<16x8xbf16>
    %cst_9 = arith.constant dense<0.000000e+00> : vector<16x16xf32>
    %26 = tpu.matmul %23, %24, %cst_9 {dimension_numbers = #tpu.dot_dimension_numbers<[1], [1], [0], [0], [0, 0, 1, 0], [], []>} : vector<16x8xbf16>, vector<16x8xbf16>, vector<16x16xf32> -> vector<16x16xf32>
    %cst_10 = arith.constant 0.353553385 : f32
    %27 = vector.broadcast %cst_10 : f32 to vector<16x16xf32>
    %28 = arith.mulf %26, %27 : vector<16x16xf32>
    %c1 = arith.constant 1 : index
    %c0_11 = arith.constant 0 : index
    %c0_12 = arith.constant 0 : index
    %29 = vector.load %arg2[%c1, %c0_11, %c0_12] : memref<4x16x16xf32, #tpu.memory_space<vmem>>, vector<1x16x16xf32>
    %30 = vector.shape_cast %29 : vector<1x16x16xf32> to vector<16x16xf32>
    %31 = arith.addf %28, %30 : vector<16x16xf32>
    %cst_13 = arith.constant dense<0xFF800000> : vector<16xf32>
    %32 = vector.multi_reduction <maximumf>, %31, %cst_13 [1] : vector<16x16xf32> to vector<16xf32>
    %33 = vector.shape_cast %32 : vector<16xf32> to vector<16x1xf32>
    %34 = vector.broadcast %33 : vector<16x1xf32> to vector<16x16xf32>
    %35 = arith.subf %31, %34 : vector<16x16xf32>
    %36 = math.exp %35 : vector<16x16xf32>
    %cst_14 = arith.constant dense<0.000000e+00> : vector<16xf32>
    %37 = vector.multi_reduction <add>, %36, %cst_14 [1] : vector<16x16xf32> to vector<16xf32>
    %38 = vector.shape_cast %37 : vector<16xf32> to vector<16x1xf32>
    %39 = arith.truncf %36 : vector<16x16xf32> to vector<16x16xbf16>
    %cst_15 = arith.constant dense<0.000000e+00> : vector<16x8xf32>
    %40 = tpu.matmul %39, %25, %cst_15 {dimension_numbers = #tpu.dot_dimension_numbers<[1], [0], [0], [1], [0, 0, 1, 1], [], []>} : vector<16x16xbf16>, vector<16x8xbf16>, vector<16x8xf32> -> vector<16x8xf32>
    %41 = tpu.reciprocal %38 {approx = true} : vector<16x1xf32> -> vector<16x1xf32>
    %42 = vector.broadcast %41 : vector<16x1xf32> to vector<16x8xf32>
    %43 = arith.mulf %40, %42 : vector<16x8xf32>
    %44 = vector.extract_strided_slice %1 {offsets = [0, 16], sizes = [16, 8], strides = [1, 1]} : vector<16x96xbf16> to vector<16x8xbf16>
    %45 = vector.extract_strided_slice %1 {offsets = [0, 48], sizes = [16, 8], strides = [1, 1]} : vector<16x96xbf16> to vector<16x8xbf16>
    %46 = vector.extract_strided_slice %1 {offsets = [0, 80], sizes = [16, 8], strides = [1, 1]} : vector<16x96xbf16> to vector<16x8xbf16>
    %cst_16 = arith.constant dense<0.000000e+00> : vector<16x16xf32>
    %47 = tpu.matmul %44, %45, %cst_16 {dimension_numbers = #tpu.dot_dimension_numbers<[1], [1], [0], [0], [0, 0, 1, 0], [], []>} : vector<16x8xbf16>, vector<16x8xbf16>, vector<16x16xf32> -> vector<16x16xf32>
    %cst_17 = arith.constant 0.353553385 : f32
    %48 = vector.broadcast %cst_17 : f32 to vector<16x16xf32>
    %49 = arith.mulf %47, %48 : vector<16x16xf32>
    %c2 = arith.constant 2 : index
    %c0_18 = arith.constant 0 : index
    %c0_19 = arith.constant 0 : index
    %50 = vector.load %arg2[%c2, %c0_18, %c0_19] : memref<4x16x16xf32, #tpu.memory_space<vmem>>, vector<1x16x16xf32>
    %51 = vector.shape_cast %50 : vector<1x16x16xf32> to vector<16x16xf32>
    %52 = arith.addf %49, %51 : vector<16x16xf32>
    %cst_20 = arith.constant dense<0xFF800000> : vector<16xf32>
    %53 = vector.multi_reduction <maximumf>, %52, %cst_20 [1] : vector<16x16xf32> to vector<16xf32>
    %54 = vector.shape_cast %53 : vector<16xf32> to vector<16x1xf32>
    %55 = vector.broadcast %54 : vector<16x1xf32> to vector<16x16xf32>
    %56 = arith.subf %52, %55 : vector<16x16xf32>
    %57 = math.exp %56 : vector<16x16xf32>
    %cst_21 = arith.constant dense<0.000000e+00> : vector<16xf32>
    %58 = vector.multi_reduction <add>, %57, %cst_21 [1] : vector<16x16xf32> to vector<16xf32>
    %59 = vector.shape_cast %58 : vector<16xf32> to vector<16x1xf32>
    %60 = arith.truncf %57 : vector<16x16xf32> to vector<16x16xbf16>
    %cst_22 = arith.constant dense<0.000000e+00> : vector<16x8xf32>
    %61 = tpu.matmul %60, %46, %cst_22 {dimension_numbers = #tpu.dot_dimension_numbers<[1], [0], [0], [1], [0, 0, 1, 1], [], []>} : vector<16x16xbf16>, vector<16x8xbf16>, vector<16x8xf32> -> vector<16x8xf32>
    %62 = tpu.reciprocal %59 {approx = true} : vector<16x1xf32> -> vector<16x1xf32>
    %63 = vector.broadcast %62 : vector<16x1xf32> to vector<16x8xf32>
    %64 = arith.mulf %61, %63 : vector<16x8xf32>
    %65 = vector.extract_strided_slice %1 {offsets = [0, 24], sizes = [16, 8], strides = [1, 1]} : vector<16x96xbf16> to vector<16x8xbf16>
    %66 = vector.extract_strided_slice %1 {offsets = [0, 56], sizes = [16, 8], strides = [1, 1]} : vector<16x96xbf16> to vector<16x8xbf16>
    %67 = vector.extract_strided_slice %1 {offsets = [0, 88], sizes = [16, 8], strides = [1, 1]} : vector<16x96xbf16> to vector<16x8xbf16>
    %cst_23 = arith.constant dense<0.000000e+00> : vector<16x16xf32>
    %68 = tpu.matmul %65, %66, %cst_23 {dimension_numbers = #tpu.dot_dimension_numbers<[1], [1], [0], [0], [0, 0, 1, 0], [], []>} : vector<16x8xbf16>, vector<16x8xbf16>, vector<16x16xf32> -> vector<16x16xf32>
    %cst_24 = arith.constant 0.353553385 : f32
    %69 = vector.broadcast %cst_24 : f32 to vector<16x16xf32>
    %70 = arith.mulf %68, %69 : vector<16x16xf32>
    %c3 = arith.constant 3 : index
    %c0_25 = arith.constant 0 : index
    %c0_26 = arith.constant 0 : index
    %71 = vector.load %arg2[%c3, %c0_25, %c0_26] : memref<4x16x16xf32, #tpu.memory_space<vmem>>, vector<1x16x16xf32>
    %72 = vector.shape_cast %71 : vector<1x16x16xf32> to vector<16x16xf32>
    %73 = arith.addf %70, %72 : vector<16x16xf32>
    %cst_27 = arith.constant dense<0xFF800000> : vector<16xf32>
    %74 = vector.multi_reduction <maximumf>, %73, %cst_27 [1] : vector<16x16xf32> to vector<16xf32>
    %75 = vector.shape_cast %74 : vector<16xf32> to vector<16x1xf32>
    %76 = vector.broadcast %75 : vector<16x1xf32> to vector<16x16xf32>
    %77 = arith.subf %73, %76 : vector<16x16xf32>
    %78 = math.exp %77 : vector<16x16xf32>
    %cst_28 = arith.constant dense<0.000000e+00> : vector<16xf32>
    %79 = vector.multi_reduction <add>, %78, %cst_28 [1] : vector<16x16xf32> to vector<16xf32>
    %80 = vector.shape_cast %79 : vector<16xf32> to vector<16x1xf32>
    %81 = arith.truncf %78 : vector<16x16xf32> to vector<16x16xbf16>
    %cst_29 = arith.constant dense<0.000000e+00> : vector<16x8xf32>
    %82 = tpu.matmul %81, %67, %cst_29 {dimension_numbers = #tpu.dot_dimension_numbers<[1], [0], [0], [1], [0, 0, 1, 1], [], []>} : vector<16x16xbf16>, vector<16x8xbf16>, vector<16x8xf32> -> vector<16x8xf32>
    %83 = tpu.reciprocal %80 {approx = true} : vector<16x1xf32> -> vector<16x1xf32>
    %84 = vector.broadcast %83 : vector<16x1xf32> to vector<16x8xf32>
    %85 = arith.mulf %82, %84 : vector<16x8xf32>
    %86 = tpu.concatenate %22, %43, %64, %85 in 1 : vector<16x8xf32>, vector<16x8xf32>, vector<16x8xf32>, vector<16x8xf32> -> vector<16x32xf32>
    %87 = arith.truncf %86 : vector<16x32xf32> to vector<16x32xbf16>
    %c0_30 = arith.constant 0 : index
    %c0_31 = arith.constant 0 : index
    %88 = vector.load %arg3[%c0_30, %c0_31] : memref<32x32xbf16, #tpu.memory_space<vmem>>, vector<32x32xbf16>
    %cst_32 = arith.constant dense<0.000000e+00> : vector<16x32xf32>
    %89 = tpu.matmul %87, %88, %cst_32 {dimension_numbers = #tpu.dot_dimension_numbers<[1], [0], [0], [1], [0, 0, 1, 1], [], []>} : vector<16x32xbf16>, vector<32x32xbf16>, vector<16x32xf32> -> vector<16x32xf32>
    %c0_33 = arith.constant 0 : index
    %c0_34 = arith.constant 0 : index
    %90 = vector.load %arg4[%c0_33, %c0_34] : memref<1x32xf32, #tpu.memory_space<vmem>>, vector<1x32xf32>
    %91 = vector.broadcast %90 : vector<1x32xf32> to vector<16x32xf32>
    %92 = arith.addf %89, %91 : vector<16x32xf32>
    %93 = arith.truncf %92 : vector<16x32xf32> to vector<16x32xbf16>
    %c0_35 = arith.constant 0 : index
    %c0_36 = arith.constant 0 : index
    %c0_37 = arith.constant 0 : index
    %94 = vector.load %arg5[%c0_35, %c0_36, %c0_37] : memref<1x16x32xbf16, #tpu.memory_space<vmem>>, vector<1x16x32xbf16>
    %95 = vector.shape_cast %94 : vector<1x16x32xbf16> to vector<16x32xbf16>
    %96 = vector.shape_cast %93 : vector<16x32xbf16> to vector<1x16x32xbf16>
    tpu.vector_store %arg5[%c0_35, %c0_36, %c0_37], %96 {strides = array<i32>} : memref<1x16x32xbf16, #tpu.memory_space<vmem>>, vector<1x16x32xbf16>,
    return
  }
  func.func @transform_0(%arg0: i32) -> (i32, i32, i32) {
    %c0_i32 = arith.constant 0 : i32
    %c0_i32_0 = arith.constant 0 : i32
    %c0_i32_1 = arith.constant 0 : i32
    return %arg0, %c0_i32, %c0_i32_0 : i32, i32, i32
  }
  func.func @transform_1(%arg0: i32) -> (i32, i32, i32) {
    %c0_i32 = arith.constant 0 : i32
    %c0_i32_0 = arith.constant 0 : i32
    %c0_i32_1 = arith.constant 0 : i32
    %c0_i32_2 = arith.constant 0 : i32
    return %c0_i32, %c0_i32_0, %c0_i32_1 : i32, i32, i32
  }
  func.func @transform_2(%arg0: i32) -> (i32, i32) {
    %c0_i32 = arith.constant 0 : i32
    %c0_i32_0 = arith.constant 0 : i32
    %c0_i32_1 = arith.constant 0 : i32
    return %c0_i32, %c0_i32_0 : i32, i32
  }
  func.func @transform_3(%arg0: i32) -> (i32, i32) {
    %c0_i32 = arith.constant 0 : i32
    %c0_i32_0 = arith.constant 0 : i32
    %c0_i32_1 = arith.constant 0 : i32
    return %c0_i32, %c0_i32_0 : i32, i32
  }
  func.func @transform_4(%arg0: i32) -> (i32, i32, i32) {
    %c0_i32 = arith.constant 0 : i32
    %c0_i32_0 = arith.constant 0 : i32
    %c0_i32_1 = arith.constant 0 : i32
    return %arg0, %c0_i32, %c0_i32_0 : i32, i32, i32
  }
}

module attributes {stable_mosaic.version = 11 : i64} {
  func.func @_ln_linear_kernel(%arg0: i32, %arg1: memref<16x32xf32, #tpu.memory_space<vmem>>, %arg2: memref<1x32xf32, #tpu.memory_space<vmem>>, %arg3: memref<1x32xf32, #tpu.memory_space<vmem>>, %arg4: memref<32x96xbf16, #tpu.memory_space<vmem>>, %arg5: memref<1x96xf32, #tpu.memory_space<vmem>>, %arg6: memref<16x96xbf16, #tpu.memory_space<vmem>>) attributes {dimension_semantics = [#tpu.dimension_semantics<parallel>], iteration_bounds = array<i64: 1>, scalar_prefetch = 0 : i64, scratch_operands = 0 : i64, tpu.core_type = #tpu.core_type<tc>, window_params = [{transform_indices = @transform_0, window_bounds = array<i64: 16, 32>}, {pipeline_mode = #tpu.pipeline_mode<synchronous>, transform_indices = @transform_1, window_bounds = array<i64: 1, 32>}, {pipeline_mode = #tpu.pipeline_mode<synchronous>, transform_indices = @transform_2, window_bounds = array<i64: 1, 32>}, {pipeline_mode = #tpu.pipeline_mode<synchronous>, transform_indices = @transform_3, window_bounds = array<i64: 32, 96>}, {pipeline_mode = #tpu.pipeline_mode<synchronous>, transform_indices = @transform_4, window_bounds = array<i64: 1, 96>}, {transform_indices = @transform_5, window_bounds = array<i64: 16, 96>}]} {
    %c0 = arith.constant 0 : index
    %c0_0 = arith.constant 0 : index
    %0 = vector.load %arg1[%c0, %c0_0] : memref<16x32xf32, #tpu.memory_space<vmem>>, vector<16x32xf32>
    %c0_1 = arith.constant 0 : index
    %c0_2 = arith.constant 0 : index
    %1 = vector.load %arg2[%c0_1, %c0_2] : memref<1x32xf32, #tpu.memory_space<vmem>>, vector<1x32xf32>
    %c0_3 = arith.constant 0 : index
    %c0_4 = arith.constant 0 : index
    %2 = vector.load %arg3[%c0_3, %c0_4] : memref<1x32xf32, #tpu.memory_space<vmem>>, vector<1x32xf32>
    %cst = arith.constant dense<0.000000e+00> : vector<16xf32>
    %3 = vector.multi_reduction <add>, %0, %cst [1] : vector<16x32xf32> to vector<16xf32>
    %4 = vector.shape_cast %3 : vector<16xf32> to vector<16x1xf32>
    %cst_5 = arith.constant 3.200000e+01 : f32
    %5 = vector.broadcast %cst_5 : f32 to vector<16x1xf32>
    %6 = arith.divf %4, %5 : vector<16x1xf32>
    %7 = vector.broadcast %6 : vector<16x1xf32> to vector<16x32xf32>
    %8 = arith.subf %0, %7 : vector<16x32xf32>
    %9 = arith.mulf %8, %8 : vector<16x32xf32>
    %cst_6 = arith.constant dense<0.000000e+00> : vector<16xf32>
    %10 = vector.multi_reduction <add>, %9, %cst_6 [1] : vector<16x32xf32> to vector<16xf32>
    %11 = vector.shape_cast %10 : vector<16xf32> to vector<16x1xf32>
    %cst_7 = arith.constant 3.200000e+01 : f32
    %12 = vector.broadcast %cst_7 : f32 to vector<16x1xf32>
    %13 = arith.divf %11, %12 : vector<16x1xf32>
    %14 = vector.broadcast %6 : vector<16x1xf32> to vector<16x32xf32>
    %15 = arith.subf %0, %14 : vector<16x32xf32>
    %cst_8 = arith.constant 9.99999974E-6 : f32
    %16 = vector.broadcast %cst_8 : f32 to vector<16x1xf32>
    %17 = arith.addf %13, %16 : vector<16x1xf32>
    %18 = math.rsqrt %17 : vector<16x1xf32>
    %19 = vector.broadcast %18 : vector<16x1xf32> to vector<16x32xf32>
    %20 = arith.mulf %15, %19 : vector<16x32xf32>
    %21 = vector.broadcast %1 : vector<1x32xf32> to vector<16x32xf32>
    %22 = arith.mulf %20, %21 : vector<16x32xf32>
    %23 = vector.broadcast %2 : vector<1x32xf32> to vector<16x32xf32>
    %24 = arith.addf %22, %23 : vector<16x32xf32>
    %25 = arith.truncf %24 : vector<16x32xf32> to vector<16x32xbf16>
    %c0_9 = arith.constant 0 : index
    %c0_10 = arith.constant 0 : index
    %26 = vector.load %arg4[%c0_9, %c0_10] : memref<32x96xbf16, #tpu.memory_space<vmem>>, vector<32x96xbf16>
    %cst_11 = arith.constant dense<0.000000e+00> : vector<16x96xf32>
    %27 = tpu.matmul %25, %26, %cst_11 {dimension_numbers = #tpu.dot_dimension_numbers<[1], [0], [0], [1], [0, 0, 1, 1], [], []>} : vector<16x32xbf16>, vector<32x96xbf16>, vector<16x96xf32> -> vector<16x96xf32>
    %c0_12 = arith.constant 0 : index
    %c0_13 = arith.constant 0 : index
    %28 = vector.load %arg5[%c0_12, %c0_13] : memref<1x96xf32, #tpu.memory_space<vmem>>, vector<1x96xf32>
    %29 = vector.broadcast %28 : vector<1x96xf32> to vector<16x96xf32>
    %30 = arith.addf %27, %29 : vector<16x96xf32>
    %31 = arith.truncf %30 : vector<16x96xf32> to vector<16x96xbf16>
    %c0_14 = arith.constant 0 : index
    %c0_15 = arith.constant 0 : index
    %32 = vector.load %arg6[%c0_14, %c0_15] : memref<16x96xbf16, #tpu.memory_space<vmem>>, vector<16x96xbf16>
    tpu.vector_store %arg6[%c0_14, %c0_15], %31 {strides = array<i32>} : memref<16x96xbf16, #tpu.memory_space<vmem>>, vector<16x96xbf16>,
    return
  }
  func.func @transform_0(%arg0: i32) -> (i32, i32) {
    %c0_i32 = arith.constant 0 : i32
    %c0_i32_0 = arith.constant 0 : i32
    return %arg0, %c0_i32 : i32, i32
  }
  func.func @transform_1(%arg0: i32) -> (i32, i32) {
    %c0_i32 = arith.constant 0 : i32
    %c0_i32_0 = arith.constant 0 : i32
    %c0_i32_1 = arith.constant 0 : i32
    return %c0_i32, %c0_i32_0 : i32, i32
  }
  func.func @transform_2(%arg0: i32) -> (i32, i32) {
    %c0_i32 = arith.constant 0 : i32
    %c0_i32_0 = arith.constant 0 : i32
    %c0_i32_1 = arith.constant 0 : i32
    return %c0_i32, %c0_i32_0 : i32, i32
  }
  func.func @transform_3(%arg0: i32) -> (i32, i32) {
    %c0_i32 = arith.constant 0 : i32
    %c0_i32_0 = arith.constant 0 : i32
    %c0_i32_1 = arith.constant 0 : i32
    return %c0_i32, %c0_i32_0 : i32, i32
  }
  func.func @transform_4(%arg0: i32) -> (i32, i32) {
    %c0_i32 = arith.constant 0 : i32
    %c0_i32_0 = arith.constant 0 : i32
    %c0_i32_1 = arith.constant 0 : i32
    return %c0_i32, %c0_i32_0 : i32, i32
  }
  func.func @transform_5(%arg0: i32) -> (i32, i32) {
    %c0_i32 = arith.constant 0 : i32
    %c0_i32_0 = arith.constant 0 : i32
    return %arg0, %c0_i32 : i32, i32
  }
}

module attributes {stable_mosaic.version = 11 : i64} {
  func.func @_res_ln_mlp_res_kernel(%arg0: i32, %arg1: memref<16x32xf32, #tpu.memory_space<vmem>>, %arg2: memref<16x32xbf16, #tpu.memory_space<vmem>>, %arg3: memref<1x32xf32, #tpu.memory_space<vmem>>, %arg4: memref<1x32xf32, #tpu.memory_space<vmem>>, %arg5: memref<32x128xbf16, #tpu.memory_space<vmem>>, %arg6: memref<1x128xf32, #tpu.memory_space<vmem>>, %arg7: memref<128x32xbf16, #tpu.memory_space<vmem>>, %arg8: memref<1x32xf32, #tpu.memory_space<vmem>>, %arg9: memref<16x32xf32, #tpu.memory_space<vmem>>) attributes {dimension_semantics = [#tpu.dimension_semantics<parallel>], iteration_bounds = array<i64: 1>, scalar_prefetch = 0 : i64, scratch_operands = 0 : i64, tpu.core_type = #tpu.core_type<tc>, window_params = [{transform_indices = @transform_0, window_bounds = array<i64: 16, 32>}, {transform_indices = @transform_1, window_bounds = array<i64: 16, 32>}, {pipeline_mode = #tpu.pipeline_mode<synchronous>, transform_indices = @transform_2, window_bounds = array<i64: 1, 32>}, {pipeline_mode = #tpu.pipeline_mode<synchronous>, transform_indices = @transform_3, window_bounds = array<i64: 1, 32>}, {pipeline_mode = #tpu.pipeline_mode<synchronous>, transform_indices = @transform_4, window_bounds = array<i64: 32, 128>}, {pipeline_mode = #tpu.pipeline_mode<synchronous>, transform_indices = @transform_5, window_bounds = array<i64: 1, 128>}, {pipeline_mode = #tpu.pipeline_mode<synchronous>, transform_indices = @transform_6, window_bounds = array<i64: 128, 32>}, {pipeline_mode = #tpu.pipeline_mode<synchronous>, transform_indices = @transform_7, window_bounds = array<i64: 1, 32>}, {transform_indices = @transform_8, window_bounds = array<i64: 16, 32>}]} {
    %c0 = arith.constant 0 : index
    %c0_0 = arith.constant 0 : index
    %0 = vector.load %arg1[%c0, %c0_0] : memref<16x32xf32, #tpu.memory_space<vmem>>, vector<16x32xf32>
    %c0_1 = arith.constant 0 : index
    %c0_2 = arith.constant 0 : index
    %1 = vector.load %arg2[%c0_1, %c0_2] : memref<16x32xbf16, #tpu.memory_space<vmem>>, vector<16x32xbf16>
    %2 = arith.extf %1 : vector<16x32xbf16> to vector<16x32xf32>
    %3 = arith.addf %0, %2 : vector<16x32xf32>
    %c0_3 = arith.constant 0 : index
    %c0_4 = arith.constant 0 : index
    %4 = vector.load %arg3[%c0_3, %c0_4] : memref<1x32xf32, #tpu.memory_space<vmem>>, vector<1x32xf32>
    %c0_5 = arith.constant 0 : index
    %c0_6 = arith.constant 0 : index
    %5 = vector.load %arg4[%c0_5, %c0_6] : memref<1x32xf32, #tpu.memory_space<vmem>>, vector<1x32xf32>
    %cst = arith.constant dense<0.000000e+00> : vector<16xf32>
    %6 = vector.multi_reduction <add>, %3, %cst [1] : vector<16x32xf32> to vector<16xf32>
    %7 = vector.shape_cast %6 : vector<16xf32> to vector<16x1xf32>
    %cst_7 = arith.constant 3.200000e+01 : f32
    %8 = vector.broadcast %cst_7 : f32 to vector<16x1xf32>
    %9 = arith.divf %7, %8 : vector<16x1xf32>
    %10 = vector.broadcast %9 : vector<16x1xf32> to vector<16x32xf32>
    %11 = arith.subf %3, %10 : vector<16x32xf32>
    %12 = arith.mulf %11, %11 : vector<16x32xf32>
    %cst_8 = arith.constant dense<0.000000e+00> : vector<16xf32>
    %13 = vector.multi_reduction <add>, %12, %cst_8 [1] : vector<16x32xf32> to vector<16xf32>
    %14 = vector.shape_cast %13 : vector<16xf32> to vector<16x1xf32>
    %cst_9 = arith.constant 3.200000e+01 : f32
    %15 = vector.broadcast %cst_9 : f32 to vector<16x1xf32>
    %16 = arith.divf %14, %15 : vector<16x1xf32>
    %17 = vector.broadcast %9 : vector<16x1xf32> to vector<16x32xf32>
    %18 = arith.subf %3, %17 : vector<16x32xf32>
    %cst_10 = arith.constant 9.99999974E-6 : f32
    %19 = vector.broadcast %cst_10 : f32 to vector<16x1xf32>
    %20 = arith.addf %16, %19 : vector<16x1xf32>
    %21 = math.rsqrt %20 : vector<16x1xf32>
    %22 = vector.broadcast %21 : vector<16x1xf32> to vector<16x32xf32>
    %23 = arith.mulf %18, %22 : vector<16x32xf32>
    %24 = vector.broadcast %4 : vector<1x32xf32> to vector<16x32xf32>
    %25 = arith.mulf %23, %24 : vector<16x32xf32>
    %26 = vector.broadcast %5 : vector<1x32xf32> to vector<16x32xf32>
    %27 = arith.addf %25, %26 : vector<16x32xf32>
    %28 = arith.truncf %27 : vector<16x32xf32> to vector<16x32xbf16>
    %c0_11 = arith.constant 0 : index
    %c0_12 = arith.constant 0 : index
    %29 = vector.load %arg5[%c0_11, %c0_12] : memref<32x128xbf16, #tpu.memory_space<vmem>>, vector<32x128xbf16>
    %cst_13 = arith.constant dense<0.000000e+00> : vector<16x128xf32>
    %30 = tpu.matmul %28, %29, %cst_13 {dimension_numbers = #tpu.dot_dimension_numbers<[1], [0], [0], [1], [0, 0, 1, 1], [], []>} : vector<16x32xbf16>, vector<32x128xbf16>, vector<16x128xf32> -> vector<16x128xf32>
    %c0_14 = arith.constant 0 : index
    %c0_15 = arith.constant 0 : index
    %31 = vector.load %arg6[%c0_14, %c0_15] : memref<1x128xf32, #tpu.memory_space<vmem>>, vector<1x128xf32>
    %32 = vector.broadcast %31 : vector<1x128xf32> to vector<16x128xf32>
    %33 = arith.addf %30, %32 : vector<16x128xf32>
    %cst_16 = arith.constant 5.000000e-01 : f32
    %34 = vector.broadcast %cst_16 : f32 to vector<16x128xf32>
    %35 = arith.mulf %34, %33 : vector<16x128xf32>
    %cst_17 = arith.constant 0.707106769 : f32
    %36 = vector.broadcast %cst_17 : f32 to vector<16x128xf32>
    %37 = arith.mulf %33, %36 : vector<16x128xf32>
    %38 = math.absf %37 : vector<16x128xf32>
    %cst_18 = arith.constant 0.327591091 : f32
    %39 = vector.broadcast %cst_18 : f32 to vector<16x128xf32>
    %40 = arith.mulf %39, %38 : vector<16x128xf32>
    %cst_19 = arith.constant 1.000000e+00 : f32
    %41 = vector.broadcast %cst_19 : f32 to vector<16x128xf32>
    %42 = arith.addf %41, %40 : vector<16x128xf32>
    %cst_20 = arith.constant 1.000000e+00 : f32
    %43 = vector.broadcast %cst_20 : f32 to vector<16x128xf32>
    %44 = arith.divf %43, %42 : vector<16x128xf32>
    %cst_21 = arith.constant 1.06140542 : f32
    %45 = vector.broadcast %cst_21 : f32 to vector<16x128xf32>
    %46 = arith.mulf %45, %44 : vector<16x128xf32>
    %cst_22 = arith.constant -1.45315206 : f32
    %47 = vector.broadcast %cst_22 : f32 to vector<16x128xf32>
    %48 = arith.addf %46, %47 : vector<16x128xf32>
    %49 = arith.mulf %48, %44 : vector<16x128xf32>
    %cst_23 = arith.constant 1.42141378 : f32
    %50 = vector.broadcast %cst_23 : f32 to vector<16x128xf32>
    %51 = arith.addf %49, %50 : vector<16x128xf32>
    %52 = arith.mulf %51, %44 : vector<16x128xf32>
    %cst_24 = arith.constant -0.284496725 : f32
    %53 = vector.broadcast %cst_24 : f32 to vector<16x128xf32>
    %54 = arith.addf %52, %53 : vector<16x128xf32>
    %55 = arith.mulf %54, %44 : vector<16x128xf32>
    %cst_25 = arith.constant 0.254829586 : f32
    %56 = vector.broadcast %cst_25 : f32 to vector<16x128xf32>
    %57 = arith.addf %55, %56 : vector<16x128xf32>
    %58 = arith.mulf %57, %44 : vector<16x128xf32>
    %cst_26 = arith.constant 0.000000e+00 : f32
    %59 = vector.broadcast %cst_26 : f32 to vector<16x128xf32>
    %60 = arith.subf %59, %38 : vector<16x128xf32>
    %61 = arith.mulf %60, %38 : vector<16x128xf32>
    %62 = math.exp %61 : vector<16x128xf32>
    %63 = arith.mulf %58, %62 : vector<16x128xf32>
    %cst_27 = arith.constant 1.000000e+00 : f32
    %64 = vector.broadcast %cst_27 : f32 to vector<16x128xf32>
    %65 = arith.subf %64, %63 : vector<16x128xf32>
    %cst_28 = arith.constant 0.000000e+00 : f32
    %66 = vector.broadcast %cst_28 : f32 to vector<16x128xf32>
    %67 = arith.cmpf olt, %37, %66 : vector<16x128xf32>
    %cst_29 = arith.constant 0.000000e+00 : f32
    %68 = vector.broadcast %cst_29 : f32 to vector<16x128xf32>
    %69 = arith.subf %68, %65 : vector<16x128xf32>
    %70 = arith.select %67, %69, %65 : vector<16x128xi1>, vector<16x128xf32>
    %cst_30 = arith.constant 1.000000e+00 : f32
    %71 = vector.broadcast %cst_30 : f32 to vector<16x128xf32>
    %72 = arith.addf %71, %70 : vector<16x128xf32>
    %73 = arith.mulf %35, %72 : vector<16x128xf32>
    %74 = arith.truncf %73 : vector<16x128xf32> to vector<16x128xbf16>
    %c0_31 = arith.constant 0 : index
    %c0_32 = arith.constant 0 : index
    %75 = vector.load %arg7[%c0_31, %c0_32] : memref<128x32xbf16, #tpu.memory_space<vmem>>, vector<128x32xbf16>
    %cst_33 = arith.constant dense<0.000000e+00> : vector<16x32xf32>
    %76 = tpu.matmul %74, %75, %cst_33 {dimension_numbers = #tpu.dot_dimension_numbers<[1], [0], [0], [1], [0, 0, 1, 1], [], []>} : vector<16x128xbf16>, vector<128x32xbf16>, vector<16x32xf32> -> vector<16x32xf32>
    %c0_34 = arith.constant 0 : index
    %c0_35 = arith.constant 0 : index
    %77 = vector.load %arg8[%c0_34, %c0_35] : memref<1x32xf32, #tpu.memory_space<vmem>>, vector<1x32xf32>
    %78 = vector.broadcast %77 : vector<1x32xf32> to vector<16x32xf32>
    %79 = arith.addf %76, %78 : vector<16x32xf32>
    %80 = arith.addf %3, %79 : vector<16x32xf32>
    %c0_36 = arith.constant 0 : index
    %c0_37 = arith.constant 0 : index
    %81 = vector.load %arg9[%c0_36, %c0_37] : memref<16x32xf32, #tpu.memory_space<vmem>>, vector<16x32xf32>
    tpu.vector_store %arg9[%c0_36, %c0_37], %80 {strides = array<i32>} : memref<16x32xf32, #tpu.memory_space<vmem>>, vector<16x32xf32>,
    return
  }
  func.func @transform_0(%arg0: i32) -> (i32, i32) {
    %c0_i32 = arith.constant 0 : i32
    %c0_i32_0 = arith.constant 0 : i32
    return %arg0, %c0_i32 : i32, i32
  }
  func.func @transform_1(%arg0: i32) -> (i32, i32) {
    %c0_i32 = arith.constant 0 : i32
    %c0_i32_0 = arith.constant 0 : i32
    return %arg0, %c0_i32 : i32, i32
  }
  func.func @transform_2(%arg0: i32) -> (i32, i32) {
    %c0_i32 = arith.constant 0 : i32
    %c0_i32_0 = arith.constant 0 : i32
    %c0_i32_1 = arith.constant 0 : i32
    return %c0_i32, %c0_i32_0 : i32, i32
  }
  func.func @transform_3(%arg0: i32) -> (i32, i32) {
    %c0_i32 = arith.constant 0 : i32
    %c0_i32_0 = arith.constant 0 : i32
    %c0_i32_1 = arith.constant 0 : i32
    return %c0_i32, %c0_i32_0 : i32, i32
  }
  func.func @transform_4(%arg0: i32) -> (i32, i32) {
    %c0_i32 = arith.constant 0 : i32
    %c0_i32_0 = arith.constant 0 : i32
    %c0_i32_1 = arith.constant 0 : i32
    return %c0_i32, %c0_i32_0 : i32, i32
  }
  func.func @transform_5(%arg0: i32) -> (i32, i32) {
    %c0_i32 = arith.constant 0 : i32
    %c0_i32_0 = arith.constant 0 : i32
    %c0_i32_1 = arith.constant 0 : i32
    return %c0_i32, %c0_i32_0 : i32, i32
  }
  func.func @transform_6(%arg0: i32) -> (i32, i32) {
    %c0_i32 = arith.constant 0 : i32
    %c0_i32_0 = arith.constant 0 : i32
    %c0_i32_1 = arith.constant 0 : i32
    return %c0_i32, %c0_i32_0 : i32, i32
  }
  func.func @transform_7(%arg0: i32) -> (i32, i32) {
    %c0_i32 = arith.constant 0 : i32
    %c0_i32_0 = arith.constant 0 : i32
    %c0_i32_1 = arith.constant 0 : i32
    return %c0_i32, %c0_i32_0 : i32, i32
  }
  func.func @transform_8(%arg0: i32) -> (i32, i32) {
    %c0_i32 = arith.constant 0 : i32
    %c0_i32_0 = arith.constant 0 : i32
    return %arg0, %c0_i32 : i32, i32
  }
}

module attributes {stable_mosaic.version = 11 : i64} {
  func.func @_norm_pool_head_kernel(%arg0: memref<2x8x32xf32, #tpu.memory_space<vmem>>, %arg1: memref<1x32xf32, #tpu.memory_space<vmem>>, %arg2: memref<1x32xf32, #tpu.memory_space<vmem>>, %arg3: memref<32x128xbf16, #tpu.memory_space<vmem>>, %arg4: memref<1x128xf32, #tpu.memory_space<vmem>>, %arg5: memref<2x128xf32, #tpu.memory_space<vmem>>) attributes {dimension_semantics = [], scalar_prefetch = 0 : i64, scratch_operands = 0 : i64, tpu.core_type = #tpu.core_type<tc>} {
    %c0 = arith.constant 0 : index
    %c0_0 = arith.constant 0 : index
    %c0_1 = arith.constant 0 : index
    %0 = vector.load %arg0[%c0, %c0_0, %c0_1] : memref<2x8x32xf32, #tpu.memory_space<vmem>>, vector<2x8x32xf32>
    %c0_2 = arith.constant 0 : index
    %c0_3 = arith.constant 0 : index
    %1 = vector.load %arg1[%c0_2, %c0_3] : memref<1x32xf32, #tpu.memory_space<vmem>>, vector<1x32xf32>
    %c0_4 = arith.constant 0 : index
    %c0_5 = arith.constant 0 : index
    %2 = vector.load %arg2[%c0_4, %c0_5] : memref<1x32xf32, #tpu.memory_space<vmem>>, vector<1x32xf32>
    %cst = arith.constant dense<0.000000e+00> : vector<2x8xf32>
    %3 = vector.multi_reduction <add>, %0, %cst [2] : vector<2x8x32xf32> to vector<2x8xf32>
    %4 = vector.shape_cast %3 : vector<2x8xf32> to vector<2x8x1xf32>
    %cst_6 = arith.constant 3.200000e+01 : f32
    %5 = vector.broadcast %cst_6 : f32 to vector<2x8x1xf32>
    %6 = arith.divf %4, %5 : vector<2x8x1xf32>
    %7 = vector.broadcast %6 : vector<2x8x1xf32> to vector<2x8x32xf32>
    %8 = arith.subf %0, %7 : vector<2x8x32xf32>
    %9 = arith.mulf %8, %8 : vector<2x8x32xf32>
    %cst_7 = arith.constant dense<0.000000e+00> : vector<2x8xf32>
    %10 = vector.multi_reduction <add>, %9, %cst_7 [2] : vector<2x8x32xf32> to vector<2x8xf32>
    %11 = vector.shape_cast %10 : vector<2x8xf32> to vector<2x8x1xf32>
    %cst_8 = arith.constant 3.200000e+01 : f32
    %12 = vector.broadcast %cst_8 : f32 to vector<2x8x1xf32>
    %13 = arith.divf %11, %12 : vector<2x8x1xf32>
    %14 = vector.broadcast %6 : vector<2x8x1xf32> to vector<2x8x32xf32>
    %15 = arith.subf %0, %14 : vector<2x8x32xf32>
    %cst_9 = arith.constant 9.99999974E-6 : f32
    %16 = vector.broadcast %cst_9 : f32 to vector<2x8x1xf32>
    %17 = arith.addf %13, %16 : vector<2x8x1xf32>
    %18 = math.rsqrt %17 : vector<2x8x1xf32>
    %19 = vector.broadcast %18 : vector<2x8x1xf32> to vector<2x8x32xf32>
    %20 = arith.mulf %15, %19 : vector<2x8x32xf32>
    %21 = vector.shape_cast %1 : vector<1x32xf32> to vector<1x1x32xf32>
    %22 = vector.broadcast %21 : vector<1x1x32xf32> to vector<2x8x32xf32>
    %23 = arith.mulf %20, %22 : vector<2x8x32xf32>
    %24 = vector.shape_cast %2 : vector<1x32xf32> to vector<1x1x32xf32>
    %25 = vector.broadcast %24 : vector<1x1x32xf32> to vector<2x8x32xf32>
    %26 = arith.addf %23, %25 : vector<2x8x32xf32>
    %cst_10 = arith.constant dense<0.000000e+00> : vector<2x32xf32>
    %27 = vector.multi_reduction <add>, %26, %cst_10 [1] : vector<2x8x32xf32> to vector<2x32xf32>
    %cst_11 = arith.constant 8.000000e+00 : f32
    %28 = vector.broadcast %cst_11 : f32 to vector<2x32xf32>
    %29 = arith.divf %27, %28 : vector<2x32xf32>
    %30 = arith.truncf %29 : vector<2x32xf32> to vector<2x32xbf16>
    %c0_12 = arith.constant 0 : index
    %c0_13 = arith.constant 0 : index
    %31 = vector.load %arg3[%c0_12, %c0_13] : memref<32x128xbf16, #tpu.memory_space<vmem>>, vector<32x128xbf16>
    %cst_14 = arith.constant dense<0.000000e+00> : vector<2x128xf32>
    %32 = tpu.matmul %30, %31, %cst_14 {dimension_numbers = #tpu.dot_dimension_numbers<[1], [0], [0], [1], [0, 0, 1, 1], [], []>} : vector<2x32xbf16>, vector<32x128xbf16>, vector<2x128xf32> -> vector<2x128xf32>
    %c0_15 = arith.constant 0 : index
    %c0_16 = arith.constant 0 : index
    %33 = vector.load %arg4[%c0_15, %c0_16] : memref<1x128xf32, #tpu.memory_space<vmem>>, vector<1x128xf32>
    %34 = vector.broadcast %33 : vector<1x128xf32> to vector<2x128xf32>
    %35 = arith.addf %32, %34 : vector<2x128xf32>
    %c0_17 = arith.constant 0 : index
    %c0_18 = arith.constant 0 : index
    %36 = vector.load %arg5[%c0_17, %c0_18] : memref<2x128xf32, #tpu.memory_space<vmem>>, vector<2x128xf32>
    tpu.vector_store %arg5[%c0_17, %c0_18], %35 {strides = array<i32>} : memref<2x128xf32, #tpu.memory_space<vmem>>, vector<2x128xf32>,
    return
  }
}

</mosaic_0001>

<llo_original>
// kernel: swin_forward.15
$region0: #{swin_forward.15}
  #allocation0 [shape = 'u32[]', space=smem, size = 0x4, offset = 0x4, fixed_abs, tag = 'smem constant byte address 0x4 - core index']
  #allocation1 [shape = 'u32[144,128]{1,0:T(1,128)}', space=vmem, size = 0x12000, scoped, tag = 'internal scratch']
  %s0 = inlined_call_operand.vmem [shape: f32[64,24], index: 0, kind: input, shape index: {}]
  %s1 = inlined_call_operand.vmem [shape: bf16[24,16], index: 1, kind: input, shape index: {}]
  %s2 = inlined_call_operand.vmem [shape: f32[1,16], index: 2, kind: input, shape index: {}]
  %s3 = inlined_call_operand.vmem [shape: f32[64,16], index: 3, kind: output, shape index: {}]
  %s4 = sld [smem:[#allocation0]]
  $region22: #{swin_forward.15} parent=0
    _
  %s6 = ssub.s32 1, %s4
  %s7 = scalar_select 0, %s6, %s4
  // Predicated region
  $region2: #{swin_forward.15} parent=0 // pred_check
    _
  $region3: #{swin_forward.15} parent=0 // pred_check_branch
    %9 = sbr.rel (0) target = $region5
  $region4: #{swin_forward.15} parent=0 // pred_region
    _
  $region5: #{swin_forward.15} parent=0 // pred_fallthru
    _
  // Predicated region
  $region6: #{swin_forward.15} parent=0 // pred_check
    _
  $region7: #{swin_forward.15} parent=0 // pred_check_branch
    %11 = sbr.rel (0) target = $region9
  $region8: #{swin_forward.15} parent=0 // pred_region
    _
  $region9: #{swin_forward.15} parent=0 // pred_fallthru
    _
  // Predicated region
  $region10: #{swin_forward.15} parent=0 // pred_check
    _
  $region11: #{swin_forward.15} parent=0 // pred_check_branch
    %13 = sbr.rel (0) target = $region13
  $region12: #{swin_forward.15} parent=0 // pred_region
    _
  $region13: #{swin_forward.15} parent=0 // pred_fallthru
    _
  %v15 = vld [vmem:[%s0] sm:$0xff]
  %v16 = vld [vmem:[%s0 + $0x8] sm:$0xff]
  %v17 = vld [vmem:[%s0 + $0x10] sm:$0xff]
  %v18 = vld [vmem:[%s0 + $0x18] sm:$0xff]
  %v19 = vld [vmem:[%s0 + $0x20] sm:$0xff]
  %v20 = vld [vmem:[%s0 + $0x28] sm:$0xff]
  %v21 = vld [vmem:[%s0 + $0x30] sm:$0xff]
  %v22 = vld [vmem:[%s0 + $0x38] sm:$0xff]
  %v23 = vpack.c.bf16 %v16, %v15
  %v24 = vpack.c.bf16 %v18, %v17
  %v25 = vpack.c.bf16 %v20, %v19
  %v26 = vpack.c.bf16 %v22, %v21
  %v27 = vld [vmem:[%s1] sm:$0xf]
  %v28 = vld [vmem:[%s1 + $0x4] sm:$0xf]
  %v29 = vld [vmem:[%s1 + $0x8] sm:$0xf]
  %v30 = vld [vmem:[%s2] sm:$0x1]
  %v32 = vlaneseq
  %v33 = vshrl.u32 %v32, 7
  %v34 = vsub.s32 0, %v33
  %v35 = vrot.slane %v30, %v34
  %v40 = vunpack.c.l.b16 %v27
  %v41 = vunpack.c.l.b16 %v28
  %v42 = vunpack.c.l.b16 %v29
  %v43 = vpack.c.b16 %v41, %v40
  %v44 = vpack.c.b16 %v42, %v42
  %vm46 = vcmask 195584
  %v48 = vsel %vm46, %v23, 0
  %v51 = vsel %vm46, %v24, 0
  %v54 = vsel %vm46, %v25, 0
  %v57 = vsel %vm46, %v26, 0
  %vm59 = vcmask 1043456
  %v61 = vsel %vm59, %v44, 0
  %63 = vmatprep.subr.bf16.mxu0 0
  %64 = vmatpush1.bf16.msra.mxu0 0
  %65 = vmatprep.subr.bf16.mxu0 0
  %66 = vmatpush1.bf16.msra.mxu0 0
  %67 = vmatprep.subr.bf16.mxu0 0
  %68 = vmatpush1.bf16.msra.mxu0 0
  %69 = vmatprep.subr.bf16.mxu0 0
  %70 = vmatpush1.bf16.msra.mxu0 0
  %71 = vmatprep.subr.bf16.mxu0 0
  %72 = vmatpush1.bf16.msra.mxu0 0
  %73 = vmatprep.subr.bf16.mxu0 0
  %74 = vmatpush1.bf16.msra.mxu0 0
  %75 = vmatprep.subr.bf16.mxu0 0
  %76 = vmatpush1.bf16.msra.mxu0 %v61
  %77 = vmatprep.subr.bf16.mxu0 0
  %78 = vmatpush1.bf16.msra.mxu0 %v43
  %79 = vmatprep.subr.bf16.mxu0 0
  %80 = vmatpush2.bf16.msra.mxu0 0
  %81 = vmatprep.subr.bf16.mxu0 0
  %82 = vmatpush2.bf16.msra.mxu0 0
  %83 = vmatprep.subr.bf16.mxu0 0
  %84 = vmatpush2.bf16.msra.mxu0 0
  %85 = vmatprep.subr.bf16.mxu0 0
  %86 = vmatpush2.bf16.msra.mxu0 0
  %87 = vmatprep.subr.bf16.mxu0 0
  %88 = vmatpush2.bf16.msra.mxu0 0
  %89 = vmatprep.subr.bf16.mxu0 0
  %90 = vmatpush2.bf16.msra.mxu0 0
  %91 = vmatprep.subr.bf16.mxu0 0
  %92 = vmatpush2.bf16.msra.mxu0 0
  %93 = vmatprep.subr.bf16.mxu0 0
  %94 = vmatpush2.bf16.msra.mxu0 0
  %95 = vmatprep.mubr.bf16.mxu0 0
  %96 = vmatmul.mubr.bf16.gmra.mxu0 %v48
  %v97 = vpop.f32.mrf.mxu0
  %v98 = vadd.f32 %v35, %v97
  %v99 = vpop.f32.mrf.mxu0
  %v100 = vpop.f32.mrf.mxu0
  %v101 = vadd.f32 %v35, %v100
  %v102 = vpop.f32.mrf.mxu0
  %103 = vmatprep.mubr.bf16.mxu0 0
  %104 = vmatmul.mubr.bf16.gmra.mxu0 %v51
  %v105 = vpop.f32.mrf.mxu0
  %v106 = vadd.f32 %v35, %v105
  %v107 = vpop.f32.mrf.mxu0
  %v108 = vpop.f32.mrf.mxu0
  %v109 = vadd.f32 %v35, %v108
  %v110 = vpop.f32.mrf.mxu0
  %111 = vmatprep.mubr.bf16.mxu0 0
  %112 = vmatmul.mubr.bf16.gmra.mxu0 %v54
  %v113 = vpop.f32.mrf.mxu0
  %v114 = vadd.f32 %v35, %v113
  %v115 = vpop.f32.mrf.mxu0
  %v116 = vpop.f32.mrf.mxu0
  %v117 = vadd.f32 %v35, %v116
  %v118 = vpop.f32.mrf.mxu0
  %119 = vmatprep.mubr.bf16.mxu0 0
  %120 = vmatmul.mubr.bf16.gmra.mxu0 %v57
  %v121 = vpop.f32.mrf.mxu0
  %v122 = vadd.f32 %v35, %v121
  %v123 = vpop.f32.mrf.mxu0
  %v124 = vpop.f32.mrf.mxu0
  %v125 = vadd.f32 %v35, %v124
  %v126 = vpop.f32.mrf.mxu0
  %127 = vdwg.mxu0
  %vm128 = vcmask 130048
  %129 = vst.msk [vmem:[%s3] sm:$0xff] %vm128, %v98
  %130 = vst.msk [vmem:[%s3 + $0x8] sm:$0xff] %vm128, %v101
  %131 = vst.msk [vmem:[%s3 + $0x10] sm:$0xff] %vm128, %v106
  %132 = vst.msk [vmem:[%s3 + $0x18] sm:$0xff] %vm128, %v109
  %133 = vst.msk [vmem:[%s3 + $0x20] sm:$0xff] %vm128, %v114
  %134 = vst.msk [vmem:[%s3 + $0x28] sm:$0xff] %vm128, %v117
  %135 = vst.msk [vmem:[%s3 + $0x30] sm:$0xff] %vm128, %v122
  %136 = vst.msk [vmem:[%s3 + $0x38] sm:$0xff] %vm128, %v125
  // Predicated region
  $region14: #{swin_forward.15} parent=0 // pred_check
    _
  $region15: #{swin_forward.15} parent=0 // pred_check_branch
    %138 = sbr.rel (0) target = $region17
  $region16: #{swin_forward.15} parent=0 // pred_region
    _
  $region17: #{swin_forward.15} parent=0 // pred_fallthru
    _
  // Predicated region
  $region18: #{swin_forward.15} parent=0 // pred_check
    _
  $region19: #{swin_forward.15} parent=0 // pred_check_branch
    %140 = sbr.rel (0) target = $region21
  $region20: #{swin_forward.15} parent=0 // pred_region
    _
  $region21: #{swin_forward.15} parent=0 // pred_fallthru
    _

// kernel: swin_forward.16
$region0: #{swin_forward.16}
  #allocation0 [shape = 'u32[]', space=smem, size = 0x4, offset = 0x4, fixed_abs, tag = 'smem constant byte address 0x4 - core index']
  #allocation1 [shape = 'u32[144,128]{1,0:T(1,128)}', space=vmem, size = 0x12000, scoped, tag = 'internal scratch']
  %s0 = inlined_call_operand.vmem [shape: f32[64,16], index: 0, kind: input, shape index: {}]
  %s1 = inlined_call_operand.vmem [shape: f32[1,16], index: 1, kind: input, shape index: {}]
  %s2 = inlined_call_operand.vmem [shape: f32[1,16], index: 2, kind: input, shape index: {}]
  %s3 = inlined_call_operand.vmem [shape: bf16[16,48], index: 3, kind: input, shape index: {}]
  %s4 = inlined_call_operand.vmem [shape: f32[1,48], index: 4, kind: input, shape index: {}]
  %s5 = inlined_call_operand.vmem [shape: bf16[64,48], index: 5, kind: output, shape index: {}]
  %s6 = sld [smem:[#allocation0]]
  $region30: #{swin_forward.16} parent=0
    _
  %s8 = ssub.s32 1, %s6
  %s9 = scalar_select 0, %s8, %s6
  // Predicated region
  $region2: #{swin_forward.16} parent=0 // pred_check
    _
  $region3: #{swin_forward.16} parent=0 // pred_check_branch
    %11 = sbr.rel (0) target = $region5
  $region4: #{swin_forward.16} parent=0 // pred_region
    _
  $region5: #{swin_forward.16} parent=0 // pred_fallthru
    _
  // Predicated region
  $region6: #{swin_forward.16} parent=0 // pred_check
    _
  $region7: #{swin_forward.16} parent=0 // pred_check_branch
    %13 = sbr.rel (0) target = $region9
  $region8: #{swin_forward.16} parent=0 // pred_region
    _
  $region9: #{swin_forward.16} parent=0 // pred_fallthru
    _
  // Predicated region
  $region10: #{swin_forward.16} parent=0 // pred_check
    _
  $region11: #{swin_forward.16} parent=0 // pred_check_branch
    %15 = sbr.rel (0) target = $region13
  $region12: #{swin_forward.16} parent=0 // pred_region
    _
  $region13: #{swin_forward.16} parent=0 // pred_fallthru
    _
  // Predicated region
  $region14: #{swin_forward.16} parent=0 // pred_check
    _
  $region15: #{swin_forward.16} parent=0 // pred_check_branch
    %17 = sbr.rel (0) target = $region17
  $region16: #{swin_forward.16} parent=0 // pred_region
    _
  $region17: #{swin_forward.16} parent=0 // pred_fallthru
    _
  // Predicated region
  $region18: #{swin_forward.16} parent=0 // pred_check
    _
  $region19: #{swin_forward.16} parent=0 // pred_check_branch
    %19 = sbr.rel (0) target = $region21
  $region20: #{swin_forward.16} parent=0 // pred_region
    _
  $region21: #{swin_forward.16} parent=0 // pred_fallthru
    _
  %v21 = vld [vmem:[%s0] sm:$0xff]
  %v22 = vld [vmem:[%s0 + $0x8] sm:$0xff]
  %v23 = vld [vmem:[%s0 + $0x10] sm:$0xff]
  %v24 = vld [vmem:[%s0 + $0x18] sm:$0xff]
  %v25 = vld [vmem:[%s0 + $0x20] sm:$0xff]
  %v26 = vld [vmem:[%s0 + $0x28] sm:$0xff]
  %v27 = vld [vmem:[%s0 + $0x30] sm:$0xff]
  %v28 = vld [vmem:[%s0 + $0x38] sm:$0xff]
  %v29 = vld [vmem:[%s1] sm:$0x1]
  %v30 = vld [vmem:[%s2] sm:$0x1]
  %vm31 = vcmask 130048
  %v32 = vsel %vm31, %v21, 0.0
  %33 = vadd.xlane.f32.xlu0 %v32
  %v34 = vpop.xlane.xlu0 %33
  %v35 = vsel %vm31, %v22, 0.0
  %36 = vadd.xlane.f32.xlu0 %v35
  %v37 = vpop.xlane.xlu0 %36
  %v38 = vsel %vm31, %v23, 0.0
  %39 = vadd.xlane.f32.xlu0 %v38
  %v40 = vpop.xlane.xlu0 %39
  %v41 = vsel %vm31, %v24, 0.0
  %42 = vadd.xlane.f32.xlu0 %v41
  %v43 = vpop.xlane.xlu0 %42
  %v44 = vsel %vm31, %v25, 0.0
  %45 = vadd.xlane.f32.xlu0 %v44
  %v46 = vpop.xlane.xlu0 %45
  %v47 = vsel %vm31, %v26, 0.0
  %48 = vadd.xlane.f32.xlu0 %v47
  %v49 = vpop.xlane.xlu0 %48
  %v50 = vsel %vm31, %v27, 0.0
  %51 = vadd.xlane.f32.xlu0 %v50
  %v52 = vpop.xlane.xlu0 %51
  %v53 = vsel %vm31, %v28, 0.0
  %54 = vadd.xlane.f32.xlu0 %v53
  %v55 = vpop.xlane.xlu0 %54
  %v56 = vrcp.pop 16.0
  %v57 = vmul.f32 %v34, %v56
  %v58 = vmul.f32 %v37, %v56
  %v59 = vmul.f32 %v40, %v56
  %v60 = vmul.f32 %v43, %v56
  %v61 = vmul.f32 %v46, %v56
  %v62 = vmul.f32 %v49, %v56
  %v63 = vmul.f32 %v52, %v56
  %v64 = vmul.f32 %v55, %v56
  %v65 = vsub.f32 %v21, %v57
  %v66 = vsub.f32 %v22, %v58
  %v67 = vsub.f32 %v23, %v59
  %v68 = vsub.f32 %v24, %v60
  %v69 = vsub.f32 %v25, %v61
  %v70 = vsub.f32 %v26, %v62
  %v71 = vsub.f32 %v27, %v63
  %v72 = vsub.f32 %v28, %v64
  %v73 = vmul.f32 %v65, %v65
  %v74 = vmul.f32 %v66, %v66
  %v75 = vmul.f32 %v67, %v67
  %v76 = vmul.f32 %v68, %v68
  %v77 = vmul.f32 %v69, %v69
  %v78 = vmul.f32 %v70, %v70
  %v79 = vmul.f32 %v71, %v71
  %v80 = vmul.f32 %v72, %v72
  %v81 = vsel %vm31, %v73, 0.0
  %82 = vadd.xlane.f32.xlu0 %v81
  %v83 = vpop.xlane.xlu0 %82
  %v84 = vsel %vm31, %v74, 0.0
  %85 = vadd.xlane.f32.xlu0 %v84
  %v86 = vpop.xlane.xlu0 %85
  %v87 = vsel %vm31, %v75, 0.0
  %88 = vadd.xlane.f32.xlu0 %v87
  %v89 = vpop.xlane.xlu0 %88
  %v90 = vsel %vm31, %v76, 0.0
  %91 = vadd.xlane.f32.xlu0 %v90
  %v92 = vpop.xlane.xlu0 %91
  %v93 = vsel %vm31, %v77, 0.0
  %94 = vadd.xlane.f32.xlu0 %v93
  %v95 = vpop.xlane.xlu0 %94
  %v96 = vsel %vm31, %v78, 0.0
  %97 = vadd.xlane.f32.xlu0 %v96
  %v98 = vpop.xlane.xlu0 %97
  %v99 = vsel %vm31, %v79, 0.0
  %100 = vadd.xlane.f32.xlu0 %v99
  %v101 = vpop.xlane.xlu0 %100
  %v102 = vsel %vm31, %v80, 0.0
  %103 = vadd.xlane.f32.xlu0 %v102
  %v104 = vpop.xlane.xlu0 %103
  %v105 = vmul.f32 %v83, %v56
  %v106 = vmul.f32 %v86, %v56
  %v107 = vmul.f32 %v89, %v56
  %v108 = vmul.f32 %v92, %v56
  %v109 = vmul.f32 %v95, %v56
  %v110 = vmul.f32 %v98, %v56
  %v111 = vmul.f32 %v101, %v56
  %v112 = vmul.f32 %v104, %v56
  %v113 = vadd.f32 %v105, 1e-05
  %v114 = vadd.f32 %v106, 1e-05
  %v115 = vadd.f32 %v107, 1e-05
  %v116 = vadd.f32 %v108, 1e-05
  %v117 = vadd.f32 %v109, 1e-05
  %v118 = vadd.f32 %v110, 1e-05
  %v119 = vadd.f32 %v111, 1e-05
  %v120 = vadd.f32 %v112, 1e-05
  %v121 = vrsqrt.pop %v113
  %v122 = vrsqrt.pop %v114
  %v123 = vrsqrt.pop %v115
  %v124 = vrsqrt.pop %v116
  %v125 = vrsqrt.pop %v117
  %v126 = vrsqrt.pop %v118
  %v127 = vrsqrt.pop %v119
  %v128 = vrsqrt.pop %v120
  %v129 = vmul.f32 %v65, %v121
  %v130 = vmul.f32 %v66, %v122
  %v131 = vmul.f32 %v67, %v123
  %v132 = vmul.f32 %v68, %v124
  %v133 = vmul.f32 %v69, %v125
  %v134 = vmul.f32 %v70, %v126
  %v135 = vmul.f32 %v71, %v127
  %v136 = vmul.f32 %v72, %v128
  %v138 = vlaneseq
  %v139 = vshrl.u32 %v138, 7
  %v140 = vsub.s32 0, %v139
  %v141 = vrot.slane %v29, %v140
  %v143 = vmul.f32 %v129, %v141
  %v144 = vmul.f32 %v130, %v141
  %v145 = vmul.f32 %v131, %v141
  %v146 = vmul.f32 %v132, %v141
  %v147 = vmul.f32 %v133, %v141
  %v148 = vmul.f32 %v134, %v141
  %v149 = vmul.f32 %v135, %v141
  %v150 = vmul.f32 %v136, %v141
  %v152 = vlaneseq
  %v153 = vshrl.u32 %v152, 7
  %v154 = vsub.s32 0, %v153
  %v155 = vrot.slane %v30, %v154
  %v157 = vadd.f32 %v143, %v155
  %v158 = vadd.f32 %v144, %v155
  %v159 = vadd.f32 %v145, %v155
  %v160 = vadd.f32 %v146, %v155
  %v161 = vadd.f32 %v147, %v155
  %v162 = vadd.f32 %v148, %v155
  %v163 = vadd.f32 %v149, %v155
  %v164 = vadd.f32 %v150, %v155
  %v165 = vpack.c.bf16 %v158, %v157
  %v166 = vpack.c.bf16 %v160, %v159
  %v167 = vpack.c.bf16 %v162, %v161
  %v168 = vpack.c.bf16 %v164, %v163
  %v169 = vld [vmem:[%s3] sm:$0xf]
  %v170 = vld [vmem:[%s3 + $0x4] sm:$0xf]
  %v171 = vld [vmem:[%s4] sm:$0x1]
  %v173 = vlaneseq
  %v174 = vshrl.u32 %v173, 7
  %v175 = vsub.s32 0, %v174
  %v176 = vrot.slane %v171, %v175
  %v180 = vunpack.c.l.b16 %v169
  %v181 = vunpack.c.l.b16 %v170
  %v182 = vpack.c.b16 %v181, %v180
  %v185 = vsel %vm31, %v165, 0
  %v188 = vsel %vm31, %v166, 0
  %v191 = vsel %vm31, %v167, 0
  %v194 = vsel %vm31, %v168, 0
  %196 = vmatprep.subr.bf16.mxu0 0
  %197 = vmatpush1.bf16.msra.mxu0 0
  %198 = vmatprep.subr.bf16.mxu0 0
  %199 = vmatpush1.bf16.msra.mxu0 0
  %200 = vmatprep.subr.bf16.mxu0 0
  %201 = vmatpush1.bf16.msra.mxu0 0
  %202 = vmatprep.subr.bf16.mxu0 0
  %203 = vmatpush1.bf16.msra.mxu0 0
  %204 = vmatprep.subr.bf16.mxu0 0
  %205 = vmatpush1.bf16.msra.mxu0 0
  %206 = vmatprep.subr.bf16.mxu0 0
  %207 = vmatpush1.bf16.msra.mxu0 0
  %208 = vmatprep.subr.bf16.mxu0 0
  %209 = vmatpush1.bf16.msra.mxu0 0
  %210 = vmatprep.subr.bf16.mxu0 0
  %211 = vmatpush1.bf16.msra.mxu0 %v182
  %212 = vmatprep.subr.bf16.mxu0 0
  %213 = vmatpush2.bf16.msra.mxu0 0
  %214 = vmatprep.subr.bf16.mxu0 0
  %215 = vmatpush2.bf16.msra.mxu0 0
  %216 = vmatprep.subr.bf16.mxu0 0
  %217 = vmatpush2.bf16.msra.mxu0 0
  %218 = vmatprep.subr.bf16.mxu0 0
  %219 = vmatpush2.bf16.msra.mxu0 0
  %220 = vmatprep.subr.bf16.mxu0 0
  %221 = vmatpush2.bf16.msra.mxu0 0
  %222 = vmatprep.subr.bf16.mxu0 0
  %223 = vmatpush2.bf16.msra.mxu0 0
  %224 = vmatprep.subr.bf16.mxu0 0
  %225 = vmatpush2.bf16.msra.mxu0 0
  %226 = vmatprep.subr.bf16.mxu0 0
  %227 = vmatpush2.bf16.msra.mxu0 0
  %228 = vmatprep.mubr.bf16.mxu0 0
  %229 = vmatmul.mubr.bf16.gmra.mxu0 %v185
  %v230 = vpop.f32.mrf.mxu0
  %v231 = vadd.f32 %v176, %v230
  %v232 = vpop.f32.mrf.mxu0
  %v233 = vpop.f32.mrf.mxu0
  %v234 = vadd.f32 %v176, %v233
  %v235 = vpop.f32.mrf.mxu0
  %236 = vmatprep.mubr.bf16.mxu0 0
  %237 = vmatmul.mubr.bf16.gmra.mxu0 %v188
  %v238 = vpop.f32.mrf.mxu0
  %v239 = vadd.f32 %v176, %v238
  %v240 = vpop.f32.mrf.mxu0
  %v241 = vpop.f32.mrf.mxu0
  %v242 = vadd.f32 %v176, %v241
  %v243 = vpop.f32.mrf.mxu0
  %244 = vmatprep.mubr.bf16.mxu0 0
  %245 = vmatmul.mubr.bf16.gmra.mxu0 %v191
  %v246 = vpop.f32.mrf.mxu0
  %v247 = vadd.f32 %v176, %v246
  %v248 = vpop.f32.mrf.mxu0
  %v249 = vpop.f32.mrf.mxu0
  %v250 = vadd.f32 %v176, %v249
  %v251 = vpop.f32.mrf.mxu0
  %252 = vmatprep.mubr.bf16.mxu0 0
  %253 = vmatmul.mubr.bf16.gmra.mxu0 %v194
  %v254 = vpop.f32.mrf.mxu0
  %v255 = vadd.f32 %v176, %v254
  %v256 = vpop.f32.mrf.mxu0
  %v257 = vpop.f32.mrf.mxu0
  %v258 = vadd.f32 %v176, %v257
  %v259 = vpop.f32.mrf.mxu0
  %260 = vdwg.mxu0
  %v261 = vpack.c.bf16 %v234, %v231
  %v262 = vpack.c.bf16 %v242, %v239
  %v263 = vpack.c.bf16 %v250, %v247
  %v264 = vpack.c.bf16 %v258, %v255
  %v269 = vunpack.c.l.b16 %v261
  %v270 = vunpack.c.h.b16 %v261
  %v271 = vunpack.c.l.b16 %v262
  %v272 = vunpack.c.h.b16 %v262
  %v273 = vunpack.c.l.b16 %v263
  %v274 = vunpack.c.h.b16 %v263
  %v275 = vunpack.c.l.b16 %v264
  %v276 = vunpack.c.h.b16 %v264
  %v277 = vpack.c.b16 %v269, %v269
  %v278 = vpack.c.b16 %v270, %v270
  %v279 = vpack.c.b16 %v271, %v271
  %v280 = vpack.c.b16 %v272, %v272
  %v281 = vpack.c.b16 %v273, %v273
  %v282 = vpack.c.b16 %v274, %v274
  %v283 = vpack.c.b16 %v275, %v275
  %v284 = vpack.c.b16 %v276, %v276
  %vm293 = vcmask 388096
  %294 = vst.msk [vmem:[%s5] sm:$0xf] %vm293, %v277
  %295 = vst.msk [vmem:[%s5 + $0x4] sm:$0xf] %vm293, %v278
  %296 = vst.msk [vmem:[%s5 + $0x8] sm:$0xf] %vm293, %v279
  %297 = vst.msk [vmem:[%s5 + $0xc] sm:$0xf] %vm293, %v280
  %298 = vst.msk [vmem:[%s5 + $0x10] sm:$0xf] %vm293, %v281
  %299 = vst.msk [vmem:[%s5 + $0x14] sm:$0xf] %vm293, %v282
  %300 = vst.msk [vmem:[%s5 + $0x18] sm:$0xf] %vm293, %v283
  %301 = vst.msk [vmem:[%s5 + $0x1c] sm:$0xf] %vm293, %v284
  // Predicated region
  $region22: #{swin_forward.16} parent=0 // pred_check
    _
  $region23: #{swin_forward.16} parent=0 // pred_check_branch
    %303 = sbr.rel (0) target = $region25
  $region24: #{swin_forward.16} parent=0 // pred_region
    _
  $region25: #{swin_forward.16} parent=0 // pred_fallthru
    _
  // Predicated region
  $region26: #{swin_forward.16} parent=0 // pred_check
    _
  $region27: #{swin_forward.16} parent=0 // pred_check_branch
    %305 = sbr.rel (0) target = $region29
  $region28: #{swin_forward.16} parent=0 // pred_region
    _
  $region29: #{swin_forward.16} parent=0 // pred_fallthru
    _

// kernel: swin_forward.18
$region0: #{swin_forward.18}
  #allocation0 [shape = 'u32[]', space=smem, size = 0x4, offset = 0x4, fixed_abs, tag = 'smem constant byte address 0x4 - core index']
  #allocation1 [shape = 'u32[144,128]{1,0:T(1,128)}', space=vmem, size = 0x12000, scoped, tag = 'internal scratch']
  %s0 = inlined_call_operand.vmem [shape: f32[64,16], index: 0, kind: input, shape index: {}]
  %s1 = inlined_call_operand.vmem [shape: bf16[64,16], index: 1, kind: input, shape index: {}]
  %s2 = inlined_call_operand.vmem [shape: f32[1,16], index: 2, kind: input, shape index: {}]
  %s3 = inlined_call_operand.vmem [shape: f32[1,16], index: 3, kind: input, shape index: {}]
  %s4 = inlined_call_operand.vmem [shape: bf16[16,64], index: 4, kind: input, shape index: {}]
  %s5 = inlined_call_operand.vmem [shape: f32[1,64], index: 5, kind: input, shape index: {}]
  %s6 = inlined_call_operand.vmem [shape: bf16[64,16], index: 6, kind: input, shape index: {}]
  %s7 = inlined_call_operand.vmem [shape: f32[1,16], index: 7, kind: input, shape index: {}]
  %s8 = inlined_call_operand.vmem [shape: f32[64,16], index: 8, kind: output, shape index: {}]
  %s9 = sld [smem:[#allocation0]]
  $region42: #{swin_forward.18} parent=0
    _
  %s11 = ssub.s32 1, %s9
  %s12 = scalar_select 0, %s11, %s9
  // Predicated region
  $region2: #{swin_forward.18} parent=0 // pred_check
    _
  $region3: #{swin_forward.18} parent=0 // pred_check_branch
    %14 = sbr.rel (0) target = $region5
  $region4: #{swin_forward.18} parent=0 // pred_region
    _
  $region5: #{swin_forward.18} parent=0 // pred_fallthru
    _
  // Predicated region
  $region6: #{swin_forward.18} parent=0 // pred_check
    _
  $region7: #{swin_forward.18} parent=0 // pred_check_branch
    %16 = sbr.rel (0) target = $region9
  $region8: #{swin_forward.18} parent=0 // pred_region
    _
  $region9: #{swin_forward.18} parent=0 // pred_fallthru
    _
  // Predicated region
  $region10: #{swin_forward.18} parent=0 // pred_check
    _
  $region11: #{swin_forward.18} parent=0 // pred_check_branch
    %18 = sbr.rel (0) target = $region13
  $region12: #{swin_forward.18} parent=0 // pred_region
    _
  $region13: #{swin_forward.18} parent=0 // pred_fallthru
    _
  // Predicated region
  $region14: #{swin_forward.18} parent=0 // pred_check
    _
  $region15: #{swin_forward.18} parent=0 // pred_check_branch
    %20 = sbr.rel (0) target = $region17
  $region16: #{swin_forward.18} parent=0 // pred_region
    _
  $region17: #{swin_forward.18} parent=0 // pred_fallthru
    _
  // Predicated region
  $region18: #{swin_forward.18} parent=0 // pred_check
    _
  $region19: #{swin_forward.18} parent=0 // pred_check_branch
    %22 = sbr.rel (0) target = $region21
  $region20: #{swin_forward.18} parent=0 // pred_region
    _
  $region21: #{swin_forward.18} parent=0 // pred_fallthru
    _
  // Predicated region
  $region22: #{swin_forward.18} parent=0 // pred_check
    _
  $region23: #{swin_forward.18} parent=0 // pred_check_branch
    %24 = sbr.rel (0) target = $region25
  $region24: #{swin_forward.18} parent=0 // pred_region
    _
  $region25: #{swin_forward.18} parent=0 // pred_fallthru
    _
  // Predicated region
  $region26: #{swin_forward.18} parent=0 // pred_check
    _
  $region27: #{swin_forward.18} parent=0 // pred_check_branch
    %26 = sbr.rel (0) target = $region29
  $region28: #{swin_forward.18} parent=0 // pred_region
    _
  $region29: #{swin_forward.18} parent=0 // pred_fallthru
    _
  // Predicated region
  $region30: #{swin_forward.18} parent=0 // pred_check
    _
  $region31: #{swin_forward.18} parent=0 // pred_check_branch
    %28 = sbr.rel (0) target = $region33
  $region32: #{swin_forward.18} parent=0 // pred_region
    _
  $region33: #{swin_forward.18} parent=0 // pred_fallthru
    _
  %v30 = vld [vmem:[%s0] sm:$0xff]
  %v31 = vld [vmem:[%s0 + $0x8] sm:$0xff]
  %v32 = vld [vmem:[%s0 + $0x10] sm:$0xff]
  %v33 = vld [vmem:[%s0 + $0x18] sm:$0xff]
  %v34 = vld [vmem:[%s0 + $0x20] sm:$0xff]
  %v35 = vld [vmem:[%s0 + $0x28] sm:$0xff]
  %v36 = vld [vmem:[%s0 + $0x30] sm:$0xff]
  %v37 = vld [vmem:[%s0 + $0x38] sm:$0xff]
  %v38 = vld [vmem:[%s1] sm:$0xf]
  %v39 = vld [vmem:[%s1 + $0x4] sm:$0xf]
  %v40 = vld [vmem:[%s1 + $0x8] sm:$0xf]
  %v41 = vld [vmem:[%s1 + $0xc] sm:$0xf]
  %v42 = vld [vmem:[%s1 + $0x10] sm:$0xf]
  %v43 = vld [vmem:[%s1 + $0x14] sm:$0xf]
  %v44 = vld [vmem:[%s1 + $0x18] sm:$0xf]
  %v45 = vld [vmem:[%s1 + $0x1c] sm:$0xf]
  %v46 = vunpack.c.l.bf16 %v38
  %v47 = vunpack.c.l.bf16 %v39
  %v48 = vunpack.c.l.bf16 %v40
  %v49 = vunpack.c.l.bf16 %v41
  %v50 = vunpack.c.l.bf16 %v42
  %v51 = vunpack.c.l.bf16 %v43
  %v52 = vunpack.c.l.bf16 %v44
  %v53 = vunpack.c.l.bf16 %v45
  %v54 = vadd.f32 %v30, %v46
  %v55 = vadd.f32 %v31, %v47
  %v56 = vadd.f32 %v32, %v48
  %v57 = vadd.f32 %v33, %v49
  %v58 = vadd.f32 %v34, %v50
  %v59 = vadd.f32 %v35, %v51
  %v60 = vadd.f32 %v36, %v52
  %v61 = vadd.f32 %v37, %v53
  %v62 = vld [vmem:[%s2] sm:$0x1]
  %v63 = vld [vmem:[%s3] sm:$0x1]
  %vm64 = vcmask 130048
  %v65 = vsel %vm64, %v54, 0.0
  %66 = vadd.xlane.f32.xlu0 %v65
  %v67 = vpop.xlane.xlu0 %66
  %v68 = vsel %vm64, %v55, 0.0
  %69 = vadd.xlane.f32.xlu0 %v68
  %v70 = vpop.xlane.xlu0 %69
  %v71 = vsel %vm64, %v56, 0.0
  %72 = vadd.xlane.f32.xlu0 %v71
  %v73 = vpop.xlane.xlu0 %72
  %v74 = vsel %vm64, %v57, 0.0
  %75 = vadd.xlane.f32.xlu0 %v74
  %v76 = vpop.xlane.xlu0 %75
  %v77 = vsel %vm64, %v58, 0.0
  %78 = vadd.xlane.f32.xlu0 %v77
  %v79 = vpop.xlane.xlu0 %78
  %v80 = vsel %vm64, %v59, 0.0
  %81 = vadd.xlane.f32.xlu0 %v80
  %v82 = vpop.xlane.xlu0 %81
  %v83 = vsel %vm64, %v60, 0.0
  %84 = vadd.xlane.f32.xlu0 %v83
  %v85 = vpop.xlane.xlu0 %84
  %v86 = vsel %vm64, %v61, 0.0
  %87 = vadd.xlane.f32.xlu0 %v86
  %v88 = vpop.xlane.xlu0 %87
  %v89 = vrcp.pop 16.0
  %v90 = vmul.f32 %v67, %v89
  %v91 = vmul.f32 %v70, %v89
  %v92 = vmul.f32 %v73, %v89
  %v93 = vmul.f32 %v76, %v89
  %v94 = vmul.f32 %v79, %v89
  %v95 = vmul.f32 %v82, %v89
  %v96 = vmul.f32 %v85, %v89
  %v97 = vmul.f32 %v88, %v89
  %v98 = vsub.f32 %v54, %v90
  %v99 = vsub.f32 %v55, %v91
  %v100 = vsub.f32 %v56, %v92
  %v101 = vsub.f32 %v57, %v93
  %v102 = vsub.f32 %v58, %v94
  %v103 = vsub.f32 %v59, %v95
  %v104 = vsub.f32 %v60, %v96
  %v105 = vsub.f32 %v61, %v97
  %v106 = vmul.f32 %v98, %v98
  %v107 = vmul.f32 %v99, %v99
  %v108 = vmul.f32 %v100, %v100
  %v109 = vmul.f32 %v101, %v101
  %v110 = vmul.f32 %v102, %v102
  %v111 = vmul.f32 %v103, %v103
  %v112 = vmul.f32 %v104, %v104
  %v113 = vmul.f32 %v105, %v105
  %v114 = vsel %vm64, %v106, 0.0
  %115 = vadd.xlane.f32.xlu0 %v114
  %v116 = vpop.xlane.xlu0 %115
  %v117 = vsel %vm64, %v107, 0.0
  %118 = vadd.xlane.f32.xlu0 %v117
  %v119 = vpop.xlane.xlu0 %118
  %v120 = vsel %vm64, %v108, 0.0
  %121 = vadd.xlane.f32.xlu0 %v120
  %v122 = vpop.xlane.xlu0 %121
  %v123 = vsel %vm64, %v109, 0.0
  %124 = vadd.xlane.f32.xlu0 %v123
  %v125 = vpop.xlane.xlu0 %124
  %v126 = vsel %vm64, %v110, 0.0
  %127 = vadd.xlane.f32.xlu0 %v126
  %v128 = vpop.xlane.xlu0 %127
  %v129 = vsel %vm64, %v111, 0.0
  %130 = vadd.xlane.f32.xlu0 %v129
  %v131 = vpop.xlane.xlu0 %130
  %v132 = vsel %vm64, %v112, 0.0
  %133 = vadd.xlane.f32.xlu0 %v132
  %v134 = vpop.xlane.xlu0 %133
  %v135 = vsel %vm64, %v113, 0.0
  %136 = vadd.xlane.f32.xlu0 %v135
  %v137 = vpop.xlane.xlu0 %136
  %v138 = vmul.f32 %v116, %v89
  %v139 = vmul.f32 %v119, %v89
  %v140 = vmul.f32 %v122, %v89
  %v141 = vmul.f32 %v125, %v89
  %v142 = vmul.f32 %v128, %v89
  %v143 = vmul.f32 %v131, %v89
  %v144 = vmul.f32 %v134, %v89
  %v145 = vmul.f32 %v137, %v89
  %v146 = vadd.f32 %v138, 1e-05
  %v147 = vadd.f32 %v139, 1e-05
  %v148 = vadd.f32 %v140, 1e-05
  %v149 = vadd.f32 %v141, 1e-05
  %v150 = vadd.f32 %v142, 1e-05
  %v151 = vadd.f32 %v143, 1e-05
  %v152 = vadd.f32 %v144, 1e-05
  %v153 = vadd.f32 %v145, 1e-05
  %v154 = vrsqrt.pop %v146
  %v155 = vrsqrt.pop %v147
  %v156 = vrsqrt.pop %v148
  %v157 = vrsqrt.pop %v149
  %v158 = vrsqrt.pop %v150
  %v159 = vrsqrt.pop %v151
  %v160 = vrsqrt.pop %v152
  %v161 = vrsqrt.pop %v153
  %v162 = vmul.f32 %v98, %v154
  %v163 = vmul.f32 %v99, %v155
  %v164 = vmul.f32 %v100, %v156
  %v165 = vmul.f32 %v101, %v157
  %v166 = vmul.f32 %v102, %v158
  %v167 = vmul.f32 %v103, %v159
  %v168 = vmul.f32 %v104, %v160
  %v169 = vmul.f32 %v105, %v161
  %v171 = vlaneseq
  %v172 = vshrl.u32 %v171, 7
  %v173 = vsub.s32 0, %v172
  %v174 = vrot.slane %v62, %v173
  %v176 = vmul.f32 %v162, %v174
  %v177 = vmul.f32 %v163, %v174
  %v178 = vmul.f32 %v164, %v174
  %v179 = vmul.f32 %v165, %v174
  %v180 = vmul.f32 %v166, %v174
  %v181 = vmul.f32 %v167, %v174
  %v182 = vmul.f32 %v168, %v174
  %v183 = vmul.f32 %v169, %v174
  %v185 = vlaneseq
  %v186 = vshrl.u32 %v185, 7
  %v187 = vsub.s32 0, %v186
  %v188 = vrot.slane %v63, %v187
  %v190 = vadd.f32 %v176, %v188
  %v191 = vadd.f32 %v177, %v188
  %v192 = vadd.f32 %v178, %v188
  %v193 = vadd.f32 %v179, %v188
  %v194 = vadd.f32 %v180, %v188
  %v195 = vadd.f32 %v181, %v188
  %v196 = vadd.f32 %v182, %v188
  %v197 = vadd.f32 %v183, %v188
  %v198 = vpack.c.bf16 %v191, %v190
  %v199 = vpack.c.bf16 %v193, %v192
  %v200 = vpack.c.bf16 %v195, %v194
  %v201 = vpack.c.bf16 %v197, %v196
  %v202 = vld [vmem:[%s4] sm:$0xf]
  %v203 = vld [vmem:[%s4 + $0x4] sm:$0xf]
  %v204 = vld [vmem:[%s5] sm:$0x1]
  %v206 = vlaneseq
  %v207 = vshrl.u32 %v206, 7
  %v208 = vsub.s32 0, %v207
  %v209 = vrot.slane %v204, %v208
  %v213 = vunpack.c.l.b16 %v202
  %v214 = vunpack.c.l.b16 %v203
  %v215 = vpack.c.b16 %v214, %v213
  %v218 = vsel %vm64, %v198, 0
  %v221 = vsel %vm64, %v199, 0
  %v224 = vsel %vm64, %v200, 0
  %v227 = vsel %vm64, %v201, 0
  %229 = vmatprep.subr.bf16.mxu0 0
  %230 = vmatpush1.bf16.msra.mxu0 0
  %231 = vmatprep.subr.bf16.mxu0 0
  %232 = vmatpush1.bf16.msra.mxu0 0
  %233 = vmatprep.subr.bf16.mxu0 0
  %234 = vmatpush1.bf16.msra.mxu0 0
  %235 = vmatprep.subr.bf16.mxu0 0
  %236 = vmatpush1.bf16.msra.mxu0 0
  %237 = vmatprep.subr.bf16.mxu0 0
  %238 = vmatpush1.bf16.msra.mxu0 0
  %239 = vmatprep.subr.bf16.mxu0 0
  %240 = vmatpush1.bf16.msra.mxu0 0
  %241 = vmatprep.subr.bf16.mxu0 0
  %242 = vmatpush1.bf16.msra.mxu0 0
  %243 = vmatprep.subr.bf16.mxu0 0
  %244 = vmatpush1.bf16.msra.mxu0 %v215
  %245 = vmatprep.subr.bf16.mxu0 0
  %246 = vmatpush2.bf16.msra.mxu0 0
  %247 = vmatprep.subr.bf16.mxu0 0
  %248 = vmatpush2.bf16.msra.mxu0 0
  %249 = vmatprep.subr.bf16.mxu0 0
  %250 = vmatpush2.bf16.msra.mxu0 0
  %251 = vmatprep.subr.bf16.mxu0 0
  %252 = vmatpush2.bf16.msra.mxu0 0
  %253 = vmatprep.subr.bf16.mxu0 0
  %254 = vmatpush2.bf16.msra.mxu0 0
  %255 = vmatprep.subr.bf16.mxu0 0
  %256 = vmatpush2.bf16.msra.mxu0 0
  %257 = vmatprep.subr.bf16.mxu0 0
  %258 = vmatpush2.bf16.msra.mxu0 0
  %259 = vmatprep.subr.bf16.mxu0 0
  %260 = vmatpush2.bf16.msra.mxu0 0
  %261 = vmatprep.mubr.bf16.mxu0 0
  %262 = vmatmul.mubr.bf16.gmra.mxu0 %v218
  %v263 = vpop.f32.mrf.mxu0
  %v264 = vadd.f32 %v209, %v263
  %v265 = vpop.f32.mrf.mxu0
  %v266 = vpop.f32.mrf.mxu0
  %v267 = vadd.f32 %v209, %v266
  %v268 = vpop.f32.mrf.mxu0
  %269 = vmatprep.mubr.bf16.mxu0 0
  %270 = vmatmul.mubr.bf16.gmra.mxu0 %v221
  %v271 = vpop.f32.mrf.mxu0
  %v272 = vadd.f32 %v209, %v271
  %v273 = vpop.f32.mrf.mxu0
  %v274 = vpop.f32.mrf.mxu0
  %v275 = vadd.f32 %v209, %v274
  %v276 = vpop.f32.mrf.mxu0
  %277 = vmatprep.mubr.bf16.mxu0 0
  %278 = vmatmul.mubr.bf16.gmra.mxu0 %v224
  %v279 = vpop.f32.mrf.mxu0
  %v280 = vadd.f32 %v209, %v279
  %v281 = vpop.f32.mrf.mxu0
  %v282 = vpop.f32.mrf.mxu0
  %v283 = vadd.f32 %v209, %v282
  %v284 = vpop.f32.mrf.mxu0
  %285 = vmatprep.mubr.bf16.mxu0 0
  %286 = vmatmul.mubr.bf16.gmra.mxu0 %v227
  %v287 = vpop.f32.mrf.mxu0
  %v288 = vadd.f32 %v209, %v287
  %v289 = vpop.f32.mrf.mxu0
  %v290 = vpop.f32.mrf.mxu0
  %v291 = vadd.f32 %v209, %v290
  %v292 = vpop.f32.mrf.mxu0
  %293 = vdwg.mxu0
  %v294 = vmul.f32 %v264, 0.5
  %v295 = vmul.f32 %v267, 0.5
  %v296 = vmul.f32 %v272, 0.5
  %v297 = vmul.f32 %v275, 0.5
  %v298 = vmul.f32 %v280, 0.5
  %v299 = vmul.f32 %v283, 0.5
  %v300 = vmul.f32 %v288, 0.5
  %v301 = vmul.f32 %v291, 0.5
  %v302 = vmul.f32 %v264, 0.70710677
  %v303 = vmul.f32 %v267, 0.70710677
  %v304 = vmul.f32 %v272, 0.70710677
  %v305 = vmul.f32 %v275, 0.70710677
  %v306 = vmul.f32 %v280, 0.70710677
  %v307 = vmul.f32 %v283, 0.70710677
  %v308 = vmul.f32 %v288, 0.70710677
  %v309 = vmul.f32 %v291, 0.70710677
  %v310 = vand.u32 2147483647, %v302
  %v311 = vand.u32 2147483647, %v303
  %v312 = vand.u32 2147483647, %v304
  %v313 = vand.u32 2147483647, %v305
  %v314 = vand.u32 2147483647, %v306
  %v315 = vand.u32 2147483647, %v307
  %v316 = vand.u32 2147483647, %v308
  %v317 = vand.u32 2147483647, %v309
  %v318 = vmul.f32 %v310, 0.3275911
  %v319 = vmul.f32 %v311, 0.3275911
  %v320 = vmul.f32 %v312, 0.3275911
  %v321 = vmul.f32 %v313, 0.3275911
  %v322 = vmul.f32 %v314, 0.3275911
  %v323 = vmul.f32 %v315, 0.3275911
  %v324 = vmul.f32 %v316, 0.3275911
  %v325 = vmul.f32 %v317, 0.3275911
  %v326 = vadd.f32 %v318, 1.0
  %v327 = vadd.f32 %v319, 1.0
  %v328 = vadd.f32 %v320, 1.0
  %v329 = vadd.f32 %v321, 1.0
  %v330 = vadd.f32 %v322, 1.0
  %v331 = vadd.f32 %v323, 1.0
  %v332 = vadd.f32 %v324, 1.0
  %v333 = vadd.f32 %v325, 1.0
  %v334 = vrcp.pop %v326
  %v335 = vmul.f32 1.0, %v334
  %v336 = vrcp.pop %v327
  %v337 = vmul.f32 1.0, %v336
  %v338 = vrcp.pop %v328
  %v339 = vmul.f32 1.0, %v338
  %v340 = vrcp.pop %v329
  %v341 = vmul.f32 1.0, %v340
  %v342 = vrcp.pop %v330
  %v343 = vmul.f32 1.0, %v342
  %v344 = vrcp.pop %v331
  %v345 = vmul.f32 1.0, %v344
  %v346 = vrcp.pop %v332
  %v347 = vmul.f32 1.0, %v346
  %v348 = vrcp.pop %v333
  %v349 = vmul.f32 1.0, %v348
  %v350 = vmul.f32 %v335, 1.0614054
  %v351 = vmul.f32 %v337, 1.0614054
  %v352 = vmul.f32 %v339, 1.0614054
  %v353 = vmul.f32 %v341, 1.0614054
  %v354 = vmul.f32 %v343, 1.0614054
  %v355 = vmul.f32 %v345, 1.0614054
  %v356 = vmul.f32 %v347, 1.0614054
  %v357 = vmul.f32 %v349, 1.0614054
  %v358 = vadd.f32 %v350, -1.4531521
  %v359 = vadd.f32 %v351, -1.4531521
  %v360 = vadd.f32 %v352, -1.4531521
  %v361 = vadd.f32 %v353, -1.4531521
  %v362 = vadd.f32 %v354, -1.4531521
  %v363 = vadd.f32 %v355, -1.4531521
  %v364 = vadd.f32 %v356, -1.4531521
  %v365 = vadd.f32 %v357, -1.4531521
  %v366 = vmul.f32 %v358, %v335
  %v367 = vmul.f32 %v359, %v337
  %v368 = vmul.f32 %v360, %v339
  %v369 = vmul.f32 %v361, %v341
  %v370 = vmul.f32 %v362, %v343
  %v371 = vmul.f32 %v363, %v345
  %v372 = vmul.f32 %v364, %v347
  %v373 = vmul.f32 %v365, %v349
  %v374 = vadd.f32 %v366, 1.4214138
  %v375 = vadd.f32 %v367, 1.4214138
  %v376 = vadd.f32 %v368, 1.4214138
  %v377 = vadd.f32 %v369, 1.4214138
  %v378 = vadd.f32 %v370, 1.4214138
  %v379 = vadd.f32 %v371, 1.4214138
  %v380 = vadd.f32 %v372, 1.4214138
  %v381 = vadd.f32 %v373, 1.4214138
  %v382 = vmul.f32 %v374, %v335
  %v383 = vmul.f32 %v375, %v337
  %v384 = vmul.f32 %v376, %v339
  %v385 = vmul.f32 %v377, %v341
  %v386 = vmul.f32 %v378, %v343
  %v387 = vmul.f32 %v379, %v345
  %v388 = vmul.f32 %v380, %v347
  %v389 = vmul.f32 %v381, %v349
  %v390 = vadd.f32 %v382, -0.28449672
  %v391 = vadd.f32 %v383, -0.28449672
  %v392 = vadd.f32 %v384, -0.28449672
  %v393 = vadd.f32 %v385, -0.28449672
  %v394 = vadd.f32 %v386, -0.28449672
  %v395 = vadd.f32 %v387, -0.28449672
  %v396 = vadd.f32 %v388, -0.28449672
  %v397 = vadd.f32 %v389, -0.28449672
  %v398 = vmul.f32 %v390, %v335
  %v399 = vmul.f32 %v391, %v337
  %v400 = vmul.f32 %v392, %v339
  %v401 = vmul.f32 %v393, %v341
  %v402 = vmul.f32 %v394, %v343
  %v403 = vmul.f32 %v395, %v345
  %v404 = vmul.f32 %v396, %v347
  %v405 = vmul.f32 %v397, %v349
  %v406 = vadd.f32 %v398, 0.2548296
  %v407 = vadd.f32 %v399, 0.2548296
  %v408 = vadd.f32 %v400, 0.2548296
  %v409 = vadd.f32 %v401, 0.2548296
  %v410 = vadd.f32 %v402, 0.2548296
  %v411 = vadd.f32 %v403, 0.2548296
  %v412 = vadd.f32 %v404, 0.2548296
  %v413 = vadd.f32 %v405, 0.2548296
  %v414 = vmul.f32 %v406, %v335
  %v415 = vmul.f32 %v407, %v337
  %v416 = vmul.f32 %v408, %v339
  %v417 = vmul.f32 %v409, %v341
  %v418 = vmul.f32 %v410, %v343
  %v419 = vmul.f32 %v411, %v345
  %v420 = vmul.f32 %v412, %v347
  %v421 = vmul.f32 %v413, %v349
  %v422 = vsub.f32 0.0, %v310
  %v423 = vsub.f32 0.0, %v311
  %v424 = vsub.f32 0.0, %v312
  %v425 = vsub.f32 0.0, %v313
  %v426 = vsub.f32 0.0, %v314
  %v427 = vsub.f32 0.0, %v315
  %v428 = vsub.f32 0.0, %v316
  %v429 = vsub.f32 0.0, %v317
  %v430 = vmul.f32 %v422, %v310
  %v431 = vmul.f32 %v423, %v311
  %v432 = vmul.f32 %v424, %v312
  %v433 = vmul.f32 %v425, %v313
  %v434 = vmul.f32 %v426, %v314
  %v435 = vmul.f32 %v427, %v315
  %v436 = vmul.f32 %v428, %v316
  %v437 = vmul.f32 %v429, %v317
  %v438 = vmul.f32 %v430, 1.442695
  %v439 = vpow.pop %v438
  %v440 = vmul.f32 %v431, 1.442695
  %v441 = vpow.pop %v440
  %v442 = vmul.f32 %v432, 1.442695
  %v443 = vpow.pop %v442
  %v444 = vmul.f32 %v433, 1.442695
  %v445 = vpow.pop %v444
  %v446 = vmul.f32 %v434, 1.442695
  %v447 = vpow.pop %v446
  %v448 = vmul.f32 %v435, 1.442695
  %v449 = vpow.pop %v448
  %v450 = vmul.f32 %v436, 1.442695
  %v451 = vpow.pop %v450
  %v452 = vmul.f32 %v437, 1.442695
  %v453 = vpow.pop %v452
  %v454 = vmul.f32 %v414, %v439
  %v455 = vmul.f32 %v415, %v441
  %v456 = vmul.f32 %v416, %v443
  %v457 = vmul.f32 %v417, %v445
  %v458 = vmul.f32 %v418, %v447
  %v459 = vmul.f32 %v419, %v449
  %v460 = vmul.f32 %v420, %v451
  %v461 = vmul.f32 %v421, %v453
  %v462 = vsub.f32 1.0, %v454
  %v463 = vsub.f32 1.0, %v455
  %v464 = vsub.f32 1.0, %v456
  %v465 = vsub.f32 1.0, %v457
  %v466 = vsub.f32 1.0, %v458
  %v467 = vsub.f32 1.0, %v459
  %v468 = vsub.f32 1.0, %v460
  %v469 = vsub.f32 1.0, %v461
  %vm470 = vcmp.lt.f32.partialorder %v302, 0.0
  %vm471 = vcmp.lt.f32.partialorder %v303, 0.0
  %vm472 = vcmp.lt.f32.partialorder %v304, 0.0
  %vm473 = vcmp.lt.f32.partialorder %v305, 0.0
  %vm474 = vcmp.lt.f32.partialorder %v306, 0.0
  %vm475 = vcmp.lt.f32.partialorder %v307, 0.0
  %vm476 = vcmp.lt.f32.partialorder %v308, 0.0
  %vm477 = vcmp.lt.f32.partialorder %v309, 0.0
  %v478 = vsub.f32 0.0, %v462
  %v479 = vsub.f32 0.0, %v463
  %v480 = vsub.f32 0.0, %v464
  %v481 = vsub.f32 0.0, %v465
  %v482 = vsub.f32 0.0, %v466
  %v483 = vsub.f32 0.0, %v467
  %v484 = vsub.f32 0.0, %v468
  %v485 = vsub.f32 0.0, %v469
  %v486 = vsel %vm470, %v478, %v462
  %v487 = vsel %vm471, %v479, %v463
  %v488 = vsel %vm472, %v480, %v464
  %v489 = vsel %vm473, %v481, %v465
  %v490 = vsel %vm474, %v482, %v466
  %v491 = vsel %vm475, %v483, %v467
  %v492 = vsel %vm476, %v484, %v468
  %v493 = vsel %vm477, %v485, %v469
  %v494 = vadd.f32 %v486, 1.0
  %v495 = vadd.f32 %v487, 1.0
  %v496 = vadd.f32 %v488, 1.0
  %v497 = vadd.f32 %v489, 1.0
  %v498 = vadd.f32 %v490, 1.0
  %v499 = vadd.f32 %v491, 1.0
  %v500 = vadd.f32 %v492, 1.0
  %v501 = vadd.f32 %v493, 1.0
  %v502 = vmul.f32 %v294, %v494
  %v503 = vmul.f32 %v295, %v495
  %v504 = vmul.f32 %v296, %v496
  %v505 = vmul.f32 %v297, %v497
  %v506 = vmul.f32 %v298, %v498
  %v507 = vmul.f32 %v299, %v499
  %v508 = vmul.f32 %v300, %v500
  %v509 = vmul.f32 %v301, %v501
  %v510 = vpack.c.bf16 %v503, %v502
  %v511 = vpack.c.bf16 %v505, %v504
  %v512 = vpack.c.bf16 %v507, %v506
  %v513 = vpack.c.bf16 %v509, %v508
  %v514 = vld [vmem:[%s6] sm:$0xf]
  %v515 = vld [vmem:[%s6 + $0x4] sm:$0xf]
  %v516 = vld [vmem:[%s6 + $0x8] sm:$0xf]
  %v517 = vld [vmem:[%s6 + $0xc] sm:$0xf]
  %v518 = vld [vmem:[%s6 + $0x10] sm:$0xf]
  %v519 = vld [vmem:[%s6 + $0x14] sm:$0xf]
  %v520 = vld [vmem:[%s6 + $0x18] sm:$0xf]
  %v521 = vld [vmem:[%s6 + $0x1c] sm:$0xf]
  %v522 = vld [vmem:[%s7] sm:$0x1]
  %v524 = vlaneseq
  %v525 = vshrl.u32 %v524, 7
  %v526 = vsub.s32 0, %v525
  %v527 = vrot.slane %v522, %v526
  %v537 = vunpack.c.l.b16 %v514
  %v538 = vunpack.c.l.b16 %v515
  %v539 = vunpack.c.l.b16 %v516
  %v540 = vunpack.c.l.b16 %v517
  %v541 = vunpack.c.l.b16 %v518
  %v542 = vunpack.c.l.b16 %v519
  %v543 = vunpack.c.l.b16 %v520
  %v544 = vunpack.c.l.b16 %v521
  %v545 = vpack.c.b16 %v538, %v537
  %v546 = vpack.c.b16 %v540, %v539
  %v547 = vpack.c.b16 %v542, %v541
  %v548 = vpack.c.b16 %v544, %v543
  %vm553 = vcmask 523264
  %v555 = vsel %vm553, %v510, 0
  %v558 = vsel %vm553, %v511, 0
  %v561 = vsel %vm553, %v512, 0
  %v564 = vsel %vm553, %v513, 0
  %566 = vmatprep.subr.bf16.mxu0 0
  %567 = vmatpush1.bf16.msra.mxu0 0
  %568 = vmatprep.subr.bf16.mxu0 0
  %569 = vmatpush1.bf16.msra.mxu0 0
  %570 = vmatprep.subr.bf16.mxu0 0
  %571 = vmatpush1.bf16.msra.mxu0 0
  %572 = vmatprep.subr.bf16.mxu0 0
  %573 = vmatpush1.bf16.msra.mxu0 0
  %574 = vmatprep.subr.bf16.mxu0 0
  %575 = vmatpush1.bf16.msra.mxu0 %v548
  %576 = vmatprep.subr.bf16.mxu0 0
  %577 = vmatpush1.bf16.msra.mxu0 %v547
  %578 = vmatprep.subr.bf16.mxu0 0
  %579 = vmatpush1.bf16.msra.mxu0 %v546
  %580 = vmatprep.subr.bf16.mxu0 0
  %581 = vmatpush1.bf16.msra.mxu0 %v545
  %582 = vmatprep.subr.bf16.mxu0 0
  %583 = vmatpush2.bf16.msra.mxu0 0
  %584 = vmatprep.subr.bf16.mxu0 0
  %585 = vmatpush2.bf16.msra.mxu0 0
  %586 = vmatprep.subr.bf16.mxu0 0
  %587 = vmatpush2.bf16.msra.mxu0 0
  %588 = vmatprep.subr.bf16.mxu0 0
  %589 = vmatpush2.bf16.msra.mxu0 0
  %590 = vmatprep.subr.bf16.mxu0 0
  %591 = vmatpush2.bf16.msra.mxu0 0
  %592 = vmatprep.subr.bf16.mxu0 0
  %593 = vmatpush2.bf16.msra.mxu0 0
  %594 = vmatprep.subr.bf16.mxu0 0
  %595 = vmatpush2.bf16.msra.mxu0 0
  %596 = vmatprep.subr.bf16.mxu0 0
  %597 = vmatpush2.bf16.msra.mxu0 0
  %598 = vmatprep.mubr.bf16.mxu0 0
  %599 = vmatmul.mubr.bf16.gmra.mxu0 %v555
  %v600 = vpop.f32.mrf.mxu0
  %v601 = vadd.f32 %v527, %v600
  %v602 = vpop.f32.mrf.mxu0
  %v603 = vpop.f32.mrf.mxu0
  %v604 = vadd.f32 %v527, %v603
  %v605 = vpop.f32.mrf.mxu0
  %606 = vmatprep.mubr.bf16.mxu0 0
  %607 = vmatmul.mubr.bf16.gmra.mxu0 %v558
  %v608 = vpop.f32.mrf.mxu0
  %v609 = vadd.f32 %v527, %v608
  %v610 = vpop.f32.mrf.mxu0
  %v611 = vpop.f32.mrf.mxu0
  %v612 = vadd.f32 %v527, %v611
  %v613 = vpop.f32.mrf.mxu0
  %614 = vmatprep.mubr.bf16.mxu0 0
  %615 = vmatmul.mubr.bf16.gmra.mxu0 %v561
  %v616 = vpop.f32.mrf.mxu0
  %v617 = vadd.f32 %v527, %v616
  %v618 = vpop.f32.mrf.mxu0
  %v619 = vpop.f32.mrf.mxu0
  %v620 = vadd.f32 %v527, %v619
  %v621 = vpop.f32.mrf.mxu0
  %622 = vmatprep.mubr.bf16.mxu0 0
  %623 = vmatmul.mubr.bf16.gmra.mxu0 %v564
  %v624 = vpop.f32.mrf.mxu0
  %v625 = vadd.f32 %v527, %v624
  %v626 = vpop.f32.mrf.mxu0
  %v627 = vpop.f32.mrf.mxu0
  %v628 = vadd.f32 %v527, %v627
  %v629 = vpop.f32.mrf.mxu0
  %630 = vdwg.mxu0
  %v631 = vadd.f32 %v54, %v601
  %v632 = vadd.f32 %v55, %v604
  %v633 = vadd.f32 %v56, %v609
  %v634 = vadd.f32 %v57, %v612
  %v635 = vadd.f32 %v58, %v617
  %v636 = vadd.f32 %v59, %v620
  %v637 = vadd.f32 %v60, %v625
  %v638 = vadd.f32 %v61, %v628
  %639 = vst.msk [vmem:[%s8] sm:$0xff] %vm64, %v631
  %640 = vst.msk [vmem:[%s8 + $0x8] sm:$0xff] %vm64, %v632
  %641 = vst.msk [vmem:[%s8 + $0x10] sm:$0xff] %vm64, %v633
  %642 = vst.msk [vmem:[%s8 + $0x18] sm:$0xff] %vm64, %v634
  %643 = vst.msk [vmem:[%s8 + $0x20] sm:$0xff] %vm64, %v635
  %644 = vst.msk [vmem:[%s8 + $0x28] sm:$0xff] %vm64, %v636
  %645 = vst.msk [vmem:[%s8 + $0x30] sm:$0xff] %vm64, %v637
  %646 = vst.msk [vmem:[%s8 + $0x38] sm:$0xff] %vm64, %v638
  // Predicated region
  $region34: #{swin_forward.18} parent=0 // pred_check
    _
  $region35: #{swin_forward.18} parent=0 // pred_check_branch
    %648 = sbr.rel (0) target = $region37
  $region36: #{swin_forward.18} parent=0 // pred_region
    _
  $region37: #{swin_forward.18} parent=0 // pred_fallthru
    _
  // Predicated region
  $region38: #{swin_forward.18} parent=0 // pred_check
    _
  $region39: #{swin_forward.18} parent=0 // pred_check_branch
    %650 = sbr.rel (0) target = $region41
  $region40: #{swin_forward.18} parent=0 // pred_region
    _
  $region41: #{swin_forward.18} parent=0 // pred_fallthru
    _

// kernel: swin_forward.17
$region0: #{swin_forward.17}
  #allocation0 [shape = 'u32[]', space=smem, size = 0x4, offset = 0x4, fixed_abs, tag = 'smem constant byte address 0x4 - core index']
  #allocation1 [shape = 'u32[144,128]{1,0:T(1,128)}', space=vmem, size = 0x12000, scoped, tag = 'internal scratch']
  %s0 = inlined_call_operand.vmem [shape: bf16[1,64,48], index: 0, kind: input, shape index: {}]
  %s1 = inlined_call_operand.vmem [shape: f32[2,64,64], index: 1, kind: input, shape index: {}]
  %s2 = inlined_call_operand.vmem [shape: bf16[16,16], index: 2, kind: input, shape index: {}]
  %s3 = inlined_call_operand.vmem [shape: f32[1,16], index: 3, kind: input, shape index: {}]
  %s4 = inlined_call_operand.vmem [shape: bf16[1,64,16], index: 4, kind: output, shape index: {}]
  %s5 = sld [smem:[#allocation0]]
  $region26: #{swin_forward.17} parent=0
    _
  %s7 = ssub.s32 1, %s5
  %s8 = scalar_select 0, %s7, %s5
  // Predicated region
  $region2: #{swin_forward.17} parent=0 // pred_check
    _
  $region3: #{swin_forward.17} parent=0 // pred_check_branch
    %10 = sbr.rel (0) target = $region5
  $region4: #{swin_forward.17} parent=0 // pred_region
    _
  $region5: #{swin_forward.17} parent=0 // pred_fallthru
    _
  // Predicated region
  $region6: #{swin_forward.17} parent=0 // pred_check
    _
  $region7: #{swin_forward.17} parent=0 // pred_check_branch
    %12 = sbr.rel (0) target = $region9
  $region8: #{swin_forward.17} parent=0 // pred_region
    _
  $region9: #{swin_forward.17} parent=0 // pred_fallthru
    _
  // Predicated region
  $region10: #{swin_forward.17} parent=0 // pred_check
    _
  $region11: #{swin_forward.17} parent=0 // pred_check_branch
    %14 = sbr.rel (0) target = $region13
  $region12: #{swin_forward.17} parent=0 // pred_region
    _
  $region13: #{swin_forward.17} parent=0 // pred_fallthru
    _
  // Predicated region
  $region14: #{swin_forward.17} parent=0 // pred_check
    _
  $region15: #{swin_forward.17} parent=0 // pred_check_branch
    %16 = sbr.rel (0) target = $region17
  $region16: #{swin_forward.17} parent=0 // pred_region
    _
  $region17: #{swin_forward.17} parent=0 // pred_fallthru
    _
  %v18 = vld [vmem:[%s0] sm:$0xf]
  %v19 = vld [vmem:[%s0 + $0x4] sm:$0xf]
  %v20 = vld [vmem:[%s0 + $0x8] sm:$0xf]
  %v21 = vld [vmem:[%s0 + $0xc] sm:$0xf]
  %v22 = vld [vmem:[%s0 + $0x10] sm:$0xf]
  %v23 = vld [vmem:[%s0 + $0x14] sm:$0xf]
  %v24 = vld [vmem:[%s0 + $0x18] sm:$0xf]
  %v25 = vld [vmem:[%s0 + $0x1c] sm:$0xf]
  %v34 = vunpack.c.l.b16 %v18
  %v35 = vunpack.c.l.b16 %v19
  %v36 = vunpack.c.l.b16 %v20
  %v37 = vunpack.c.l.b16 %v21
  %v38 = vunpack.c.l.b16 %v22
  %v39 = vunpack.c.l.b16 %v23
  %v40 = vunpack.c.l.b16 %v24
  %v41 = vunpack.c.l.b16 %v25
  %v42 = vpack.c.b16 %v35, %v34
  %v43 = vpack.c.b16 %v37, %v36
  %v44 = vpack.c.b16 %v39, %v38
  %v45 = vpack.c.b16 %v41, %v40
  %46 = vrot.lane.b32.xlu0 %v42, 112
  %v47 = vpop.permute.xlu0 %46
  %48 = vrot.lane.b32.xlu0 %v43, 112
  %v49 = vpop.permute.xlu0 %48
  %50 = vrot.lane.b32.xlu0 %v44, 112
  %v51 = vpop.permute.xlu0 %50
  %52 = vrot.lane.b32.xlu0 %v45, 112
  %v53 = vpop.permute.xlu0 %52
  %vm54 = vcmask 64512
  %v56 = vsel %vm54, %v42, 0
  %v59 = vsel %vm54, %v43, 0
  %v62 = vsel %vm54, %v44, 0
  %v65 = vsel %vm54, %v45, 0
  %v68 = vsel %vm54, %v47, 0
  %v71 = vsel %vm54, %v49, 0
  %v74 = vsel %vm54, %v51, 0
  %v77 = vsel %vm54, %v53, 0
  %79 = vmatprep.subr.bf16.mxu0 0
  %80 = vmatpush1.bf16.xpose.msra.mxu0 0
  %81 = vmatprep.subr.bf16.mxu0 0
  %82 = vmatpush1.bf16.xpose.msra.mxu0 0
  %83 = vmatprep.subr.bf16.mxu0 0
  %84 = vmatpush1.bf16.xpose.msra.mxu0 0
  %85 = vmatprep.subr.bf16.mxu0 0
  %86 = vmatpush1.bf16.xpose.msra.mxu0 0
  %87 = vmatprep.subr.bf16.mxu0 0
  %88 = vmatpush1.bf16.xpose.msra.mxu0 %v77
  %89 = vmatprep.subr.bf16.mxu0 0
  %90 = vmatpush1.bf16.xpose.msra.mxu0 %v74
  %91 = vmatprep.subr.bf16.mxu0 0
  %92 = vmatpush1.bf16.xpose.msra.mxu0 %v71
  %93 = vmatprep.subr.bf16.mxu0 0
  %94 = vmatpush1.bf16.xpose.msra.mxu0 %v68
  %95 = vmatprep.subr.bf16.mxu0 0
  %96 = vmatpush2.bf16.xpose.msra.mxu0 0
  %97 = vmatprep.subr.bf16.mxu0 0
  %98 = vmatpush2.bf16.xpose.msra.mxu0 0
  %99 = vmatprep.subr.bf16.mxu0 0
  %100 = vmatpush2.bf16.xpose.msra.mxu0 0
  %101 = vmatprep.subr.bf16.mxu0 0
  %102 = vmatpush2.bf16.xpose.msra.mxu0 0
  %103 = vmatprep.subr.bf16.mxu0 0
  %104 = vmatpush2.bf16.xpose.msra.mxu0 0
  %105 = vmatprep.subr.bf16.mxu0 0
  %106 = vmatpush2.bf16.xpose.msra.mxu0 0
  %107 = vmatprep.subr.bf16.mxu0 0
  %108 = vmatpush2.bf16.xpose.msra.mxu0 0
  %109 = vmatprep.subr.bf16.mxu0 0
  %110 = vmatpush2.bf16.xpose.msra.mxu0 0
  %111 = vmatprep.mubr.bf16.mxu0 0
  %112 = vmatmul.mubr.bf16.gmra.mxu0 %v56
  %v113 = vpop.f32.mrf.mxu0
  %v114 = vadd.f32 0.0, %v113
  %v115 = vpop.f32.mrf.mxu0
  %v116 = vpop.f32.mrf.mxu0
  %v117 = vadd.f32 0.0, %v116
  %v118 = vpop.f32.mrf.mxu0
  %119 = vmatprep.mubr.bf16.mxu0 0
  %120 = vmatmul.mubr.bf16.gmra.mxu0 %v59
  %v121 = vpop.f32.mrf.mxu0
  %v122 = vadd.f32 0.0, %v121
  %v123 = vpop.f32.mrf.mxu0
  %v124 = vpop.f32.mrf.mxu0
  %v125 = vadd.f32 0.0, %v124
  %v126 = vpop.f32.mrf.mxu0
  %127 = vmatprep.mubr.bf16.mxu0 0
  %128 = vmatmul.mubr.bf16.gmra.mxu0 %v62
  %v129 = vpop.f32.mrf.mxu0
  %v130 = vadd.f32 0.0, %v129
  %v131 = vpop.f32.mrf.mxu0
  %v132 = vpop.f32.mrf.mxu0
  %v133 = vadd.f32 0.0, %v132
  %v134 = vpop.f32.mrf.mxu0
  %135 = vmatprep.mubr.bf16.mxu0 0
  %136 = vmatmul.mubr.bf16.gmra.mxu0 %v65
  %v137 = vpop.f32.mrf.mxu0
  %v138 = vadd.f32 0.0, %v137
  %v139 = vpop.f32.mrf.mxu0
  %v140 = vpop.f32.mrf.mxu0
  %v141 = vadd.f32 0.0, %v140
  %v142 = vpop.f32.mrf.mxu0
  %143 = vdwg.mxu0
  %v144 = vmul.f32 %v114, 0.35355338
  %v145 = vmul.f32 %v117, 0.35355338
  %v146 = vmul.f32 %v122, 0.35355338
  %v147 = vmul.f32 %v125, 0.35355338
  %v148 = vmul.f32 %v130, 0.35355338
  %v149 = vmul.f32 %v133, 0.35355338
  %v150 = vmul.f32 %v138, 0.35355338
  %v151 = vmul.f32 %v141, 0.35355338
  %v152 = vld [vmem:[%s1] sm:$0xff]
  %v153 = vld [vmem:[%s1 + $0x8] sm:$0xff]
  %v154 = vld [vmem:[%s1 + $0x10] sm:$0xff]
  %v155 = vld [vmem:[%s1 + $0x18] sm:$0xff]
  %v156 = vld [vmem:[%s1 + $0x20] sm:$0xff]
  %v157 = vld [vmem:[%s1 + $0x28] sm:$0xff]
  %v158 = vld [vmem:[%s1 + $0x30] sm:$0xff]
  %v159 = vld [vmem:[%s1 + $0x38] sm:$0xff]
  %v160 = vadd.f32 %v144, %v152
  %v161 = vadd.f32 %v145, %v153
  %v162 = vadd.f32 %v146, %v154
  %v163 = vadd.f32 %v147, %v155
  %v164 = vadd.f32 %v148, %v156
  %v165 = vadd.f32 %v149, %v157
  %v166 = vadd.f32 %v150, %v158
  %v167 = vadd.f32 %v151, %v159
  %vm168 = vcmask 523264
  %v169 = vsel %vm168, %v160, -inf
  %170 = vmax.xlane.f32.xlu0 %v169
  %v171 = vpop.xlane.xlu0 %170
  %v172 = vsel %vm168, %v161, -inf
  %173 = vmax.xlane.f32.xlu0 %v172
  %v174 = vpop.xlane.xlu0 %173
  %v175 = vsel %vm168, %v162, -inf
  %176 = vmax.xlane.f32.xlu0 %v175
  %v177 = vpop.xlane.xlu0 %176
  %v178 = vsel %vm168, %v163, -inf
  %179 = vmax.xlane.f32.xlu0 %v178
  %v180 = vpop.xlane.xlu0 %179
  %v181 = vsel %vm168, %v164, -inf
  %182 = vmax.xlane.f32.xlu0 %v181
  %v183 = vpop.xlane.xlu0 %182
  %v184 = vsel %vm168, %v165, -inf
  %185 = vmax.xlane.f32.xlu0 %v184
  %v186 = vpop.xlane.xlu0 %185
  %v187 = vsel %vm168, %v166, -inf
  %188 = vmax.xlane.f32.xlu0 %v187
  %v189 = vpop.xlane.xlu0 %188
  %v190 = vsel %vm168, %v167, -inf
  %191 = vmax.xlane.f32.xlu0 %v190
  %v192 = vpop.xlane.xlu0 %191
  %v193 = vsub.f32 %v160, %v171
  %v194 = vsub.f32 %v161, %v174
  %v195 = vsub.f32 %v162, %v177
  %v196 = vsub.f32 %v163, %v180
  %v197 = vsub.f32 %v164, %v183
  %v198 = vsub.f32 %v165, %v186
  %v199 = vsub.f32 %v166, %v189
  %v200 = vsub.f32 %v167, %v192
  %v201 = vmul.f32 %v193, 1.442695
  %v202 = vpow.pop %v201
  %v203 = vmul.f32 %v194, 1.442695
  %v204 = vpow.pop %v203
  %v205 = vmul.f32 %v195, 1.442695
  %v206 = vpow.pop %v205
  %v207 = vmul.f32 %v196, 1.442695
  %v208 = vpow.pop %v207
  %v209 = vmul.f32 %v197, 1.442695
  %v210 = vpow.pop %v209
  %v211 = vmul.f32 %v198, 1.442695
  %v212 = vpow.pop %v211
  %v213 = vmul.f32 %v199, 1.442695
  %v214 = vpow.pop %v213
  %v215 = vmul.f32 %v200, 1.442695
  %v216 = vpow.pop %v215
  %v217 = vsel %vm168, %v202, 0.0
  %218 = vadd.xlane.f32.xlu0 %v217
  %v219 = vpop.xlane.xlu0 %218
  %v220 = vsel %vm168, %v204, 0.0
  %221 = vadd.xlane.f32.xlu0 %v220
  %v222 = vpop.xlane.xlu0 %221
  %v223 = vsel %vm168, %v206, 0.0
  %224 = vadd.xlane.f32.xlu0 %v223
  %v225 = vpop.xlane.xlu0 %224
  %v226 = vsel %vm168, %v208, 0.0
  %227 = vadd.xlane.f32.xlu0 %v226
  %v228 = vpop.xlane.xlu0 %227
  %v229 = vsel %vm168, %v210, 0.0
  %230 = vadd.xlane.f32.xlu0 %v229
  %v231 = vpop.xlane.xlu0 %230
  %v232 = vsel %vm168, %v212, 0.0
  %233 = vadd.xlane.f32.xlu0 %v232
  %v234 = vpop.xlane.xlu0 %233
  %v235 = vsel %vm168, %v214, 0.0
  %236 = vadd.xlane.f32.xlu0 %v235
  %v237 = vpop.xlane.xlu0 %236
  %v238 = vsel %vm168, %v216, 0.0
  %239 = vadd.xlane.f32.xlu0 %v238
  %v240 = vpop.xlane.xlu0 %239
  %v241 = vpack.c.bf16 %v204, %v202
  %v242 = vpack.c.bf16 %v208, %v206
  %v243 = vpack.c.bf16 %v212, %v210
  %v244 = vpack.c.bf16 %v216, %v214
  %245 = vrot.lane.b32.xlu0 %v42, 96
  %v246 = vpop.permute.xlu0 %245
  %247 = vrot.lane.b32.xlu0 %v43, 96
  %v248 = vpop.permute.xlu0 %247
  %249 = vrot.lane.b32.xlu0 %v44, 96
  %v250 = vpop.permute.xlu0 %249
  %251 = vrot.lane.b32.xlu0 %v45, 96
  %v252 = vpop.permute.xlu0 %251
  %v258 = vsel %vm168, %v241, 0
  %v261 = vsel %vm168, %v242, 0
  %v264 = vsel %vm168, %v243, 0
  %v267 = vsel %vm168, %v244, 0
  %269 = vmatprep.subr.bf16.mxu0 0
  %270 = vmatpush1.bf16.msra.mxu0 0
  %271 = vmatprep.subr.bf16.mxu0 0
  %272 = vmatpush1.bf16.msra.mxu0 0
  %273 = vmatprep.subr.bf16.mxu0 0
  %274 = vmatpush1.bf16.msra.mxu0 0
  %275 = vmatprep.subr.bf16.mxu0 0
  %276 = vmatpush1.bf16.msra.mxu0 0
  %277 = vmatprep.subr.bf16.mxu0 0
  %278 = vmatpush1.bf16.msra.mxu0 %v252
  %279 = vmatprep.subr.bf16.mxu0 0
  %280 = vmatpush1.bf16.msra.mxu0 %v250
  %281 = vmatprep.subr.bf16.mxu0 0
  %282 = vmatpush1.bf16.msra.mxu0 %v248
  %283 = vmatprep.subr.bf16.mxu0 0
  %284 = vmatpush1.bf16.msra.mxu0 %v246
  %285 = vmatprep.subr.bf16.mxu0 0
  %286 = vmatpush2.bf16.msra.mxu0 0
  %287 = vmatprep.subr.bf16.mxu0 0
  %288 = vmatpush2.bf16.msra.mxu0 0
  %289 = vmatprep.subr.bf16.mxu0 0
  %290 = vmatpush2.bf16.msra.mxu0 0
  %291 = vmatprep.subr.bf16.mxu0 0
  %292 = vmatpush2.bf16.msra.mxu0 0
  %293 = vmatprep.subr.bf16.mxu0 0
  %294 = vmatpush2.bf16.msra.mxu0 0
  %295 = vmatprep.subr.bf16.mxu0 0
  %296 = vmatpush2.bf16.msra.mxu0 0
  %297 = vmatprep.subr.bf16.mxu0 0
  %298 = vmatpush2.bf16.msra.mxu0 0
  %299 = vmatprep.subr.bf16.mxu0 0
  %300 = vmatpush2.bf16.msra.mxu0 0
  %301 = vmatprep.mubr.bf16.mxu0 0
  %302 = vmatmul.mubr.bf16.gmra.mxu0 %v258
  %v303 = vpop.f32.mrf.mxu0
  %v304 = vadd.f32 0.0, %v303
  %v305 = vpop.f32.mrf.mxu0
  %v306 = vpop.f32.mrf.mxu0
  %v307 = vadd.f32 0.0, %v306
  %v308 = vpop.f32.mrf.mxu0
  %309 = vmatprep.mubr.bf16.mxu0 0
  %310 = vmatmul.mubr.bf16.gmra.mxu0 %v261
  %v311 = vpop.f32.mrf.mxu0
  %v312 = vadd.f32 0.0, %v311
  %v313 = vpop.f32.mrf.mxu0
  %v314 = vpop.f32.mrf.mxu0
  %v315 = vadd.f32 0.0, %v314
  %v316 = vpop.f32.mrf.mxu0
  %317 = vmatprep.mubr.bf16.mxu0 0
  %318 = vmatmul.mubr.bf16.gmra.mxu0 %v264
  %v319 = vpop.f32.mrf.mxu0
  %v320 = vadd.f32 0.0, %v319
  %v321 = vpop.f32.mrf.mxu0
  %v322 = vpop.f32.mrf.mxu0
  %v323 = vadd.f32 0.0, %v322
  %v324 = vpop.f32.mrf.mxu0
  %325 = vmatprep.mubr.bf16.mxu0 0
  %326 = vmatmul.mubr.bf16.gmra.mxu0 %v267
  %v327 = vpop.f32.mrf.mxu0
  %v328 = vadd.f32 0.0, %v327
  %v329 = vpop.f32.mrf.mxu0
  %v330 = vpop.f32.mrf.mxu0
  %v331 = vadd.f32 0.0, %v330
  %v332 = vpop.f32.mrf.mxu0
  %333 = vdwg.mxu0
  %v334 = vrcp.pop %v219
  %v335 = vrcp.pop %v222
  %v336 = vrcp.pop %v225
  %v337 = vrcp.pop %v228
  %v338 = vrcp.pop %v231
  %v339 = vrcp.pop %v234
  %v340 = vrcp.pop %v237
  %v341 = vrcp.pop %v240
  %v342 = vmul.f32 %v304, %v334
  %v343 = vmul.f32 %v307, %v335
  %v344 = vmul.f32 %v312, %v336
  %v345 = vmul.f32 %v315, %v337
  %v346 = vmul.f32 %v320, %v338
  %v347 = vmul.f32 %v323, %v339
  %v348 = vmul.f32 %v328, %v340
  %v349 = vmul.f32 %v331, %v341
  %350 = vrot.lane.b32.xlu0 %v42, 120
  %v351 = vpop.permute.xlu0 %350
  %352 = vrot.lane.b32.xlu0 %v43, 120
  %v353 = vpop.permute.xlu0 %352
  %354 = vrot.lane.b32.xlu0 %v44, 120
  %v355 = vpop.permute.xlu0 %354
  %356 = vrot.lane.b32.xlu0 %v45, 120
  %v357 = vpop.permute.xlu0 %356
  %358 = vrot.lane.b32.xlu0 %v42, 104
  %v359 = vpop.permute.xlu0 %358
  %360 = vrot.lane.b32.xlu0 %v43, 104
  %v361 = vpop.permute.xlu0 %360
  %362 = vrot.lane.b32.xlu0 %v44, 104
  %v363 = vpop.permute.xlu0 %362
  %364 = vrot.lane.b32.xlu0 %v45, 104
  %v365 = vpop.permute.xlu0 %364
  %v367 = vsel %vm54, %v351, 0
  %v370 = vsel %vm54, %v353, 0
  %v373 = vsel %vm54, %v355, 0
  %v376 = vsel %vm54, %v357, 0
  %v379 = vsel %vm54, %v359, 0
  %v382 = vsel %vm54, %v361, 0
  %v385 = vsel %vm54, %v363, 0
  %v388 = vsel %vm54, %v365, 0
  %390 = vmatprep.subr.bf16.mxu0 0
  %391 = vmatpush1.bf16.xpose.msra.mxu0 0
  %392 = vmatprep.subr.bf16.mxu0 0
  %393 = vmatpush1.bf16.xpose.msra.mxu0 0
  %394 = vmatprep.subr.bf16.mxu0 0
  %395 = vmatpush1.bf16.xpose.msra.mxu0 0
  %396 = vmatprep.subr.bf16.mxu0 0
  %397 = vmatpush1.bf16.xpose.msra.mxu0 0
  %398 = vmatprep.subr.bf16.mxu0 0
  %399 = vmatpush1.bf16.xpose.msra.mxu0 %v388
  %400 = vmatprep.subr.bf16.mxu0 0
  %401 = vmatpush1.bf16.xpose.msra.mxu0 %v385
  %402 = vmatprep.subr.bf16.mxu0 0
  %403 = vmatpush1.bf16.xpose.msra.mxu0 %v382
  %404 = vmatprep.subr.bf16.mxu0 0
  %405 = vmatpush1.bf16.xpose.msra.mxu0 %v379
  %406 = vmatprep.subr.bf16.mxu0 0
  %407 = vmatpush2.bf16.xpose.msra.mxu0 0
  %408 = vmatprep.subr.bf16.mxu0 0
  %409 = vmatpush2.bf16.xpose.msra.mxu0 0
  %410 = vmatprep.subr.bf16.mxu0 0
  %411 = vmatpush2.bf16.xpose.msra.mxu0 0
  %412 = vmatprep.subr.bf16.mxu0 0
  %413 = vmatpush2.bf16.xpose.msra.mxu0 0
  %414 = vmatprep.subr.bf16.mxu0 0
  %415 = vmatpush2.bf16.xpose.msra.mxu0 0
  %416 = vmatprep.subr.bf16.mxu0 0
  %417 = vmatpush2.bf16.xpose.msra.mxu0 0
  %418 = vmatprep.subr.bf16.mxu0 0
  %419 = vmatpush2.bf16.xpose.msra.mxu0 0
  %420 = vmatprep.subr.bf16.mxu0 0
  %421 = vmatpush2.bf16.xpose.msra.mxu0 0
  %422 = vmatprep.mubr.bf16.mxu0 0
  %423 = vmatmul.mubr.bf16.gmra.mxu0 %v367
  %v424 = vpop.f32.mrf.mxu0
  %v425 = vadd.f32 0.0, %v424
  %v426 = vpop.f32.mrf.mxu0
  %v427 = vpop.f32.mrf.mxu0
  %v428 = vadd.f32 0.0, %v427
  %v429 = vpop.f32.mrf.mxu0
  %430 = vmatprep.mubr.bf16.mxu0 0
  %431 = vmatmul.mubr.bf16.gmra.mxu0 %v370
  %v432 = vpop.f32.mrf.mxu0
  %v433 = vadd.f32 0.0, %v432
  %v434 = vpop.f32.mrf.mxu0
  %v435 = vpop.f32.mrf.mxu0
  %v436 = vadd.f32 0.0, %v435
  %v437 = vpop.f32.mrf.mxu0
  %438 = vmatprep.mubr.bf16.mxu0 0
  %439 = vmatmul.mubr.bf16.gmra.mxu0 %v373
  %v440 = vpop.f32.mrf.mxu0
  %v441 = vadd.f32 0.0, %v440
  %v442 = vpop.f32.mrf.mxu0
  %v443 = vpop.f32.mrf.mxu0
  %v444 = vadd.f32 0.0, %v443
  %v445 = vpop.f32.mrf.mxu0
  %446 = vmatprep.mubr.bf16.mxu0 0
  %447 = vmatmul.mubr.bf16.gmra.mxu0 %v376
  %v448 = vpop.f32.mrf.mxu0
  %v449 = vadd.f32 0.0, %v448
  %v450 = vpop.f32.mrf.mxu0
  %v451 = vpop.f32.mrf.mxu0
  %v452 = vadd.f32 0.0, %v451
  %v453 = vpop.f32.mrf.mxu0
  %454 = vdwg.mxu0
  %v455 = vmul.f32 %v425, 0.35355338
  %v456 = vmul.f32 %v428, 0.35355338
  %v457 = vmul.f32 %v433, 0.35355338
  %v458 = vmul.f32 %v436, 0.35355338
  %v459 = vmul.f32 %v441, 0.35355338
  %v460 = vmul.f32 %v444, 0.35355338
  %v461 = vmul.f32 %v449, 0.35355338
  %v462 = vmul.f32 %v452, 0.35355338
  %s463 = scalar_lea.vmem %s1, 64
  %v464 = vld [vmem:[%s463] sm:$0xff]
  %v465 = vld [vmem:[%s463 + $0x8] sm:$0xff]
  %v466 = vld [vmem:[%s463 + $0x10] sm:$0xff]
  %v467 = vld [vmem:[%s463 + $0x18] sm:$0xff]
  %v468 = vld [vmem:[%s463 + $0x20] sm:$0xff]
  %v469 = vld [vmem:[%s463 + $0x28] sm:$0xff]
  %v470 = vld [vmem:[%s463 + $0x30] sm:$0xff]
  %v471 = vld [vmem:[%s463 + $0x38] sm:$0xff]
  %v472 = vadd.f32 %v455, %v464
  %v473 = vadd.f32 %v456, %v465
  %v474 = vadd.f32 %v457, %v466
  %v475 = vadd.f32 %v458, %v467
  %v476 = vadd.f32 %v459, %v468
  %v477 = vadd.f32 %v460, %v469
  %v478 = vadd.f32 %v461, %v470
  %v479 = vadd.f32 %v462, %v471
  %v480 = vsel %vm168, %v472, -inf
  %481 = vmax.xlane.f32.xlu0 %v480
  %v482 = vpop.xlane.xlu0 %481
  %v483 = vsel %vm168, %v473, -inf
  %484 = vmax.xlane.f32.xlu0 %v483
  %v485 = vpop.xlane.xlu0 %484
  %v486 = vsel %vm168, %v474, -inf
  %487 = vmax.xlane.f32.xlu0 %v486
  %v488 = vpop.xlane.xlu0 %487
  %v489 = vsel %vm168, %v475, -inf
  %490 = vmax.xlane.f32.xlu0 %v489
  %v491 = vpop.xlane.xlu0 %490
  %v492 = vsel %vm168, %v476, -inf
  %493 = vmax.xlane.f32.xlu0 %v492
  %v494 = vpop.xlane.xlu0 %493
  %v495 = vsel %vm168, %v477, -inf
  %496 = vmax.xlane.f32.xlu0 %v495
  %v497 = vpop.xlane.xlu0 %496
  %v498 = vsel %vm168, %v478, -inf
  %499 = vmax.xlane.f32.xlu0 %v498
  %v500 = vpop.xlane.xlu0 %499
  %v501 = vsel %vm168, %v479, -inf
  %502 = vmax.xlane.f32.xlu0 %v501
  %v503 = vpop.xlane.xlu0 %502
  %v504 = vsub.f32 %v472, %v482
  %v505 = vsub.f32 %v473, %v485
  %v506 = vsub.f32 %v474, %v488
  %v507 = vsub.f32 %v475, %v491
  %v508 = vsub.f32 %v476, %v494
  %v509 = vsub.f32 %v477, %v497
  %v510 = vsub.f32 %v478, %v500
  %v511 = vsub.f32 %v479, %v503
  %v512 = vmul.f32 %v504, 1.442695
  %v513 = vpow.pop %v512
  %v514 = vmul.f32 %v505, 1.442695
  %v515 = vpow.pop %v514
  %v516 = vmul.f32 %v506, 1.442695
  %v517 = vpow.pop %v516
  %v518 = vmul.f32 %v507, 1.442695
  %v519 = vpow.pop %v518
  %v520 = vmul.f32 %v508, 1.442695
  %v521 = vpow.pop %v520
  %v522 = vmul.f32 %v509, 1.442695
  %v523 = vpow.pop %v522
  %v524 = vmul.f32 %v510, 1.442695
  %v525 = vpow.pop %v524
  %v526 = vmul.f32 %v511, 1.442695
  %v527 = vpow.pop %v526
  %v528 = vsel %vm168, %v513, 0.0
  %529 = vadd.xlane.f32.xlu0 %v528
  %v530 = vpop.xlane.xlu0 %529
  %v531 = vsel %vm168, %v515, 0.0
  %532 = vadd.xlane.f32.xlu0 %v531
  %v533 = vpop.xlane.xlu0 %532
  %v534 = vsel %vm168, %v517, 0.0
  %535 = vadd.xlane.f32.xlu0 %v534
  %v536 = vpop.xlane.xlu0 %535
  %v537 = vsel %vm168, %v519, 0.0
  %538 = vadd.xlane.f32.xlu0 %v537
  %v539 = vpop.xlane.xlu0 %538
  %v540 = vsel %vm168, %v521, 0.0
  %541 = vadd.xlane.f32.xlu0 %v540
  %v542 = vpop.xlane.xlu0 %541
  %v543 = vsel %vm168, %v523, 0.0
  %544 = vadd.xlane.f32.xlu0 %v543
  %v545 = vpop.xlane.xlu0 %544
  %v546 = vsel %vm168, %v525, 0.0
  %547 = vadd.xlane.f32.xlu0 %v546
  %v548 = vpop.xlane.xlu0 %547
  %v549 = vsel %vm168, %v527, 0.0
  %550 = vadd.xlane.f32.xlu0 %v549
  %v551 = vpop.xlane.xlu0 %550
  %v552 = vpack.c.bf16 %v515, %v513
  %v553 = vpack.c.bf16 %v519, %v517
  %v554 = vpack.c.bf16 %v523, %v521
  %v555 = vpack.c.bf16 %v527, %v525
  %556 = vrot.lane.b32.xlu0 %v42, 88
  %v557 = vpop.permute.xlu0 %556
  %558 = vrot.lane.b32.xlu0 %v43, 88
  %v559 = vpop.permute.xlu0 %558
  %560 = vrot.lane.b32.xlu0 %v44, 88
  %v561 = vpop.permute.xlu0 %560
  %562 = vrot.lane.b32.xlu0 %v45, 88
  %v563 = vpop.permute.xlu0 %562
  %v569 = vsel %vm168, %v552, 0
  %v572 = vsel %vm168, %v553, 0
  %v575 = vsel %vm168, %v554, 0
  %v578 = vsel %vm168, %v555, 0
  %580 = vmatprep.subr.bf16.mxu0 0
  %581 = vmatpush1.bf16.msra.mxu0 0
  %582 = vmatprep.subr.bf16.mxu0 0
  %583 = vmatpush1.bf16.msra.mxu0 0
  %584 = vmatprep.subr.bf16.mxu0 0
  %585 = vmatpush1.bf16.msra.mxu0 0
  %586 = vmatprep.subr.bf16.mxu0 0
  %587 = vmatpush1.bf16.msra.mxu0 0
  %588 = vmatprep.subr.bf16.mxu0 0
  %589 = vmatpush1.bf16.msra.mxu0 %v563
  %590 = vmatprep.subr.bf16.mxu0 0
  %591 = vmatpush1.bf16.msra.mxu0 %v561
  %592 = vmatprep.subr.bf16.mxu0 0
  %593 = vmatpush1.bf16.msra.mxu0 %v559
  %594 = vmatprep.subr.bf16.mxu0 0
  %595 = vmatpush1.bf16.msra.mxu0 %v557
  %596 = vmatprep.subr.bf16.mxu0 0
  %597 = vmatpush2.bf16.msra.mxu0 0
  %598 = vmatprep.subr.bf16.mxu0 0
  %599 = vmatpush2.bf16.msra.mxu0 0
  %600 = vmatprep.subr.bf16.mxu0 0
  %601 = vmatpush2.bf16.msra.mxu0 0
  %602 = vmatprep.subr.bf16.mxu0 0
  %603 = vmatpush2.bf16.msra.mxu0 0
  %604 = vmatprep.subr.bf16.mxu0 0
  %605 = vmatpush2.bf16.msra.mxu0 0
  %606 = vmatprep.subr.bf16.mxu0 0
  %607 = vmatpush2.bf16.msra.mxu0 0
  %608 = vmatprep.subr.bf16.mxu0 0
  %609 = vmatpush2.bf16.msra.mxu0 0
  %610 = vmatprep.subr.bf16.mxu0 0
  %611 = vmatpush2.bf16.msra.mxu0 0
  %612 = vmatprep.mubr.bf16.mxu0 0
  %613 = vmatmul.mubr.bf16.gmra.mxu0 %v569
  %v614 = vpop.f32.mrf.mxu0
  %v615 = vadd.f32 0.0, %v614
  %v616 = vpop.f32.mrf.mxu0
  %v617 = vpop.f32.mrf.mxu0
  %v618 = vadd.f32 0.0, %v617
  %v619 = vpop.f32.mrf.mxu0
  %620 = vmatprep.mubr.bf16.mxu0 0
  %621 = vmatmul.mubr.bf16.gmra.mxu0 %v572
  %v622 = vpop.f32.mrf.mxu0
  %v623 = vadd.f32 0.0, %v622
  %v624 = vpop.f32.mrf.mxu0
  %v625 = vpop.f32.mrf.mxu0
  %v626 = vadd.f32 0.0, %v625
  %v627 = vpop.f32.mrf.mxu0
  %628 = vmatprep.mubr.bf16.mxu0 0
  %629 = vmatmul.mubr.bf16.gmra.mxu0 %v575
  %v630 = vpop.f32.mrf.mxu0
  %v631 = vadd.f32 0.0, %v630
  %v632 = vpop.f32.mrf.mxu0
  %v633 = vpop.f32.mrf.mxu0
  %v634 = vadd.f32 0.0, %v633
  %v635 = vpop.f32.mrf.mxu0
  %636 = vmatprep.mubr.bf16.mxu0 0
  %637 = vmatmul.mubr.bf16.gmra.mxu0 %v578
  %v638 = vpop.f32.mrf.mxu0
  %v639 = vadd.f32 0.0, %v638
  %v640 = vpop.f32.mrf.mxu0
  %v641 = vpop.f32.mrf.mxu0
  %v642 = vadd.f32 0.0, %v641
  %v643 = vpop.f32.mrf.mxu0
  %644 = vdwg.mxu0
  %v645 = vrcp.pop %v530
  %v646 = vrcp.pop %v533
  %v647 = vrcp.pop %v536
  %v648 = vrcp.pop %v539
  %v649 = vrcp.pop %v542
  %v650 = vrcp.pop %v545
  %v651 = vrcp.pop %v548
  %v652 = vrcp.pop %v551
  %v653 = vmul.f32 %v615, %v645
  %v654 = vmul.f32 %v618, %v646
  %v655 = vmul.f32 %v623, %v647
  %v656 = vmul.f32 %v626, %v648
  %v657 = vmul.f32 %v631, %v649
  %v658 = vmul.f32 %v634, %v650
  %v659 = vmul.f32 %v639, %v651
  %v660 = vmul.f32 %v642, %v652
  %669 = vrot.lane.b32.xlu0 %v653, 8
  %v670 = vpop.permute.xlu0 %669
  %671 = vrot.lane.b32.xlu0 %v654, 8
  %v672 = vpop.permute.xlu0 %671
  %673 = vrot.lane.b32.xlu0 %v655, 8
  %v674 = vpop.permute.xlu0 %673
  %675 = vrot.lane.b32.xlu0 %v656, 8
  %v676 = vpop.permute.xlu0 %675
  %677 = vrot.lane.b32.xlu0 %v657, 8
  %v678 = vpop.permute.xlu0 %677
  %679 = vrot.lane.b32.xlu0 %v658, 8
  %v680 = vpop.permute.xlu0 %679
  %681 = vrot.lane.b32.xlu0 %v659, 8
  %v682 = vpop.permute.xlu0 %681
  %683 = vrot.lane.b32.xlu0 %v660, 8
  %v684 = vpop.permute.xlu0 %683
  %v693 = vsel %vm54, %v342, %v670
  %v694 = vsel %vm54, %v343, %v672
  %v695 = vsel %vm54, %v344, %v674
  %v696 = vsel %vm54, %v345, %v676
  %v697 = vsel %vm54, %v346, %v678
  %v698 = vsel %vm54, %v347, %v680
  %v699 = vsel %vm54, %v348, %v682
  %v700 = vsel %vm54, %v349, %v684
  %v701 = vpack.c.bf16 %v694, %v693
  %v702 = vpack.c.bf16 %v696, %v695
  %v703 = vpack.c.bf16 %v698, %v697
  %v704 = vpack.c.bf16 %v700, %v699
  %v705 = vld [vmem:[%s2] sm:$0xf]
  %v706 = vld [vmem:[%s2 + $0x4] sm:$0xf]
  %v707 = vld [vmem:[%s3] sm:$0x1]
  %v709 = vlaneseq
  %v710 = vshrl.u32 %v709, 7
  %v711 = vsub.s32 0, %v710
  %v712 = vrot.slane %v707, %v711
  %v716 = vunpack.c.l.b16 %v705
  %v717 = vunpack.c.l.b16 %v706
  %v718 = vpack.c.b16 %v717, %v716
  %vm720 = vcmask 130048
  %v722 = vsel %vm720, %v701, 0
  %v725 = vsel %vm720, %v702, 0
  %v728 = vsel %vm720, %v703, 0
  %v731 = vsel %vm720, %v704, 0
  %733 = vmatprep.subr.bf16.mxu0 0
  %734 = vmatpush1.bf16.msra.mxu0 0
  %735 = vmatprep.subr.bf16.mxu0 0
  %736 = vmatpush1.bf16.msra.mxu0 0
  %737 = vmatprep.subr.bf16.mxu0 0
  %738 = vmatpush1.bf16.msra.mxu0 0
  %739 = vmatprep.subr.bf16.mxu0 0
  %740 = vmatpush1.bf16.msra.mxu0 0
  %741 = vmatprep.subr.bf16.mxu0 0
  %742 = vmatpush1.bf16.msra.mxu0 0
  %743 = vmatprep.subr.bf16.mxu0 0
  %744 = vmatpush1.bf16.msra.mxu0 0
  %745 = vmatprep.subr.bf16.mxu0 0
  %746 = vmatpush1.bf16.msra.mxu0 0
  %747 = vmatprep.subr.bf16.mxu0 0
  %748 = vmatpush1.bf16.msra.mxu0 %v718
  %749 = vmatprep.subr.bf16.mxu0 0
  %750 = vmatpush2.bf16.msra.mxu0 0
  %751 = vmatprep.subr.bf16.mxu0 0
  %752 = vmatpush2.bf16.msra.mxu0 0
  %753 = vmatprep.subr.bf16.mxu0 0
  %754 = vmatpush2.bf16.msra.mxu0 0
  %755 = vmatprep.subr.bf16.mxu0 0
  %756 = vmatpush2.bf16.msra.mxu0 0
  %757 = vmatprep.subr.bf16.mxu0 0
  %758 = vmatpush2.bf16.msra.mxu0 0
  %759 = vmatprep.subr.bf16.mxu0 0
  %760 = vmatpush2.bf16.msra.mxu0 0
  %761 = vmatprep.subr.bf16.mxu0 0
  %762 = vmatpush2.bf16.msra.mxu0 0
  %763 = vmatprep.subr.bf16.mxu0 0
  %764 = vmatpush2.bf16.msra.mxu0 0
  %765 = vmatprep.mubr.bf16.mxu0 0
  %766 = vmatmul.mubr.bf16.gmra.mxu0 %v722
  %v767 = vpop.f32.mrf.mxu0
  %v768 = vadd.f32 %v712, %v767
  %v769 = vpop.f32.mrf.mxu0
  %v770 = vpop.f32.mrf.mxu0
  %v771 = vadd.f32 %v712, %v770
  %v772 = vpop.f32.mrf.mxu0
  %773 = vmatprep.mubr.bf16.mxu0 0
  %774 = vmatmul.mubr.bf16.gmra.mxu0 %v725
  %v775 = vpop.f32.mrf.mxu0
  %v776 = vadd.f32 %v712, %v775
  %v777 = vpop.f32.mrf.mxu0
  %v778 = vpop.f32.mrf.mxu0
  %v779 = vadd.f32 %v712, %v778
  %v780 = vpop.f32.mrf.mxu0
  %781 = vmatprep.mubr.bf16.mxu0 0
  %782 = vmatmul.mubr.bf16.gmra.mxu0 %v728
  %v783 = vpop.f32.mrf.mxu0
  %v784 = vadd.f32 %v712, %v783
  %v785 = vpop.f32.mrf.mxu0
  %v786 = vpop.f32.mrf.mxu0
  %v787 = vadd.f32 %v712, %v786
  %v788 = vpop.f32.mrf.mxu0
  %789 = vmatprep.mubr.bf16.mxu0 0
  %790 = vmatmul.mubr.bf16.gmra.mxu0 %v731
  %v791 = vpop.f32.mrf.mxu0
  %v792 = vadd.f32 %v712, %v791
  %v793 = vpop.f32.mrf.mxu0
  %v794 = vpop.f32.mrf.mxu0
  %v795 = vadd.f32 %v712, %v794
  %v796 = vpop.f32.mrf.mxu0
  %797 = vdwg.mxu0
  %v798 = vpack.c.bf16 %v771, %v768
  %v799 = vpack.c.bf16 %v779, %v776
  %v800 = vpack.c.bf16 %v787, %v784
  %v801 = vpack.c.bf16 %v795, %v792
  %v806 = vunpack.c.l.b16 %v798
  %v807 = vunpack.c.h.b16 %v798
  %v808 = vunpack.c.l.b16 %v799
  %v809 = vunpack.c.h.b16 %v799
  %v810 = vunpack.c.l.b16 %v800
  %v811 = vunpack.c.h.b16 %v800
  %v812 = vunpack.c.l.b16 %v801
  %v813 = vunpack.c.h.b16 %v801
  %v814 = vpack.c.b16 %v806, %v806
  %v815 = vpack.c.b16 %v807, %v807
  %v816 = vpack.c.b16 %v808, %v808
  %v817 = vpack.c.b16 %v809, %v809
  %v818 = vpack.c.b16 %v810, %v810
  %v819 = vpack.c.b16 %v811, %v811
  %v820 = vpack.c.b16 %v812, %v812
  %v821 = vpack.c.b16 %v813, %v813
  %vm830 = vcmask 125952
  %831 = vst.msk [vmem:[%s4] sm:$0xf] %vm830, %v814
  %832 = vst.msk [vmem:[%s4 + $0x4] sm:$0xf] %vm830, %v815
  %833 = vst.msk [vmem:[%s4 + $0x8] sm:$0xf] %vm830, %v816
  %834 = vst.msk [vmem:[%s4 + $0xc] sm:$0xf] %vm830, %v817
  %835 = vst.msk [vmem:[%s4 + $0x10] sm:$0xf] %vm830, %v818
  %836 = vst.msk [vmem:[%s4 + $0x14] sm:$0xf] %vm830, %v819
  %837 = vst.msk [vmem:[%s4 + $0x18] sm:$0xf] %vm830, %v820
  %838 = vst.msk [vmem:[%s4 + $0x1c] sm:$0xf] %vm830, %v821
  // Predicated region
  $region18: #{swin_forward.17} parent=0 // pred_check
    _
  $region19: #{swin_forward.17} parent=0 // pred_check_branch
    %840 = sbr.rel (0) target = $region21
  $region20: #{swin_forward.17} parent=0 // pred_region
    _
  $region21: #{swin_forward.17} parent=0 // pred_fallthru
    _
  // Predicated region
  $region22: #{swin_forward.17} parent=0 // pred_check
    _
  $region23: #{swin_forward.17} parent=0 // pred_check_branch
    %842 = sbr.rel (0) target = $region25
  $region24: #{swin_forward.17} parent=0 // pred_region
    _
  $region25: #{swin_forward.17} parent=0 // pred_fallthru
    _

// kernel: swin_forward.22
$region0: #{swin_forward.22}
  #allocation0 [shape = 'u32[]', space=smem, size = 0x4, offset = 0x4, fixed_abs, tag = 'smem constant byte address 0x4 - core index']
  #allocation1 [shape = 'u32[144,128]{1,0:T(1,128)}', space=vmem, size = 0x12000, scoped, tag = 'internal scratch']
  %s0 = inlined_call_operand.vmem [shape: f32[16,64], index: 0, kind: input, shape index: {}]
  %s1 = inlined_call_operand.vmem [shape: bf16[64,32], index: 1, kind: input, shape index: {}]
  %s2 = inlined_call_operand.vmem [shape: f32[1,32], index: 2, kind: input, shape index: {}]
  %s3 = inlined_call_operand.vmem [shape: f32[1,32], index: 3, kind: input, shape index: {}]
  %s4 = inlined_call_operand.vmem [shape: f32[16,32], index: 4, kind: output, shape index: {}]
  %s5 = sld [smem:[#allocation0]]
  $region26: #{swin_forward.22} parent=0
    _
  %s7 = ssub.s32 1, %s5
  %s8 = scalar_select 0, %s7, %s5
  // Predicated region
  $region2: #{swin_forward.22} parent=0 // pred_check
    _
  $region3: #{swin_forward.22} parent=0 // pred_check_branch
    %10 = sbr.rel (0) target = $region5
  $region4: #{swin_forward.22} parent=0 // pred_region
    _
  $region5: #{swin_forward.22} parent=0 // pred_fallthru
    _
  // Predicated region
  $region6: #{swin_forward.22} parent=0 // pred_check
    _
  $region7: #{swin_forward.22} parent=0 // pred_check_branch
    %12 = sbr.rel (0) target = $region9
  $region8: #{swin_forward.22} parent=0 // pred_region
    _
  $region9: #{swin_forward.22} parent=0 // pred_fallthru
    _
  // Predicated region
  $region10: #{swin_forward.22} parent=0 // pred_check
    _
  $region11: #{swin_forward.22} parent=0 // pred_check_branch
    %14 = sbr.rel (0) target = $region13
  $region12: #{swin_forward.22} parent=0 // pred_region
    _
  $region13: #{swin_forward.22} parent=0 // pred_fallthru
    _
  // Predicated region
  $region14: #{swin_forward.22} parent=0 // pred_check
    _
  $region15: #{swin_forward.22} parent=0 // pred_check_branch
    %16 = sbr.rel (0) target = $region17
  $region16: #{swin_forward.22} parent=0 // pred_region
    _
  $region17: #{swin_forward.22} parent=0 // pred_fallthru
    _
  %v18 = vld [vmem:[%s0] sm:$0xff]
  %v19 = vld [vmem:[%s0 + $0x8] sm:$0xff]
  %v20 = vpack.c.bf16 %v19, %v18
  %v21 = vld [vmem:[%s1] sm:$0xf]
  %v22 = vld [vmem:[%s1 + $0x4] sm:$0xf]
  %v23 = vld [vmem:[%s1 + $0x8] sm:$0xf]
  %v24 = vld [vmem:[%s1 + $0xc] sm:$0xf]
  %v25 = vld [vmem:[%s1 + $0x10] sm:$0xf]
  %v26 = vld [vmem:[%s1 + $0x14] sm:$0xf]
  %v27 = vld [vmem:[%s1 + $0x18] sm:$0xf]
  %v28 = vld [vmem:[%s1 + $0x1c] sm:$0xf]
  %v37 = vunpack.c.l.b16 %v21
  %v38 = vunpack.c.l.b16 %v22
  %v39 = vunpack.c.l.b16 %v23
  %v40 = vunpack.c.l.b16 %v24
  %v41 = vunpack.c.l.b16 %v25
  %v42 = vunpack.c.l.b16 %v26
  %v43 = vunpack.c.l.b16 %v27
  %v44 = vunpack.c.l.b16 %v28
  %v45 = vpack.c.b16 %v38, %v37
  %v46 = vpack.c.b16 %v40, %v39
  %v47 = vpack.c.b16 %v42, %v41
  %v48 = vpack.c.b16 %v44, %v43
  %vm53 = vcmask 523264
  %v55 = vsel %vm53, %v20, 0
  %57 = vmatprep.subr.bf16.mxu0 0
  %58 = vmatpush1.bf16.msra.mxu0 0
  %59 = vmatprep.subr.bf16.mxu0 0
  %60 = vmatpush1.bf16.msra.mxu0 0
  %61 = vmatprep.subr.bf16.mxu0 0
  %62 = vmatpush1.bf16.msra.mxu0 0
  %63 = vmatprep.subr.bf16.mxu0 0
  %64 = vmatpush1.bf16.msra.mxu0 0
  %65 = vmatprep.subr.bf16.mxu0 0
  %66 = vmatpush1.bf16.msra.mxu0 %v48
  %67 = vmatprep.subr.bf16.mxu0 0
  %68 = vmatpush1.bf16.msra.mxu0 %v47
  %69 = vmatprep.subr.bf16.mxu0 0
  %70 = vmatpush1.bf16.msra.mxu0 %v46
  %71 = vmatprep.subr.bf16.mxu0 0
  %72 = vmatpush1.bf16.msra.mxu0 %v45
  %73 = vmatprep.subr.bf16.mxu0 0
  %74 = vmatpush2.bf16.msra.mxu0 0
  %75 = vmatprep.subr.bf16.mxu0 0
  %76 = vmatpush2.bf16.msra.mxu0 0
  %77 = vmatprep.subr.bf16.mxu0 0
  %78 = vmatpush2.bf16.msra.mxu0 0
  %79 = vmatprep.subr.bf16.mxu0 0
  %80 = vmatpush2.bf16.msra.mxu0 0
  %81 = vmatprep.subr.bf16.mxu0 0
  %82 = vmatpush2.bf16.msra.mxu0 0
  %83 = vmatprep.subr.bf16.mxu0 0
  %84 = vmatpush2.bf16.msra.mxu0 0
  %85 = vmatprep.subr.bf16.mxu0 0
  %86 = vmatpush2.bf16.msra.mxu0 0
  %87 = vmatprep.subr.bf16.mxu0 0
  %88 = vmatpush2.bf16.msra.mxu0 0
  %89 = vmatprep.mubr.bf16.mxu0 0
  %90 = vmatmul.mubr.bf16.gmra.mxu0 %v55
  %v91 = vpop.f32.mrf.mxu0
  %v92 = vadd.f32 0.0, %v91
  %v93 = vpop.f32.mrf.mxu0
  %v94 = vpop.f32.mrf.mxu0
  %v95 = vadd.f32 0.0, %v94
  %v96 = vpop.f32.mrf.mxu0
  %97 = vdwg.mxu0
  %v98 = vld [vmem:[%s2] sm:$0x1]
  %v99 = vld [vmem:[%s3] sm:$0x1]
  %vm100 = vcmask 261120
  %v101 = vsel %vm100, %v92, 0.0
  %102 = vadd.xlane.f32.xlu0 %v101
  %v103 = vpop.xlane.xlu0 %102
  %v104 = vsel %vm100, %v95, 0.0
  %105 = vadd.xlane.f32.xlu0 %v104
  %v106 = vpop.xlane.xlu0 %105
  %v107 = vrcp.pop 32.0
  %v108 = vmul.f32 %v103, %v107
  %v109 = vmul.f32 %v106, %v107
  %v110 = vsub.f32 %v92, %v108
  %v111 = vsub.f32 %v95, %v109
  %v112 = vmul.f32 %v110, %v110
  %v113 = vmul.f32 %v111, %v111
  %v114 = vsel %vm100, %v112, 0.0
  %115 = vadd.xlane.f32.xlu0 %v114
  %v116 = vpop.xlane.xlu0 %115
  %v117 = vsel %vm100, %v113, 0.0
  %118 = vadd.xlane.f32.xlu0 %v117
  %v119 = vpop.xlane.xlu0 %118
  %v120 = vmul.f32 %v116, %v107
  %v121 = vmul.f32 %v119, %v107
  %v122 = vadd.f32 %v120, 1e-05
  %v123 = vadd.f32 %v121, 1e-05
  %v124 = vrsqrt.pop %v122
  %v125 = vrsqrt.pop %v123
  %v126 = vmul.f32 %v110, %v124
  %v127 = vmul.f32 %v111, %v125
  %v129 = vlaneseq
  %v130 = vshrl.u32 %v129, 7
  %v131 = vsub.s32 0, %v130
  %v132 = vrot.slane %v98, %v131
  %v134 = vmul.f32 %v126, %v132
  %v135 = vmul.f32 %v127, %v132
  %v137 = vlaneseq
  %v138 = vshrl.u32 %v137, 7
  %v139 = vsub.s32 0, %v138
  %v140 = vrot.slane %v99, %v139
  %v142 = vadd.f32 %v134, %v140
  %v143 = vadd.f32 %v135, %v140
  %144 = vst.msk [vmem:[%s4] sm:$0xff] %vm100, %v142
  %145 = vst.msk [vmem:[%s4 + $0x8] sm:$0xff] %vm100, %v143
  // Predicated region
  $region18: #{swin_forward.22} parent=0 // pred_check
    _
  $region19: #{swin_forward.22} parent=0 // pred_check_branch
    %147 = sbr.rel (0) target = $region21
  $region20: #{swin_forward.22} parent=0 // pred_region
    _
  $region21: #{swin_forward.22} parent=0 // pred_fallthru
    _
  // Predicated region
  $region22: #{swin_forward.22} parent=0 // pred_check
    _
  $region23: #{swin_forward.22} parent=0 // pred_check_branch
    %149 = sbr.rel (0) target = $region25
  $region24: #{swin_forward.22} parent=0 // pred_region
    _
  $region25: #{swin_forward.22} parent=0 // pred_fallthru
    _

// kernel: swin_forward.23
$region0: #{swin_forward.23}
  #allocation0 [shape = 'u32[]', space=smem, size = 0x4, offset = 0x4, fixed_abs, tag = 'smem constant byte address 0x4 - core index']
  #allocation1 [shape = 'u32[144,128]{1,0:T(1,128)}', space=vmem, size = 0x12000, scoped, tag = 'internal scratch']
  %s0 = inlined_call_operand.vmem [shape: f32[16,32], index: 0, kind: input, shape index: {}]
  %s1 = inlined_call_operand.vmem [shape: f32[1,32], index: 1, kind: input, shape index: {}]
  %s2 = inlined_call_operand.vmem [shape: f32[1,32], index: 2, kind: input, shape index: {}]
  %s3 = inlined_call_operand.vmem [shape: bf16[32,96], index: 3, kind: input, shape index: {}]
  %s4 = inlined_call_operand.vmem [shape: f32[1,96], index: 4, kind: input, shape index: {}]
  %s5 = inlined_call_operand.vmem [shape: bf16[16,96], index: 5, kind: output, shape index: {}]
  %s6 = sld [smem:[#allocation0]]
  $region30: #{swin_forward.23} parent=0
    _
  %s8 = ssub.s32 1, %s6
  %s9 = scalar_select 0, %s8, %s6
  // Predicated region
  $region2: #{swin_forward.23} parent=0 // pred_check
    _
  $region3: #{swin_forward.23} parent=0 // pred_check_branch
    %11 = sbr.rel (0) target = $region5
  $region4: #{swin_forward.23} parent=0 // pred_region
    _
  $region5: #{swin_forward.23} parent=0 // pred_fallthru
    _
  // Predicated region
  $region6: #{swin_forward.23} parent=0 // pred_check
    _
  $region7: #{swin_forward.23} parent=0 // pred_check_branch
    %13 = sbr.rel (0) target = $region9
  $region8: #{swin_forward.23} parent=0 // pred_region
    _
  $region9: #{swin_forward.23} parent=0 // pred_fallthru
    _
  // Predicated region
  $region10: #{swin_forward.23} parent=0 // pred_check
    _
  $region11: #{swin_forward.23} parent=0 // pred_check_branch
    %15 = sbr.rel (0) target = $region13
  $region12: #{swin_forward.23} parent=0 // pred_region
    _
  $region13: #{swin_forward.23} parent=0 // pred_fallthru
    _
  // Predicated region
  $region14: #{swin_forward.23} parent=0 // pred_check
    _
  $region15: #{swin_forward.23} parent=0 // pred_check_branch
    %17 = sbr.rel (0) target = $region17
  $region16: #{swin_forward.23} parent=0 // pred_region
    _
  $region17: #{swin_forward.23} parent=0 // pred_fallthru
    _
  // Predicated region
  $region18: #{swin_forward.23} parent=0 // pred_check
    _
  $region19: #{swin_forward.23} parent=0 // pred_check_branch
    %19 = sbr.rel (0) target = $region21
  $region20: #{swin_forward.23} parent=0 // pred_region
    _
  $region21: #{swin_forward.23} parent=0 // pred_fallthru
    _
  %v21 = vld [vmem:[%s0] sm:$0xff]
  %v22 = vld [vmem:[%s0 + $0x8] sm:$0xff]
  %v23 = vld [vmem:[%s1] sm:$0x1]
  %v24 = vld [vmem:[%s2] sm:$0x1]
  %vm25 = vcmask 261120
  %v26 = vsel %vm25, %v21, 0.0
  %27 = vadd.xlane.f32.xlu0 %v26
  %v28 = vpop.xlane.xlu0 %27
  %v29 = vsel %vm25, %v22, 0.0
  %30 = vadd.xlane.f32.xlu0 %v29
  %v31 = vpop.xlane.xlu0 %30
  %v32 = vrcp.pop 32.0
  %v33 = vmul.f32 %v28, %v32
  %v34 = vmul.f32 %v31, %v32
  %v35 = vsub.f32 %v21, %v33
  %v36 = vsub.f32 %v22, %v34
  %v37 = vmul.f32 %v35, %v35
  %v38 = vmul.f32 %v36, %v36
  %v39 = vsel %vm25, %v37, 0.0
  %40 = vadd.xlane.f32.xlu0 %v39
  %v41 = vpop.xlane.xlu0 %40
  %v42 = vsel %vm25, %v38, 0.0
  %43 = vadd.xlane.f32.xlu0 %v42
  %v44 = vpop.xlane.xlu0 %43
  %v45 = vmul.f32 %v41, %v32
  %v46 = vmul.f32 %v44, %v32
  %v47 = vadd.f32 %v45, 1e-05
  %v48 = vadd.f32 %v46, 1e-05
  %v49 = vrsqrt.pop %v47
  %v50 = vrsqrt.pop %v48
  %v51 = vmul.f32 %v35, %v49
  %v52 = vmul.f32 %v36, %v50
  %v54 = vlaneseq
  %v55 = vshrl.u32 %v54, 7
  %v56 = vsub.s32 0, %v55
  %v57 = vrot.slane %v23, %v56
  %v59 = vmul.f32 %v51, %v57
  %v60 = vmul.f32 %v52, %v57
  %v62 = vlaneseq
  %v63 = vshrl.u32 %v62, 7
  %v64 = vsub.s32 0, %v63
  %v65 = vrot.slane %v24, %v64
  %v67 = vadd.f32 %v59, %v65
  %v68 = vadd.f32 %v60, %v65
  %v69 = vpack.c.bf16 %v68, %v67
  %v70 = vld [vmem:[%s3] sm:$0xf]
  %v71 = vld [vmem:[%s3 + $0x4] sm:$0xf]
  %v72 = vld [vmem:[%s3 + $0x8] sm:$0xf]
  %v73 = vld [vmem:[%s3 + $0xc] sm:$0xf]
  %v74 = vld [vmem:[%s4] sm:$0x1]
  %v76 = vlaneseq
  %v77 = vshrl.u32 %v76, 7
  %v78 = vsub.s32 0, %v77
  %v79 = vrot.slane %v74, %v78
  %v85 = vunpack.c.l.b16 %v70
  %v86 = vunpack.c.l.b16 %v71
  %v87 = vunpack.c.l.b16 %v72
  %v88 = vunpack.c.l.b16 %v73
  %v89 = vpack.c.b16 %v86, %v85
  %v90 = vpack.c.b16 %v88, %v87
  %v94 = vsel %vm25, %v69, 0
  %96 = vmatprep.subr.bf16.mxu0 0
  %97 = vmatpush1.bf16.msra.mxu0 0
  %98 = vmatprep.subr.bf16.mxu0 0
  %99 = vmatpush1.bf16.msra.mxu0 0
  %100 = vmatprep.subr.bf16.mxu0 0
  %101 = vmatpush1.bf16.msra.mxu0 0
  %102 = vmatprep.subr.bf16.mxu0 0
  %103 = vmatpush1.bf16.msra.mxu0 0
  %104 = vmatprep.subr.bf16.mxu0 0
  %105 = vmatpush1.bf16.msra.mxu0 0
  %106 = vmatprep.subr.bf16.mxu0 0
  %107 = vmatpush1.bf16.msra.mxu0 0
  %108 = vmatprep.subr.bf16.mxu0 0
  %109 = vmatpush1.bf16.msra.mxu0 %v90
  %110 = vmatprep.subr.bf16.mxu0 0
  %111 = vmatpush1.bf16.msra.mxu0 %v89
  %112 = vmatprep.subr.bf16.mxu0 0
  %113 = vmatpush2.bf16.msra.mxu0 0
  %114 = vmatprep.subr.bf16.mxu0 0
  %115 = vmatpush2.bf16.msra.mxu0 0
  %116 = vmatprep.subr.bf16.mxu0 0
  %117 = vmatpush2.bf16.msra.mxu0 0
  %118 = vmatprep.subr.bf16.mxu0 0
  %119 = vmatpush2.bf16.msra.mxu0 0
  %120 = vmatprep.subr.bf16.mxu0 0
  %121 = vmatpush2.bf16.msra.mxu0 0
  %122 = vmatprep.subr.bf16.mxu0 0
  %123 = vmatpush2.bf16.msra.mxu0 0
  %124 = vmatprep.subr.bf16.mxu0 0
  %125 = vmatpush2.bf16.msra.mxu0 0
  %126 = vmatprep.subr.bf16.mxu0 0
  %127 = vmatpush2.bf16.msra.mxu0 0
  %128 = vmatprep.mubr.bf16.mxu0 0
  %129 = vmatmul.mubr.bf16.gmra.mxu0 %v94
  %v130 = vpop.f32.mrf.mxu0
  %v131 = vadd.f32 %v79, %v130
  %v132 = vpop.f32.mrf.mxu0
  %v133 = vpop.f32.mrf.mxu0
  %v134 = vadd.f32 %v79, %v133
  %v135 = vpop.f32.mrf.mxu0
  %136 = vdwg.mxu0
  %v137 = vpack.c.bf16 %v134, %v131
  %v139 = vunpack.c.l.b16 %v137
  %v140 = vunpack.c.h.b16 %v137
  %v141 = vpack.c.b16 %v139, %v139
  %v142 = vpack.c.b16 %v140, %v140
  %vm145 = vcmask 781312
  %146 = vst.msk [vmem:[%s5] sm:$0xf] %vm145, %v141
  %147 = vst.msk [vmem:[%s5 + $0x4] sm:$0xf] %vm145, %v142
  // Predicated region
  $region22: #{swin_forward.23} parent=0 // pred_check
    _
  $region23: #{swin_forward.23} parent=0 // pred_check_branch
    %149 = sbr.rel (0) target = $region25
  $region24: #{swin_forward.23} parent=0 // pred_region
    _
  $region25: #{swin_forward.23} parent=0 // pred_fallthru
    _
  // Predicated region
  $region26: #{swin_forward.23} parent=0 // pred_check
    _
  $region27: #{swin_forward.23} parent=0 // pred_check_branch
    %151 = sbr.rel (0) target = $region29
  $region28: #{swin_forward.23} parent=0 // pred_region
    _
  $region29: #{swin_forward.23} parent=0 // pred_fallthru
    _

// kernel: swin_forward.24
$region0: #{swin_forward.24}
  #allocation0 [shape = 'u32[]', space=smem, size = 0x4, offset = 0x4, fixed_abs, tag = 'smem constant byte address 0x4 - core index']
  #allocation1 [shape = 'u32[144,128]{1,0:T(1,128)}', space=vmem, size = 0x12000, scoped, tag = 'internal scratch']
  %s0 = inlined_call_operand.vmem [shape: bf16[1,16,96], index: 0, kind: input, shape index: {}]
  %s1 = inlined_call_operand.vmem [shape: f32[4,16,16], index: 1, kind: input, shape index: {}]
  %s2 = inlined_call_operand.vmem [shape: bf16[32,32], index: 2, kind: input, shape index: {}]
  %s3 = inlined_call_operand.vmem [shape: f32[1,32], index: 3, kind: input, shape index: {}]
  %s4 = inlined_call_operand.vmem [shape: bf16[1,16,32], index: 4, kind: output, shape index: {}]
  %s5 = sld [smem:[#allocation0]]
  $region26: #{swin_forward.24} parent=0
    _
  %s7 = ssub.s32 1, %s5
  %s8 = scalar_select 0, %s7, %s5
  // Predicated region
  $region2: #{swin_forward.24} parent=0 // pred_check
    _
  $region3: #{swin_forward.24} parent=0 // pred_check_branch
    %10 = sbr.rel (0) target = $region5
  $region4: #{swin_forward.24} parent=0 // pred_region
    _
  $region5: #{swin_forward.24} parent=0 // pred_fallthru
    _
  // Predicated region
  $region6: #{swin_forward.24} parent=0 // pred_check
    _
  $region7: #{swin_forward.24} parent=0 // pred_check_branch
    %12 = sbr.rel (0) target = $region9
  $region8: #{swin_forward.24} parent=0 // pred_region
    _
  $region9: #{swin_forward.24} parent=0 // pred_fallthru
    _
  // Predicated region
  $region10: #{swin_forward.24} parent=0 // pred_check
    _
  $region11: #{swin_forward.24} parent=0 // pred_check_branch
    %14 = sbr.rel (0) target = $region13
  $region12: #{swin_forward.24} parent=0 // pred_region
    _
  $region13: #{swin_forward.24} parent=0 // pred_fallthru
    _
  // Predicated region
  $region14: #{swin_forward.24} parent=0 // pred_check
    _
  $region15: #{swin_forward.24} parent=0 // pred_check_branch
    %16 = sbr.rel (0) target = $region17
  $region16: #{swin_forward.24} parent=0 // pred_region
    _
  $region17: #{swin_forward.24} parent=0 // pred_fallthru
    _
  %v18 = vld [vmem:[%s0] sm:$0xf]
  %v19 = vld [vmem:[%s0 + $0x4] sm:$0xf]
  %v22 = vunpack.c.l.b16 %v18
  %v23 = vunpack.c.l.b16 %v19
  %v24 = vpack.c.b16 %v23, %v22
  %25 = vrot.lane.b32.xlu0 %v24, 96
  %v26 = vpop.permute.xlu0 %25
  %vm27 = vcmask 64512
  %v29 = vsel %vm27, %v24, 0
  %v32 = vsel %vm27, %v26, 0
  %34 = vmatprep.subr.bf16.mxu0 0
  %35 = vmatpush1.bf16.xpose.msra.mxu0 0
  %36 = vmatprep.subr.bf16.mxu0 0
  %37 = vmatpush1.bf16.xpose.msra.mxu0 0
  %38 = vmatprep.subr.bf16.mxu0 0
  %39 = vmatpush1.bf16.xpose.msra.mxu0 0
  %40 = vmatprep.subr.bf16.mxu0 0
  %41 = vmatpush1.bf16.xpose.msra.mxu0 0
  %42 = vmatprep.subr.bf16.mxu0 0
  %43 = vmatpush1.bf16.xpose.msra.mxu0 0
  %44 = vmatprep.subr.bf16.mxu0 0
  %45 = vmatpush1.bf16.xpose.msra.mxu0 0
  %46 = vmatprep.subr.bf16.mxu0 0
  %47 = vmatpush1.bf16.xpose.msra.mxu0 0
  %48 = vmatprep.subr.bf16.mxu0 0
  %49 = vmatpush1.bf16.xpose.msra.mxu0 %v32
  %50 = vmatprep.subr.bf16.mxu0 0
  %51 = vmatpush2.bf16.xpose.msra.mxu0 0
  %52 = vmatprep.subr.bf16.mxu0 0
  %53 = vmatpush2.bf16.xpose.msra.mxu0 0
  %54 = vmatprep.subr.bf16.mxu0 0
  %55 = vmatpush2.bf16.xpose.msra.mxu0 0
  %56 = vmatprep.subr.bf16.mxu0 0
  %57 = vmatpush2.bf16.xpose.msra.mxu0 0
  %58 = vmatprep.subr.bf16.mxu0 0
  %59 = vmatpush2.bf16.xpose.msra.mxu0 0
  %60 = vmatprep.subr.bf16.mxu0 0
  %61 = vmatpush2.bf16.xpose.msra.mxu0 0
  %62 = vmatprep.subr.bf16.mxu0 0
  %63 = vmatpush2.bf16.xpose.msra.mxu0 0
  %64 = vmatprep.subr.bf16.mxu0 0
  %65 = vmatpush2.bf16.xpose.msra.mxu0 0
  %66 = vmatprep.mubr.bf16.mxu0 0
  %67 = vmatmul.mubr.bf16.gmra.mxu0 %v29
  %v68 = vpop.f32.mrf.mxu0
  %v69 = vadd.f32 0.0, %v68
  %v70 = vpop.f32.mrf.mxu0
  %v71 = vpop.f32.mrf.mxu0
  %v72 = vadd.f32 0.0, %v71
  %v73 = vpop.f32.mrf.mxu0
  %74 = vdwg.mxu0
  %v75 = vmul.f32 %v69, 0.35355338
  %v76 = vmul.f32 %v72, 0.35355338
  %v77 = vld [vmem:[%s1] sm:$0xff]
  %v78 = vld [vmem:[%s1 + $0x8] sm:$0xff]
  %v79 = vadd.f32 %v75, %v77
  %v80 = vadd.f32 %v76, %v78
  %vm81 = vcmask 130048
  %v82 = vsel %vm81, %v79, -inf
  %83 = vmax.xlane.f32.xlu0 %v82
  %v84 = vpop.xlane.xlu0 %83
  %v85 = vsel %vm81, %v80, -inf
  %86 = vmax.xlane.f32.xlu0 %v85
  %v87 = vpop.xlane.xlu0 %86
  %v88 = vsub.f32 %v79, %v84
  %v89 = vsub.f32 %v80, %v87
  %v90 = vmul.f32 %v88, 1.442695
  %v91 = vpow.pop %v90
  %v92 = vmul.f32 %v89, 1.442695
  %v93 = vpow.pop %v92
  %v94 = vsel %vm81, %v91, 0.0
  %95 = vadd.xlane.f32.xlu0 %v94
  %v96 = vpop.xlane.xlu0 %95
  %v97 = vsel %vm81, %v93, 0.0
  %98 = vadd.xlane.f32.xlu0 %v97
  %v99 = vpop.xlane.xlu0 %98
  %v100 = vpack.c.bf16 %v93, %v91
  %101 = vrot.lane.b32.xlu0 %v24, 64
  %v102 = vpop.permute.xlu0 %101
  %v105 = vsel %vm81, %v100, 0
  %107 = vmatprep.subr.bf16.mxu0 0
  %108 = vmatpush1.bf16.msra.mxu0 0
  %109 = vmatprep.subr.bf16.mxu0 0
  %110 = vmatpush1.bf16.msra.mxu0 0
  %111 = vmatprep.subr.bf16.mxu0 0
  %112 = vmatpush1.bf16.msra.mxu0 0
  %113 = vmatprep.subr.bf16.mxu0 0
  %114 = vmatpush1.bf16.msra.mxu0 0
  %115 = vmatprep.subr.bf16.mxu0 0
  %116 = vmatpush1.bf16.msra.mxu0 0
  %117 = vmatprep.subr.bf16.mxu0 0
  %118 = vmatpush1.bf16.msra.mxu0 0
  %119 = vmatprep.subr.bf16.mxu0 0
  %120 = vmatpush1.bf16.msra.mxu0 0
  %121 = vmatprep.subr.bf16.mxu0 0
  %122 = vmatpush1.bf16.msra.mxu0 %v102
  %123 = vmatprep.subr.bf16.mxu0 0
  %124 = vmatpush2.bf16.msra.mxu0 0
  %125 = vmatprep.subr.bf16.mxu0 0
  %126 = vmatpush2.bf16.msra.mxu0 0
  %127 = vmatprep.subr.bf16.mxu0 0
  %128 = vmatpush2.bf16.msra.mxu0 0
  %129 = vmatprep.subr.bf16.mxu0 0
  %130 = vmatpush2.bf16.msra.mxu0 0
  %131 = vmatprep.subr.bf16.mxu0 0
  %132 = vmatpush2.bf16.msra.mxu0 0
  %133 = vmatprep.subr.bf16.mxu0 0
  %134 = vmatpush2.bf16.msra.mxu0 0
  %135 = vmatprep.subr.bf16.mxu0 0
  %136 = vmatpush2.bf16.msra.mxu0 0
  %137 = vmatprep.subr.bf16.mxu0 0
  %138 = vmatpush2.bf16.msra.mxu0 0
  %139 = vmatprep.mubr.bf16.mxu0 0
  %140 = vmatmul.mubr.bf16.gmra.mxu0 %v105
  %v141 = vpop.f32.mrf.mxu0
  %v142 = vadd.f32 0.0, %v141
  %v143 = vpop.f32.mrf.mxu0
  %v144 = vpop.f32.mrf.mxu0
  %v145 = vadd.f32 0.0, %v144
  %v146 = vpop.f32.mrf.mxu0
  %147 = vdwg.mxu0
  %v148 = vrcp.pop %v96
  %v149 = vrcp.pop %v99
  %v150 = vmul.f32 %v142, %v148
  %v151 = vmul.f32 %v145, %v149
  %152 = vrot.lane.b32.xlu0 %v24, 120
  %v153 = vpop.permute.xlu0 %152
  %154 = vrot.lane.b32.xlu0 %v24, 88
  %v155 = vpop.permute.xlu0 %154
  %v157 = vsel %vm27, %v153, 0
  %v160 = vsel %vm27, %v155, 0
  %162 = vmatprep.subr.bf16.mxu0 0
  %163 = vmatpush1.bf16.xpose.msra.mxu0 0
  %164 = vmatprep.subr.bf16.mxu0 0
  %165 = vmatpush1.bf16.xpose.msra.mxu0 0
  %166 = vmatprep.subr.bf16.mxu0 0
  %167 = vmatpush1.bf16.xpose.msra.mxu0 0
  %168 = vmatprep.subr.bf16.mxu0 0
  %169 = vmatpush1.bf16.xpose.msra.mxu0 0
  %170 = vmatprep.subr.bf16.mxu0 0
  %171 = vmatpush1.bf16.xpose.msra.mxu0 0
  %172 = vmatprep.subr.bf16.mxu0 0
  %173 = vmatpush1.bf16.xpose.msra.mxu0 0
  %174 = vmatprep.subr.bf16.mxu0 0
  %175 = vmatpush1.bf16.xpose.msra.mxu0 0
  %176 = vmatprep.subr.bf16.mxu0 0
  %177 = vmatpush1.bf16.xpose.msra.mxu0 %v160
  %178 = vmatprep.subr.bf16.mxu0 0
  %179 = vmatpush2.bf16.xpose.msra.mxu0 0
  %180 = vmatprep.subr.bf16.mxu0 0
  %181 = vmatpush2.bf16.xpose.msra.mxu0 0
  %182 = vmatprep.subr.bf16.mxu0 0
  %183 = vmatpush2.bf16.xpose.msra.mxu0 0
  %184 = vmatprep.subr.bf16.mxu0 0
  %185 = vmatpush2.bf16.xpose.msra.mxu0 0
  %186 = vmatprep.subr.bf16.mxu0 0
  %187 = vmatpush2.bf16.xpose.msra.mxu0 0
  %188 = vmatprep.subr.bf16.mxu0 0
  %189 = vmatpush2.bf16.xpose.msra.mxu0 0
  %190 = vmatprep.subr.bf16.mxu0 0
  %191 = vmatpush2.bf16.xpose.msra.mxu0 0
  %192 = vmatprep.subr.bf16.mxu0 0
  %193 = vmatpush2.bf16.xpose.msra.mxu0 0
  %194 = vmatprep.mubr.bf16.mxu0 0
  %195 = vmatmul.mubr.bf16.gmra.mxu0 %v157
  %v196 = vpop.f32.mrf.mxu0
  %v197 = vadd.f32 0.0, %v196
  %v198 = vpop.f32.mrf.mxu0
  %v199 = vpop.f32.mrf.mxu0
  %v200 = vadd.f32 0.0, %v199
  %v201 = vpop.f32.mrf.mxu0
  %202 = vdwg.mxu0
  %v203 = vmul.f32 %v197, 0.35355338
  %v204 = vmul.f32 %v200, 0.35355338
  %s205 = scalar_lea.vmem %s1, 16
  %v206 = vld [vmem:[%s205] sm:$0xff]
  %v207 = vld [vmem:[%s205 + $0x8] sm:$0xff]
  %v208 = vadd.f32 %v203, %v206
  %v209 = vadd.f32 %v204, %v207
  %v210 = vsel %vm81, %v208, -inf
  %211 = vmax.xlane.f32.xlu0 %v210
  %v212 = vpop.xlane.xlu0 %211
  %v213 = vsel %vm81, %v209, -inf
  %214 = vmax.xlane.f32.xlu0 %v213
  %v215 = vpop.xlane.xlu0 %214
  %v216 = vsub.f32 %v208, %v212
  %v217 = vsub.f32 %v209, %v215
  %v218 = vmul.f32 %v216, 1.442695
  %v219 = vpow.pop %v218
  %v220 = vmul.f32 %v217, 1.442695
  %v221 = vpow.pop %v220
  %v222 = vsel %vm81, %v219, 0.0
  %223 = vadd.xlane.f32.xlu0 %v222
  %v224 = vpop.xlane.xlu0 %223
  %v225 = vsel %vm81, %v221, 0.0
  %226 = vadd.xlane.f32.xlu0 %v225
  %v227 = vpop.xlane.xlu0 %226
  %v228 = vpack.c.bf16 %v221, %v219
  %229 = vrot.lane.b32.xlu0 %v24, 56
  %v230 = vpop.permute.xlu0 %229
  %v233 = vsel %vm81, %v228, 0
  %235 = vmatprep.subr.bf16.mxu0 0
  %236 = vmatpush1.bf16.msra.mxu0 0
  %237 = vmatprep.subr.bf16.mxu0 0
  %238 = vmatpush1.bf16.msra.mxu0 0
  %239 = vmatprep.subr.bf16.mxu0 0
  %240 = vmatpush1.bf16.msra.mxu0 0
  %241 = vmatprep.subr.bf16.mxu0 0
  %242 = vmatpush1.bf16.msra.mxu0 0
  %243 = vmatprep.subr.bf16.mxu0 0
  %244 = vmatpush1.bf16.msra.mxu0 0
  %245 = vmatprep.subr.bf16.mxu0 0
  %246 = vmatpush1.bf16.msra.mxu0 0
  %247 = vmatprep.subr.bf16.mxu0 0
  %248 = vmatpush1.bf16.msra.mxu0 0
  %249 = vmatprep.subr.bf16.mxu0 0
  %250 = vmatpush1.bf16.msra.mxu0 %v230
  %251 = vmatprep.subr.bf16.mxu0 0
  %252 = vmatpush2.bf16.msra.mxu0 0
  %253 = vmatprep.subr.bf16.mxu0 0
  %254 = vmatpush2.bf16.msra.mxu0 0
  %255 = vmatprep.subr.bf16.mxu0 0
  %256 = vmatpush2.bf16.msra.mxu0 0
  %257 = vmatprep.subr.bf16.mxu0 0
  %258 = vmatpush2.bf16.msra.mxu0 0
  %259 = vmatprep.subr.bf16.mxu0 0
  %260 = vmatpush2.bf16.msra.mxu0 0
  %261 = vmatprep.subr.bf16.mxu0 0
  %262 = vmatpush2.bf16.msra.mxu0 0
  %263 = vmatprep.subr.bf16.mxu0 0
  %264 = vmatpush2.bf16.msra.mxu0 0
  %265 = vmatprep.subr.bf16.mxu0 0
  %266 = vmatpush2.bf16.msra.mxu0 0
  %267 = vmatprep.mubr.bf16.mxu0 0
  %268 = vmatmul.mubr.bf16.gmra.mxu0 %v233
  %v269 = vpop.f32.mrf.mxu0
  %v270 = vadd.f32 0.0, %v269
  %v271 = vpop.f32.mrf.mxu0
  %v272 = vpop.f32.mrf.mxu0
  %v273 = vadd.f32 0.0, %v272
  %v274 = vpop.f32.mrf.mxu0
  %275 = vdwg.mxu0
  %v276 = vrcp.pop %v224
  %v277 = vrcp.pop %v227
  %v278 = vmul.f32 %v270, %v276
  %v279 = vmul.f32 %v273, %v277
  %280 = vrot.lane.b32.xlu0 %v24, 112
  %v281 = vpop.permute.xlu0 %280
  %282 = vrot.lane.b32.xlu0 %v24, 80
  %v283 = vpop.permute.xlu0 %282
  %v285 = vsel %vm27, %v281, 0
  %v288 = vsel %vm27, %v283, 0
  %290 = vmatprep.subr.bf16.mxu0 0
  %291 = vmatpush1.bf16.xpose.msra.mxu0 0
  %292 = vmatprep.subr.bf16.mxu0 0
  %293 = vmatpush1.bf16.xpose.msra.mxu0 0
  %294 = vmatprep.subr.bf16.mxu0 0
  %295 = vmatpush1.bf16.xpose.msra.mxu0 0
  %296 = vmatprep.subr.bf16.mxu0 0
  %297 = vmatpush1.bf16.xpose.msra.mxu0 0
  %298 = vmatprep.subr.bf16.mxu0 0
  %299 = vmatpush1.bf16.xpose.msra.mxu0 0
  %300 = vmatprep.subr.bf16.mxu0 0
  %301 = vmatpush1.bf16.xpose.msra.mxu0 0
  %302 = vmatprep.subr.bf16.mxu0 0
  %303 = vmatpush1.bf16.xpose.msra.mxu0 0
  %304 = vmatprep.subr.bf16.mxu0 0
  %305 = vmatpush1.bf16.xpose.msra.mxu0 %v288
  %306 = vmatprep.subr.bf16.mxu0 0
  %307 = vmatpush2.bf16.xpose.msra.mxu0 0
  %308 = vmatprep.subr.bf16.mxu0 0
  %309 = vmatpush2.bf16.xpose.msra.mxu0 0
  %310 = vmatprep.subr.bf16.mxu0 0
  %311 = vmatpush2.bf16.xpose.msra.mxu0 0
  %312 = vmatprep.subr.bf16.mxu0 0
  %313 = vmatpush2.bf16.xpose.msra.mxu0 0
  %314 = vmatprep.subr.bf16.mxu0 0
  %315 = vmatpush2.bf16.xpose.msra.mxu0 0
  %316 = vmatprep.subr.bf16.mxu0 0
  %317 = vmatpush2.bf16.xpose.msra.mxu0 0
  %318 = vmatprep.subr.bf16.mxu0 0
  %319 = vmatpush2.bf16.xpose.msra.mxu0 0
  %320 = vmatprep.subr.bf16.mxu0 0
  %321 = vmatpush2.bf16.xpose.msra.mxu0 0
  %322 = vmatprep.mubr.bf16.mxu0 0
  %323 = vmatmul.mubr.bf16.gmra.mxu0 %v285
  %v324 = vpop.f32.mrf.mxu0
  %v325 = vadd.f32 0.0, %v324
  %v326 = vpop.f32.mrf.mxu0
  %v327 = vpop.f32.mrf.mxu0
  %v328 = vadd.f32 0.0, %v327
  %v329 = vpop.f32.mrf.mxu0
  %330 = vdwg.mxu0
  %v331 = vmul.f32 %v325, 0.35355338
  %v332 = vmul.f32 %v328, 0.35355338
  %s333 = scalar_lea.vmem %s1, 32
  %v334 = vld [vmem:[%s333] sm:$0xff]
  %v335 = vld [vmem:[%s333 + $0x8] sm:$0xff]
  %v336 = vadd.f32 %v331, %v334
  %v337 = vadd.f32 %v332, %v335
  %v338 = vsel %vm81, %v336, -inf
  %339 = vmax.xlane.f32.xlu0 %v338
  %v340 = vpop.xlane.xlu0 %339
  %v341 = vsel %vm81, %v337, -inf
  %342 = vmax.xlane.f32.xlu0 %v341
  %v343 = vpop.xlane.xlu0 %342
  %v344 = vsub.f32 %v336, %v340
  %v345 = vsub.f32 %v337, %v343
  %v346 = vmul.f32 %v344, 1.442695
  %v347 = vpow.pop %v346
  %v348 = vmul.f32 %v345, 1.442695
  %v349 = vpow.pop %v348
  %v350 = vsel %vm81, %v347, 0.0
  %351 = vadd.xlane.f32.xlu0 %v350
  %v352 = vpop.xlane.xlu0 %351
  %v353 = vsel %vm81, %v349, 0.0
  %354 = vadd.xlane.f32.xlu0 %v353
  %v355 = vpop.xlane.xlu0 %354
  %v356 = vpack.c.bf16 %v349, %v347
  %357 = vrot.lane.b32.xlu0 %v24, 48
  %v358 = vpop.permute.xlu0 %357
  %v361 = vsel %vm81, %v356, 0
  %363 = vmatprep.subr.bf16.mxu0 0
  %364 = vmatpush1.bf16.msra.mxu0 0
  %365 = vmatprep.subr.bf16.mxu0 0
  %366 = vmatpush1.bf16.msra.mxu0 0
  %367 = vmatprep.subr.bf16.mxu0 0
  %368 = vmatpush1.bf16.msra.mxu0 0
  %369 = vmatprep.subr.bf16.mxu0 0
  %370 = vmatpush1.bf16.msra.mxu0 0
  %371 = vmatprep.subr.bf16.mxu0 0
  %372 = vmatpush1.bf16.msra.mxu0 0
  %373 = vmatprep.subr.bf16.mxu0 0
  %374 = vmatpush1.bf16.msra.mxu0 0
  %375 = vmatprep.subr.bf16.mxu0 0
  %376 = vmatpush1.bf16.msra.mxu0 0
  %377 = vmatprep.subr.bf16.mxu0 0
  %378 = vmatpush1.bf16.msra.mxu0 %v358
  %379 = vmatprep.subr.bf16.mxu0 0
  %380 = vmatpush2.bf16.msra.mxu0 0
  %381 = vmatprep.subr.bf16.mxu0 0
  %382 = vmatpush2.bf16.msra.mxu0 0
  %383 = vmatprep.subr.bf16.mxu0 0
  %384 = vmatpush2.bf16.msra.mxu0 0
  %385 = vmatprep.subr.bf16.mxu0 0
  %386 = vmatpush2.bf16.msra.mxu0 0
  %387 = vmatprep.subr.bf16.mxu0 0
  %388 = vmatpush2.bf16.msra.mxu0 0
  %389 = vmatprep.subr.bf16.mxu0 0
  %390 = vmatpush2.bf16.msra.mxu0 0
  %391 = vmatprep.subr.bf16.mxu0 0
  %392 = vmatpush2.bf16.msra.mxu0 0
  %393 = vmatprep.subr.bf16.mxu0 0
  %394 = vmatpush2.bf16.msra.mxu0 0
  %395 = vmatprep.mubr.bf16.mxu0 0
  %396 = vmatmul.mubr.bf16.gmra.mxu0 %v361
  %v397 = vpop.f32.mrf.mxu0
  %v398 = vadd.f32 0.0, %v397
  %v399 = vpop.f32.mrf.mxu0
  %v400 = vpop.f32.mrf.mxu0
  %v401 = vadd.f32 0.0, %v400
  %v402 = vpop.f32.mrf.mxu0
  %403 = vdwg.mxu0
  %v404 = vrcp.pop %v352
  %v405 = vrcp.pop %v355
  %v406 = vmul.f32 %v398, %v404
  %v407 = vmul.f32 %v401, %v405
  %408 = vrot.lane.b32.xlu0 %v24, 104
  %v409 = vpop.permute.xlu0 %408
  %410 = vrot.lane.b32.xlu0 %v24, 72
  %v411 = vpop.permute.xlu0 %410
  %v413 = vsel %vm27, %v409, 0
  %v416 = vsel %vm27, %v411, 0
  %418 = vmatprep.subr.bf16.mxu0 0
  %419 = vmatpush1.bf16.xpose.msra.mxu0 0
  %420 = vmatprep.subr.bf16.mxu0 0
  %421 = vmatpush1.bf16.xpose.msra.mxu0 0
  %422 = vmatprep.subr.bf16.mxu0 0
  %423 = vmatpush1.bf16.xpose.msra.mxu0 0
  %424 = vmatprep.subr.bf16.mxu0 0
  %425 = vmatpush1.bf16.xpose.msra.mxu0 0
  %426 = vmatprep.subr.bf16.mxu0 0
  %427 = vmatpush1.bf16.xpose.msra.mxu0 0
  %428 = vmatprep.subr.bf16.mxu0 0
  %429 = vmatpush1.bf16.xpose.msra.mxu0 0
  %430 = vmatprep.subr.bf16.mxu0 0
  %431 = vmatpush1.bf16.xpose.msra.mxu0 0
  %432 = vmatprep.subr.bf16.mxu0 0
  %433 = vmatpush1.bf16.xpose.msra.mxu0 %v416
  %434 = vmatprep.subr.bf16.mxu0 0
  %435 = vmatpush2.bf16.xpose.msra.mxu0 0
  %436 = vmatprep.subr.bf16.mxu0 0
  %437 = vmatpush2.bf16.xpose.msra.mxu0 0
  %438 = vmatprep.subr.bf16.mxu0 0
  %439 = vmatpush2.bf16.xpose.msra.mxu0 0
  %440 = vmatprep.subr.bf16.mxu0 0
  %441 = vmatpush2.bf16.xpose.msra.mxu0 0
  %442 = vmatprep.subr.bf16.mxu0 0
  %443 = vmatpush2.bf16.xpose.msra.mxu0 0
  %444 = vmatprep.subr.bf16.mxu0 0
  %445 = vmatpush2.bf16.xpose.msra.mxu0 0
  %446 = vmatprep.subr.bf16.mxu0 0
  %447 = vmatpush2.bf16.xpose.msra.mxu0 0
  %448 = vmatprep.subr.bf16.mxu0 0
  %449 = vmatpush2.bf16.xpose.msra.mxu0 0
  %450 = vmatprep.mubr.bf16.mxu0 0
  %451 = vmatmul.mubr.bf16.gmra.mxu0 %v413
  %v452 = vpop.f32.mrf.mxu0
  %v453 = vadd.f32 0.0, %v452
  %v454 = vpop.f32.mrf.mxu0
  %v455 = vpop.f32.mrf.mxu0
  %v456 = vadd.f32 0.0, %v455
  %v457 = vpop.f32.mrf.mxu0
  %458 = vdwg.mxu0
  %v459 = vmul.f32 %v453, 0.35355338
  %v460 = vmul.f32 %v456, 0.35355338
  %s461 = scalar_lea.vmem %s1, 48
  %v462 = vld [vmem:[%s461] sm:$0xff]
  %v463 = vld [vmem:[%s461 + $0x8] sm:$0xff]
  %v464 = vadd.f32 %v459, %v462
  %v465 = vadd.f32 %v460, %v463
  %v466 = vsel %vm81, %v464, -inf
  %467 = vmax.xlane.f32.xlu0 %v466
  %v468 = vpop.xlane.xlu0 %467
  %v469 = vsel %vm81, %v465, -inf
  %470 = vmax.xlane.f32.xlu0 %v469
  %v471 = vpop.xlane.xlu0 %470
  %v472 = vsub.f32 %v464, %v468
  %v473 = vsub.f32 %v465, %v471
  %v474 = vmul.f32 %v472, 1.442695
  %v475 = vpow.pop %v474
  %v476 = vmul.f32 %v473, 1.442695
  %v477 = vpow.pop %v476
  %v478 = vsel %vm81, %v475, 0.0
  %479 = vadd.xlane.f32.xlu0 %v478
  %v480 = vpop.xlane.xlu0 %479
  %v481 = vsel %vm81, %v477, 0.0
  %482 = vadd.xlane.f32.xlu0 %v481
  %v483 = vpop.xlane.xlu0 %482
  %v484 = vpack.c.bf16 %v477, %v475
  %485 = vrot.lane.b32.xlu0 %v24, 40
  %v486 = vpop.permute.xlu0 %485
  %v489 = vsel %vm81, %v484, 0
  %491 = vmatprep.subr.bf16.mxu0 0
  %492 = vmatpush1.bf16.msra.mxu0 0
  %493 = vmatprep.subr.bf16.mxu0 0
  %494 = vmatpush1.bf16.msra.mxu0 0
  %495 = vmatprep.subr.bf16.mxu0 0
  %496 = vmatpush1.bf16.msra.mxu0 0
  %497 = vmatprep.subr.bf16.mxu0 0
  %498 = vmatpush1.bf16.msra.mxu0 0
  %499 = vmatprep.subr.bf16.mxu0 0
  %500 = vmatpush1.bf16.msra.mxu0 0
  %501 = vmatprep.subr.bf16.mxu0 0
  %502 = vmatpush1.bf16.msra.mxu0 0
  %503 = vmatprep.subr.bf16.mxu0 0
  %504 = vmatpush1.bf16.msra.mxu0 0
  %505 = vmatprep.subr.bf16.mxu0 0
  %506 = vmatpush1.bf16.msra.mxu0 %v486
  %507 = vmatprep.subr.bf16.mxu0 0
  %508 = vmatpush2.bf16.msra.mxu0 0
  %509 = vmatprep.subr.bf16.mxu0 0
  %510 = vmatpush2.bf16.msra.mxu0 0
  %511 = vmatprep.subr.bf16.mxu0 0
  %512 = vmatpush2.bf16.msra.mxu0 0
  %513 = vmatprep.subr.bf16.mxu0 0
  %514 = vmatpush2.bf16.msra.mxu0 0
  %515 = vmatprep.subr.bf16.mxu0 0
  %516 = vmatpush2.bf16.msra.mxu0 0
  %517 = vmatprep.subr.bf16.mxu0 0
  %518 = vmatpush2.bf16.msra.mxu0 0
  %519 = vmatprep.subr.bf16.mxu0 0
  %520 = vmatpush2.bf16.msra.mxu0 0
  %521 = vmatprep.subr.bf16.mxu0 0
  %522 = vmatpush2.bf16.msra.mxu0 0
  %523 = vmatprep.mubr.bf16.mxu0 0
  %524 = vmatmul.mubr.bf16.gmra.mxu0 %v489
  %v525 = vpop.f32.mrf.mxu0
  %v526 = vadd.f32 0.0, %v525
  %v527 = vpop.f32.mrf.mxu0
  %v528 = vpop.f32.mrf.mxu0
  %v529 = vadd.f32 0.0, %v528
  %v530 = vpop.f32.mrf.mxu0
  %531 = vdwg.mxu0
  %v532 = vrcp.pop %v480
  %v533 = vrcp.pop %v483
  %v534 = vmul.f32 %v526, %v532
  %v535 = vmul.f32 %v529, %v533
  %538 = vrot.lane.b32.xlu0 %v278, 8
  %v539 = vpop.permute.xlu0 %538
  %540 = vrot.lane.b32.xlu0 %v279, 8
  %v541 = vpop.permute.xlu0 %540
  %546 = vrot.lane.b32.xlu0 %v406, 16
  %v547 = vpop.permute.xlu0 %546
  %548 = vrot.lane.b32.xlu0 %v407, 16
  %v549 = vpop.permute.xlu0 %548
  %554 = vrot.lane.b32.xlu0 %v534, 24
  %v555 = vpop.permute.xlu0 %554
  %556 = vrot.lane.b32.xlu0 %v535, 24
  %v557 = vpop.permute.xlu0 %556
  %v560 = vsel %vm27, %v150, %v539
  %v561 = vsel %vm27, %v151, %v541
  %v562 = vsel %vm81, %v560, %v547
  %v563 = vsel %vm81, %v561, %v549
  %vm564 = vcmask 195584
  %v565 = vsel %vm564, %v562, %v555
  %v566 = vsel %vm564, %v563, %v557
  %v567 = vpack.c.bf16 %v566, %v565
  %v568 = vld [vmem:[%s2] sm:$0xf]
  %v569 = vld [vmem:[%s2 + $0x4] sm:$0xf]
  %v570 = vld [vmem:[%s2 + $0x8] sm:$0xf]
  %v571 = vld [vmem:[%s2 + $0xc] sm:$0xf]
  %v572 = vld [vmem:[%s3] sm:$0x1]
  %v574 = vlaneseq
  %v575 = vshrl.u32 %v574, 7
  %v576 = vsub.s32 0, %v575
  %v577 = vrot.slane %v572, %v576
  %v583 = vunpack.c.l.b16 %v568
  %v584 = vunpack.c.l.b16 %v569
  %v585 = vunpack.c.l.b16 %v570
  %v586 = vunpack.c.l.b16 %v571
  %v587 = vpack.c.b16 %v584, %v583
  %v588 = vpack.c.b16 %v586, %v585
  %vm591 = vcmask 261120
  %v593 = vsel %vm591, %v567, 0
  %595 = vmatprep.subr.bf16.mxu0 0
  %596 = vmatpush1.bf16.msra.mxu0 0
  %597 = vmatprep.subr.bf16.mxu0 0
  %598 = vmatpush1.bf16.msra.mxu0 0
  %599 = vmatprep.subr.bf16.mxu0 0
  %600 = vmatpush1.bf16.msra.mxu0 0
  %601 = vmatprep.subr.bf16.mxu0 0
  %602 = vmatpush1.bf16.msra.mxu0 0
  %603 = vmatprep.subr.bf16.mxu0 0
  %604 = vmatpush1.bf16.msra.mxu0 0
  %605 = vmatprep.subr.bf16.mxu0 0
  %606 = vmatpush1.bf16.msra.mxu0 0
  %607 = vmatprep.subr.bf16.mxu0 0
  %608 = vmatpush1.bf16.msra.mxu0 %v588
  %609 = vmatprep.subr.bf16.mxu0 0
  %610 = vmatpush1.bf16.msra.mxu0 %v587
  %611 = vmatprep.subr.bf16.mxu0 0
  %612 = vmatpush2.bf16.msra.mxu0 0
  %613 = vmatprep.subr.bf16.mxu0 0
  %614 = vmatpush2.bf16.msra.mxu0 0
  %615 = vmatprep.subr.bf16.mxu0 0
  %616 = vmatpush2.bf16.msra.mxu0 0
  %617 = vmatprep.subr.bf16.mxu0 0
  %618 = vmatpush2.bf16.msra.mxu0 0
  %619 = vmatprep.subr.bf16.mxu0 0
  %620 = vmatpush2.bf16.msra.mxu0 0
  %621 = vmatprep.subr.bf16.mxu0 0
  %622 = vmatpush2.bf16.msra.mxu0 0
  %623 = vmatprep.subr.bf16.mxu0 0
  %624 = vmatpush2.bf16.msra.mxu0 0
  %625 = vmatprep.subr.bf16.mxu0 0
  %626 = vmatpush2.bf16.msra.mxu0 0
  %627 = vmatprep.mubr.bf16.mxu0 0
  %628 = vmatmul.mubr.bf16.gmra.mxu0 %v593
  %v629 = vpop.f32.mrf.mxu0
  %v630 = vadd.f32 %v577, %v629
  %v631 = vpop.f32.mrf.mxu0
  %v632 = vpop.f32.mrf.mxu0
  %v633 = vadd.f32 %v577, %v632
  %v634 = vpop.f32.mrf.mxu0
  %635 = vdwg.mxu0
  %v636 = vpack.c.bf16 %v633, %v630
  %v638 = vunpack.c.l.b16 %v636
  %v639 = vunpack.c.h.b16 %v636
  %v640 = vpack.c.b16 %v638, %v638
  %v641 = vpack.c.b16 %v639, %v639
  %vm644 = vcmask 257024
  %645 = vst.msk [vmem:[%s4] sm:$0xf] %vm644, %v640
  %646 = vst.msk [vmem:[%s4 + $0x4] sm:$0xf] %vm644, %v641
  // Predicated region
  $region18: #{swin_forward.24} parent=0 // pred_check
    _
  $region19: #{swin_forward.24} parent=0 // pred_check_branch
    %648 = sbr.rel (0) target = $region21
  $region20: #{swin_forward.24} parent=0 // pred_region
    _
  $region21: #{swin_forward.24} parent=0 // pred_fallthru
    _
  // Predicated region
  $region22: #{swin_forward.24} parent=0 // pred_check
    _
  $region23: #{swin_forward.24} parent=0 // pred_check_branch
    %650 = sbr.rel (0) target = $region25
  $region24: #{swin_forward.24} parent=0 // pred_region
    _
  $region25: #{swin_forward.24} parent=0 // pred_fallthru
    _

// kernel: swin_forward.29
$region0: #{swin_forward.29}
  #allocation0 [shape = 'u32[]', space=smem, size = 0x4, offset = 0x4, fixed_abs, tag = 'smem constant byte address 0x4 - core index']
  #allocation1 [shape = 'u32[144,128]{1,0:T(1,128)}', space=vmem, size = 0x12000, scoped, tag = 'internal scratch']
  %s0 = inlined_call_operand.vmem [shape: f32[2,8,32], index: 0, kind: input, shape index: {}]
  %s1 = inlined_call_operand.vmem [shape: f32[1,32], index: 1, kind: input, shape index: {}]
  %s2 = inlined_call_operand.vmem [shape: f32[1,32], index: 2, kind: input, shape index: {}]
  %s3 = inlined_call_operand.vmem [shape: bf16[32,128], index: 3, kind: input, shape index: {}]
  %s4 = inlined_call_operand.vmem [shape: f32[1,128], index: 4, kind: input, shape index: {}]
  %s5 = inlined_call_operand.hbm [shape: f32[2,128], index: 5, kind: output, shape index: {}]
  %s6 = sld [smem:[#allocation0]]
  $region30: #{swin_forward.29} parent=0
    _
  %s8 = ssub.s32 1, %s6
  %s9 = scalar_select 0, %s8, %s6
  $region1: #{swin_forward.29} parent=0
    #allocation2 [shape = 'u8[1024]{0}', space=vmem, size = 0x400, scoped, tag = 'output window, operand 0, single buffered']
    #allocation3 [shape = 's32[1]{0}', space=sflag, size = 0x4, scoped, tag = 'scoped memory for swin_forward.29']
    %10 = vsyncpa [#allocation3], 0
    // Predicated region
    $region2: #{swin_forward.29} parent=1 // pred_check
      _
    $region3: #{swin_forward.29} parent=1 // pred_check_branch
      %12 = sbr.rel (0) target = $region5
    $region4: #{swin_forward.29} parent=1 // pred_region
      _
    $region5: #{swin_forward.29} parent=1 // pred_fallthru
      _
    // Predicated region
    $region6: #{swin_forward.29} parent=1 // pred_check
      _
    $region7: #{swin_forward.29} parent=1 // pred_check_branch
      %14 = sbr.rel (0) target = $region9
    $region8: #{swin_forward.29} parent=1 // pred_region
      _
    $region9: #{swin_forward.29} parent=1 // pred_fallthru
      _
    // Predicated region
    $region10: #{swin_forward.29} parent=1 // pred_check
      _
    $region11: #{swin_forward.29} parent=1 // pred_check_branch
      %16 = sbr.rel (0) target = $region13
    $region12: #{swin_forward.29} parent=1 // pred_region
      _
    $region13: #{swin_forward.29} parent=1 // pred_fallthru
      _
    // Predicated region
    $region14: #{swin_forward.29} parent=1 // pred_check
      _
    $region15: #{swin_forward.29} parent=1 // pred_check_branch
      %18 = sbr.rel (0) target = $region17
    $region16: #{swin_forward.29} parent=1 // pred_region
      _
    $region17: #{swin_forward.29} parent=1 // pred_fallthru
      _
    // Predicated region
    $region18: #{swin_forward.29} parent=1 // pred_check
      _
    $region19: #{swin_forward.29} parent=1 // pred_check_branch
      %20 = sbr.rel (0) target = $region21
    $region20: #{swin_forward.29} parent=1 // pred_region
      _
    $region21: #{swin_forward.29} parent=1 // pred_fallthru
      _
    %v22 = vld [vmem:[%s0] sm:$0xff]
    %v23 = vld [vmem:[%s0 + $0x8] sm:$0xff]
    %v24 = vld [vmem:[%s1] sm:$0x1]
    %v25 = vld [vmem:[%s2] sm:$0x1]
    %vm26 = vcmask 261120
    %v27 = vsel %vm26, %v22, 0.0
    %28 = vadd.xlane.f32.xlu0 %v27
    %v29 = vpop.xlane.xlu0 %28
    %v30 = vsel %vm26, %v23, 0.0
    %31 = vadd.xlane.f32.xlu0 %v30
    %v32 = vpop.xlane.xlu0 %31
    %v33 = vrcp.pop 32.0
    %v34 = vmul.f32 %v29, %v33
    %v35 = vmul.f32 %v32, %v33
    %v36 = vsub.f32 %v22, %v34
    %v37 = vsub.f32 %v23, %v35
    %v38 = vmul.f32 %v36, %v36
    %v39 = vmul.f32 %v37, %v37
    %v40 = vsel %vm26, %v38, 0.0
    %41 = vadd.xlane.f32.xlu0 %v40
    %v42 = vpop.xlane.xlu0 %41
    %v43 = vsel %vm26, %v39, 0.0
    %44 = vadd.xlane.f32.xlu0 %v43
    %v45 = vpop.xlane.xlu0 %44
    %v46 = vmul.f32 %v42, %v33
    %v47 = vmul.f32 %v45, %v33
    %v48 = vadd.f32 %v46, 1e-05
    %v49 = vadd.f32 %v47, 1e-05
    %v50 = vrsqrt.pop %v48
    %v51 = vrsqrt.pop %v49
    %v52 = vmul.f32 %v36, %v50
    %v53 = vmul.f32 %v37, %v51
    %v55 = vlaneseq
    %v56 = vshrl.u32 %v55, 7
    %v57 = vsub.s32 0, %v56
    %v58 = vrot.slane %v24, %v57
    %v60 = vmul.f32 %v52, %v58
    %v61 = vmul.f32 %v53, %v58
    %v63 = vlaneseq
    %v64 = vshrl.u32 %v63, 7
    %v65 = vsub.s32 0, %v64
    %v66 = vrot.slane %v25, %v65
    %v68 = vadd.f32 %v60, %v66
    %v69 = vadd.f32 %v61, %v66
    %v70 = vsel %vm26, %v68, 0.0
    %v71 = vrot.slane %v70, 4
    %v72 = vadd.f32 %v70, %v71
    %v73 = vrot.slane %v72, 2
    %v74 = vadd.f32 %v72, %v73
    %v75 = vrot.slane %v74, 1
    %v76 = vadd.f32 %v74, %v75
    %v77 = vsel %vm26, %v69, 0.0
    %v78 = vrot.slane %v77, 4
    %v79 = vadd.f32 %v77, %v78
    %v80 = vrot.slane %v79, 2
    %v81 = vadd.f32 %v79, %v80
    %v82 = vrot.slane %v81, 1
    %v83 = vadd.f32 %v81, %v82
    %v84 = vrcp.pop 8.0
    %v85 = vmul.f32 %v76, %v84
    %v86 = vmul.f32 %v83, %v84
    %v87 = vpack.c.bf16 %v85, %v85
    %v88 = vpack.c.bf16 %v86, %v86
    %v89 = vld [vmem:[%s3] sm:$0xf]
    %v90 = vld [vmem:[%s3 + $0x4] sm:$0xf]
    %v91 = vld [vmem:[%s3 + $0x8] sm:$0xf]
    %v92 = vld [vmem:[%s3 + $0xc] sm:$0xf]
    %v93 = vld [vmem:[%s4] sm:$0x1]
    %v95 = vlaneseq
    %v96 = vshrl.u32 %v95, 7
    %v97 = vsub.s32 0, %v96
    %v98 = vrot.slane %v93, %v97
    %v102 = vunpack.c.l.b16 %v87
    %v103 = vunpack.c.l.b16 %v88
    %vm104 = vcmask 1041409
    %v105 = vsel %vm104, %v103, %v102
    %v106 = vpack.c.b16 %v105, %v105
    %v111 = vunpack.c.l.b16 %v89
    %v112 = vunpack.c.l.b16 %v90
    %v113 = vunpack.c.l.b16 %v91
    %v114 = vunpack.c.l.b16 %v92
    %v115 = vpack.c.b16 %v112, %v111
    %v116 = vpack.c.b16 %v114, %v113
    %v120 = vsel %vm26, %v106, 0
    %122 = vmatprep.subr.bf16.mxu0 0
    %123 = vmatpush1.bf16.msra.mxu0 0
    %124 = vmatprep.subr.bf16.mxu0 0
    %125 = vmatpush1.bf16.msra.mxu0 0
    %126 = vmatprep.subr.bf16.mxu0 0
    %127 = vmatpush1.bf16.msra.mxu0 0
    %128 = vmatprep.subr.bf16.mxu0 0
    %129 = vmatpush1.bf16.msra.mxu0 0
    %130 = vmatprep.subr.bf16.mxu0 0
    %131 = vmatpush1.bf16.msra.mxu0 0
    %132 = vmatprep.subr.bf16.mxu0 0
    %133 = vmatpush1.bf16.msra.mxu0 0
    %134 = vmatprep.subr.bf16.mxu0 0
    %135 = vmatpush1.bf16.msra.mxu0 %v116
    %136 = vmatprep.subr.bf16.mxu0 0
    %137 = vmatpush1.bf16.msra.mxu0 %v115
    %138 = vmatprep.subr.bf16.mxu0 0
    %139 = vmatpush2.bf16.msra.mxu0 0
    %140 = vmatprep.subr.bf16.mxu0 0
    %141 = vmatpush2.bf16.msra.mxu0 0
    %142 = vmatprep.subr.bf16.mxu0 0
    %143 = vmatpush2.bf16.msra.mxu0 0
    %144 = vmatprep.subr.bf16.mxu0 0
    %145 = vmatpush2.bf16.msra.mxu0 0
    %146 = vmatprep.subr.bf16.mxu0 0
    %147 = vmatpush2.bf16.msra.mxu0 0
    %148 = vmatprep.subr.bf16.mxu0 0
    %149 = vmatpush2.bf16.msra.mxu0 0
    %150 = vmatprep.subr.bf16.mxu0 0
    %151 = vmatpush2.bf16.msra.mxu0 0
    %152 = vmatprep.subr.bf16.mxu0 0
    %153 = vmatpush2.bf16.msra.mxu0 0
    %154 = vmatprep.mubr.bf16.mxu0 0
    %155 = vmatmul.mubr.bf16.gmra.mxu0 %v120
    %v156 = vpop.f32.mrf.mxu0
    %v157 = vadd.f32 %v98, %v156
    %v158 = vpop.f32.mrf.mxu0
    %v159 = vpop.f32.mrf.mxu0
    %v160 = vpop.f32.mrf.mxu0
    %161 = vdwg.mxu0
    %162 = vst [vmem:[#allocation2] sm:$0x3] %v157
    // Predicated region
    $region22: #{swin_forward.29} parent=1 // pred_check
      _
    $region23: #{swin_forward.29} parent=1 // pred_check_branch
      %164 = sbr.rel (0) target = $region25
    $region24: #{swin_forward.29} parent=1 // pred_region
      %s166 = ssub.s32 32, 32
      %167 = vsyncadd [#allocation3], %s166
      %s169 = sshll.u32 [#allocation2], 4
      %s170 = int_to_ptr.vmem [resolvable:$true] %s169
      %172 = dma.vmem_to_hbm [thread:$0]  %s170, 32, %s5, [#allocation3]
    $region25: #{swin_forward.29} parent=1 // pred_fallthru
      _
    // Predicated region
    $region26: #{swin_forward.29} parent=1 // pred_check
      _
    $region27: #{swin_forward.29} parent=1 // pred_check_branch
      %174 = sbr.rel (0) target = $region29
    $region28: #{swin_forward.29} parent=1 // pred_region
      %175 = dma.done [#allocation3], 32
    $region29: #{swin_forward.29} parent=1 // pred_fallthru
      _
    %176 = vsyncpa [#allocation3], 1

// kernel: swin_forward.25
$region0: #{swin_forward.25}
  #allocation0 [shape = 'u32[]', space=smem, size = 0x4, offset = 0x4, fixed_abs, tag = 'smem constant byte address 0x4 - core index']
  #allocation1 [shape = 'u32[144,128]{1,0:T(1,128)}', space=vmem, size = 0x12000, scoped, tag = 'internal scratch']
  %s0 = inlined_call_operand.vmem [shape: f32[16,32], index: 0, kind: input, shape index: {}]
  %s1 = inlined_call_operand.vmem [shape: bf16[16,32], index: 1, kind: input, shape index: {}]
  %s2 = inlined_call_operand.vmem [shape: f32[1,32], index: 2, kind: input, shape index: {}]
  %s3 = inlined_call_operand.vmem [shape: f32[1,32], index: 3, kind: input, shape index: {}]
  %s4 = inlined_call_operand.vmem [shape: bf16[32,128], index: 4, kind: input, shape index: {}]
  %s5 = inlined_call_operand.vmem [shape: f32[1,128], index: 5, kind: input, shape index: {}]
  %s6 = inlined_call_operand.vmem [shape: bf16[128,32], index: 6, kind: input, shape index: {}]
  %s7 = inlined_call_operand.vmem [shape: f32[1,32], index: 7, kind: input, shape index: {}]
  %s8 = inlined_call_operand.vmem [shape: f32[16,32], index: 8, kind: output, shape index: {}]
  %s9 = sld [smem:[#allocation0]]
  $region42: #{swin_forward.25} parent=0
    _
  %s11 = ssub.s32 1, %s9
  %s12 = scalar_select 0, %s11, %s9
  // Predicated region
  $region2: #{swin_forward.25} parent=0 // pred_check
    _
  $region3: #{swin_forward.25} parent=0 // pred_check_branch
    %14 = sbr.rel (0) target = $region5
  $region4: #{swin_forward.25} parent=0 // pred_region
    _
  $region5: #{swin_forward.25} parent=0 // pred_fallthru
    _
  // Predicated region
  $region6: #{swin_forward.25} parent=0 // pred_check
    _
  $region7: #{swin_forward.25} parent=0 // pred_check_branch
    %16 = sbr.rel (0) target = $region9
  $region8: #{swin_forward.25} parent=0 // pred_region
    _
  $region9: #{swin_forward.25} parent=0 // pred_fallthru
    _
  // Predicated region
  $region10: #{swin_forward.25} parent=0 // pred_check
    _
  $region11: #{swin_forward.25} parent=0 // pred_check_branch
    %18 = sbr.rel (0) target = $region13
  $region12: #{swin_forward.25} parent=0 // pred_region
    _
  $region13: #{swin_forward.25} parent=0 // pred_fallthru
    _
  // Predicated region
  $region14: #{swin_forward.25} parent=0 // pred_check
    _
  $region15: #{swin_forward.25} parent=0 // pred_check_branch
    %20 = sbr.rel (0) target = $region17
  $region16: #{swin_forward.25} parent=0 // pred_region
    _
  $region17: #{swin_forward.25} parent=0 // pred_fallthru
    _
  // Predicated region
  $region18: #{swin_forward.25} parent=0 // pred_check
    _
  $region19: #{swin_forward.25} parent=0 // pred_check_branch
    %22 = sbr.rel (0) target = $region21
  $region20: #{swin_forward.25} parent=0 // pred_region
    _
  $region21: #{swin_forward.25} parent=0 // pred_fallthru
    _
  // Predicated region
  $region22: #{swin_forward.25} parent=0 // pred_check
    _
  $region23: #{swin_forward.25} parent=0 // pred_check_branch
    %24 = sbr.rel (0) target = $region25
  $region24: #{swin_forward.25} parent=0 // pred_region
    _
  $region25: #{swin_forward.25} parent=0 // pred_fallthru
    _
  // Predicated region
  $region26: #{swin_forward.25} parent=0 // pred_check
    _
  $region27: #{swin_forward.25} parent=0 // pred_check_branch
    %26 = sbr.rel (0) target = $region29
  $region28: #{swin_forward.25} parent=0 // pred_region
    _
  $region29: #{swin_forward.25} parent=0 // pred_fallthru
    _
  // Predicated region
  $region30: #{swin_forward.25} parent=0 // pred_check
    _
  $region31: #{swin_forward.25} parent=0 // pred_check_branch
    %28 = sbr.rel (0) target = $region33
  $region32: #{swin_forward.25} parent=0 // pred_region
    _
  $region33: #{swin_forward.25} parent=0 // pred_fallthru
    _
  %v30 = vld [vmem:[%s0] sm:$0xff]
  %v31 = vld [vmem:[%s0 + $0x8] sm:$0xff]
  %v32 = vld [vmem:[%s1] sm:$0xf]
  %v33 = vld [vmem:[%s1 + $0x4] sm:$0xf]
  %v34 = vunpack.c.l.bf16 %v32
  %v35 = vunpack.c.l.bf16 %v33
  %v36 = vadd.f32 %v30, %v34
  %v37 = vadd.f32 %v31, %v35
  %v38 = vld [vmem:[%s2] sm:$0x1]
  %v39 = vld [vmem:[%s3] sm:$0x1]
  %vm40 = vcmask 261120
  %v41 = vsel %vm40, %v36, 0.0
  %42 = vadd.xlane.f32.xlu0 %v41
  %v43 = vpop.xlane.xlu0 %42
  %v44 = vsel %vm40, %v37, 0.0
  %45 = vadd.xlane.f32.xlu0 %v44
  %v46 = vpop.xlane.xlu0 %45
  %v47 = vrcp.pop 32.0
  %v48 = vmul.f32 %v43, %v47
  %v49 = vmul.f32 %v46, %v47
  %v50 = vsub.f32 %v36, %v48
  %v51 = vsub.f32 %v37, %v49
  %v52 = vmul.f32 %v50, %v50
  %v53 = vmul.f32 %v51, %v51
  %v54 = vsel %vm40, %v52, 0.0
  %55 = vadd.xlane.f32.xlu0 %v54
  %v56 = vpop.xlane.xlu0 %55
  %v57 = vsel %vm40, %v53, 0.0
  %58 = vadd.xlane.f32.xlu0 %v57
  %v59 = vpop.xlane.xlu0 %58
  %v60 = vmul.f32 %v56, %v47
  %v61 = vmul.f32 %v59, %v47
  %v62 = vadd.f32 %v60, 1e-05
  %v63 = vadd.f32 %v61, 1e-05
  %v64 = vrsqrt.pop %v62
  %v65 = vrsqrt.pop %v63
  %v66 = vmul.f32 %v50, %v64
  %v67 = vmul.f32 %v51, %v65
  %v69 = vlaneseq
  %v70 = vshrl.u32 %v69, 7
  %v71 = vsub.s32 0, %v70
  %v72 = vrot.slane %v38, %v71
  %v74 = vmul.f32 %v66, %v72
  %v75 = vmul.f32 %v67, %v72
  %v77 = vlaneseq
  %v78 = vshrl.u32 %v77, 7
  %v79 = vsub.s32 0, %v78
  %v80 = vrot.slane %v39, %v79
  %v82 = vadd.f32 %v74, %v80
  %v83 = vadd.f32 %v75, %v80
  %v84 = vpack.c.bf16 %v83, %v82
  %v85 = vld [vmem:[%s4] sm:$0xf]
  %v86 = vld [vmem:[%s4 + $0x4] sm:$0xf]
  %v87 = vld [vmem:[%s4 + $0x8] sm:$0xf]
  %v88 = vld [vmem:[%s4 + $0xc] sm:$0xf]
  %v89 = vld [vmem:[%s5] sm:$0x1]
  %v91 = vlaneseq
  %v92 = vshrl.u32 %v91, 7
  %v93 = vsub.s32 0, %v92
  %v94 = vrot.slane %v89, %v93
  %v100 = vunpack.c.l.b16 %v85
  %v101 = vunpack.c.l.b16 %v86
  %v102 = vunpack.c.l.b16 %v87
  %v103 = vunpack.c.l.b16 %v88
  %v104 = vpack.c.b16 %v101, %v100
  %v105 = vpack.c.b16 %v103, %v102
  %v109 = vsel %vm40, %v84, 0
  %111 = vmatprep.subr.bf16.mxu0 0
  %112 = vmatpush1.bf16.msra.mxu0 0
  %113 = vmatprep.subr.bf16.mxu0 0
  %114 = vmatpush1.bf16.msra.mxu0 0
  %115 = vmatprep.subr.bf16.mxu0 0
  %116 = vmatpush1.bf16.msra.mxu0 0
  %117 = vmatprep.subr.bf16.mxu0 0
  %118 = vmatpush1.bf16.msra.mxu0 0
  %119 = vmatprep.subr.bf16.mxu0 0
  %120 = vmatpush1.bf16.msra.mxu0 0
  %121 = vmatprep.subr.bf16.mxu0 0
  %122 = vmatpush1.bf16.msra.mxu0 0
  %123 = vmatprep.subr.bf16.mxu0 0
  %124 = vmatpush1.bf16.msra.mxu0 %v105
  %125 = vmatprep.subr.bf16.mxu0 0
  %126 = vmatpush1.bf16.msra.mxu0 %v104
  %127 = vmatprep.subr.bf16.mxu0 0
  %128 = vmatpush2.bf16.msra.mxu0 0
  %129 = vmatprep.subr.bf16.mxu0 0
  %130 = vmatpush2.bf16.msra.mxu0 0
  %131 = vmatprep.subr.bf16.mxu0 0
  %132 = vmatpush2.bf16.msra.mxu0 0
  %133 = vmatprep.subr.bf16.mxu0 0
  %134 = vmatpush2.bf16.msra.mxu0 0
  %135 = vmatprep.subr.bf16.mxu0 0
  %136 = vmatpush2.bf16.msra.mxu0 0
  %137 = vmatprep.subr.bf16.mxu0 0
  %138 = vmatpush2.bf16.msra.mxu0 0
  %139 = vmatprep.subr.bf16.mxu0 0
  %140 = vmatpush2.bf16.msra.mxu0 0
  %141 = vmatprep.subr.bf16.mxu0 0
  %142 = vmatpush2.bf16.msra.mxu0 0
  %143 = vmatprep.mubr.bf16.mxu0 0
  %144 = vmatmul.mubr.bf16.gmra.mxu0 %v109
  %v145 = vpop.f32.mrf.mxu0
  %v146 = vadd.f32 %v94, %v145
  %v147 = vpop.f32.mrf.mxu0
  %v148 = vpop.f32.mrf.mxu0
  %v149 = vadd.f32 %v94, %v148
  %v150 = vpop.f32.mrf.mxu0
  %151 = vdwg.mxu0
  %v152 = vmul.f32 %v146, 0.5
  %v153 = vmul.f32 %v149, 0.5
  %v154 = vmul.f32 %v146, 0.70710677
  %v155 = vmul.f32 %v149, 0.70710677
  %v156 = vand.u32 2147483647, %v154
  %v157 = vand.u32 2147483647, %v155
  %v158 = vmul.f32 %v156, 0.3275911
  %v159 = vmul.f32 %v157, 0.3275911
  %v160 = vadd.f32 %v158, 1.0
  %v161 = vadd.f32 %v159, 1.0
  %v162 = vrcp.pop %v160
  %v163 = vmul.f32 1.0, %v162
  %v164 = vrcp.pop %v161
  %v165 = vmul.f32 1.0, %v164
  %v166 = vmul.f32 %v163, 1.0614054
  %v167 = vmul.f32 %v165, 1.0614054
  %v168 = vadd.f32 %v166, -1.4531521
  %v169 = vadd.f32 %v167, -1.4531521
  %v170 = vmul.f32 %v168, %v163
  %v171 = vmul.f32 %v169, %v165
  %v172 = vadd.f32 %v170, 1.4214138
  %v173 = vadd.f32 %v171, 1.4214138
  %v174 = vmul.f32 %v172, %v163
  %v175 = vmul.f32 %v173, %v165
  %v176 = vadd.f32 %v174, -0.28449672
  %v177 = vadd.f32 %v175, -0.28449672
  %v178 = vmul.f32 %v176, %v163
  %v179 = vmul.f32 %v177, %v165
  %v180 = vadd.f32 %v178, 0.2548296
  %v181 = vadd.f32 %v179, 0.2548296
  %v182 = vmul.f32 %v180, %v163
  %v183 = vmul.f32 %v181, %v165
  %v184 = vsub.f32 0.0, %v156
  %v185 = vsub.f32 0.0, %v157
  %v186 = vmul.f32 %v184, %v156
  %v187 = vmul.f32 %v185, %v157
  %v188 = vmul.f32 %v186, 1.442695
  %v189 = vpow.pop %v188
  %v190 = vmul.f32 %v187, 1.442695
  %v191 = vpow.pop %v190
  %v192 = vmul.f32 %v182, %v189
  %v193 = vmul.f32 %v183, %v191
  %v194 = vsub.f32 1.0, %v192
  %v195 = vsub.f32 1.0, %v193
  %vm196 = vcmp.lt.f32.partialorder %v154, 0.0
  %vm197 = vcmp.lt.f32.partialorder %v155, 0.0
  %v198 = vsub.f32 0.0, %v194
  %v199 = vsub.f32 0.0, %v195
  %v200 = vsel %vm196, %v198, %v194
  %v201 = vsel %vm197, %v199, %v195
  %v202 = vadd.f32 %v200, 1.0
  %v203 = vadd.f32 %v201, 1.0
  %v204 = vmul.f32 %v152, %v202
  %v205 = vmul.f32 %v153, %v203
  %v206 = vpack.c.bf16 %v205, %v204
  %v207 = vld [vmem:[%s6] sm:$0xf]
  %v208 = vld [vmem:[%s6 + $0x4] sm:$0xf]
  %v209 = vld [vmem:[%s6 + $0x8] sm:$0xf]
  %v210 = vld [vmem:[%s6 + $0xc] sm:$0xf]
  %v211 = vld [vmem:[%s6 + $0x10] sm:$0xf]
  %v212 = vld [vmem:[%s6 + $0x14] sm:$0xf]
  %v213 = vld [vmem:[%s6 + $0x18] sm:$0xf]
  %v214 = vld [vmem:[%s6 + $0x1c] sm:$0xf]
  %v215 = vld [vmem:[%s6 + $0x20] sm:$0xf]
  %v216 = vld [vmem:[%s6 + $0x24] sm:$0xf]
  %v217 = vld [vmem:[%s6 + $0x28] sm:$0xf]
  %v218 = vld [vmem:[%s6 + $0x2c] sm:$0xf]
  %v219 = vld [vmem:[%s6 + $0x30] sm:$0xf]
  %v220 = vld [vmem:[%s6 + $0x34] sm:$0xf]
  %v221 = vld [vmem:[%s6 + $0x38] sm:$0xf]
  %v222 = vld [vmem:[%s6 + $0x3c] sm:$0xf]
  %v223 = vld [vmem:[%s7] sm:$0x1]
  %v225 = vlaneseq
  %v226 = vshrl.u32 %v225, 7
  %v227 = vsub.s32 0, %v226
  %v228 = vrot.slane %v223, %v227
  %v246 = vunpack.c.l.b16 %v207
  %v247 = vunpack.c.l.b16 %v208
  %v248 = vunpack.c.l.b16 %v209
  %v249 = vunpack.c.l.b16 %v210
  %v250 = vunpack.c.l.b16 %v211
  %v251 = vunpack.c.l.b16 %v212
  %v252 = vunpack.c.l.b16 %v213
  %v253 = vunpack.c.l.b16 %v214
  %v254 = vunpack.c.l.b16 %v215
  %v255 = vunpack.c.l.b16 %v216
  %v256 = vunpack.c.l.b16 %v217
  %v257 = vunpack.c.l.b16 %v218
  %v258 = vunpack.c.l.b16 %v219
  %v259 = vunpack.c.l.b16 %v220
  %v260 = vunpack.c.l.b16 %v221
  %v261 = vunpack.c.l.b16 %v222
  %v262 = vpack.c.b16 %v247, %v246
  %v263 = vpack.c.b16 %v249, %v248
  %v264 = vpack.c.b16 %v251, %v250
  %v265 = vpack.c.b16 %v253, %v252
  %v266 = vpack.c.b16 %v255, %v254
  %v267 = vpack.c.b16 %v257, %v256
  %v268 = vpack.c.b16 %v259, %v258
  %v269 = vpack.c.b16 %v261, %v260
  %278 = vmatprep.subr.bf16.mxu0 0
  %279 = vmatpush1.bf16.msra.mxu0 %v269
  %280 = vmatprep.subr.bf16.mxu0 0
  %281 = vmatpush1.bf16.msra.mxu0 %v268
  %282 = vmatprep.subr.bf16.mxu0 0
  %283 = vmatpush1.bf16.msra.mxu0 %v267
  %284 = vmatprep.subr.bf16.mxu0 0
  %285 = vmatpush1.bf16.msra.mxu0 %v266
  %286 = vmatprep.subr.bf16.mxu0 0
  %287 = vmatpush1.bf16.msra.mxu0 %v265
  %288 = vmatprep.subr.bf16.mxu0 0
  %289 = vmatpush1.bf16.msra.mxu0 %v264
  %290 = vmatprep.subr.bf16.mxu0 0
  %291 = vmatpush1.bf16.msra.mxu0 %v263
  %292 = vmatprep.subr.bf16.mxu0 0
  %293 = vmatpush1.bf16.msra.mxu0 %v262
  %294 = vmatprep.subr.bf16.mxu0 0
  %295 = vmatpush2.bf16.msra.mxu0 0
  %296 = vmatprep.subr.bf16.mxu0 0
  %297 = vmatpush2.bf16.msra.mxu0 0
  %298 = vmatprep.subr.bf16.mxu0 0
  %299 = vmatpush2.bf16.msra.mxu0 0
  %300 = vmatprep.subr.bf16.mxu0 0
  %301 = vmatpush2.bf16.msra.mxu0 0
  %302 = vmatprep.subr.bf16.mxu0 0
  %303 = vmatpush2.bf16.msra.mxu0 0
  %304 = vmatprep.subr.bf16.mxu0 0
  %305 = vmatpush2.bf16.msra.mxu0 0
  %306 = vmatprep.subr.bf16.mxu0 0
  %307 = vmatpush2.bf16.msra.mxu0 0
  %308 = vmatprep.subr.bf16.mxu0 0
  %309 = vmatpush2.bf16.msra.mxu0 0
  %310 = vmatprep.mubr.bf16.mxu0 0
  %311 = vmatmul.mubr.bf16.gmra.mxu0 %v206
  %v312 = vpop.f32.mrf.mxu0
  %v313 = vadd.f32 %v228, %v312
  %v314 = vpop.f32.mrf.mxu0
  %v315 = vpop.f32.mrf.mxu0
  %v316 = vadd.f32 %v228, %v315
  %v317 = vpop.f32.mrf.mxu0
  %318 = vdwg.mxu0
  %v319 = vadd.f32 %v36, %v313
  %v320 = vadd.f32 %v37, %v316
  %321 = vst.msk [vmem:[%s8] sm:$0xff] %vm40, %v319
  %322 = vst.msk [vmem:[%s8 + $0x8] sm:$0xff] %vm40, %v320
  // Predicated region
  $region34: #{swin_forward.25} parent=0 // pred_check
    _
  $region35: #{swin_forward.25} parent=0 // pred_check_branch
    %324 = sbr.rel (0) target = $region37
  $region36: #{swin_forward.25} parent=0 // pred_region
    _
  $region37: #{swin_forward.25} parent=0 // pred_fallthru
    _
  // Predicated region
  $region38: #{swin_forward.25} parent=0 // pred_check
    _
  $region39: #{swin_forward.25} parent=0 // pred_check_branch
    %326 = sbr.rel (0) target = $region41
  $region40: #{swin_forward.25} parent=0 // pred_region
    _
  $region41: #{swin_forward.25} parent=0 // pred_fallthru
    _

</llo_original>
